<compile_context>
chip_gen: v6e
topology: v6e:2x2x1
jax: 0.10.0
libtpu: 0.0.40
codegen_flags: <defaults>
</compile_context>

<pallas_src>
import jax
import jax.numpy as jnp
from jax.experimental import pallas as pl
from jax.experimental.pallas import tpu as pltpu


def _leaky_relu(x):
    # slope in (0, 1)  =>  max(x, 0.2*x) == LeakyReLU(0.2)
    return jnp.maximum(x, jnp.float32(0.2) * x)


def _resnet12_block_kernel(x_ref, wa_ref, ba_ref,
                           w2_ref, b2_ref,
                           w3_ref, b3_ref,
                           o_ref, cpad_ref, col_ref, ppad_ref):
    _, H, W, Cin = x_ref.shape
    C = w3_ref.shape[1]
    Ho, Wo = H // 2, W // 2

    x = x_ref[0].reshape(H * W, Cin)                       # bf16, (H*W, Cin)

    # ---- fused conv1(1x1)+bn1 | residual conv(1x1)+bn: one matmul, K=Cin ---
    t = jnp.dot(x, wa_ref[...], preferred_element_type=jnp.float32)
    t = t + ba_ref[...]                                    # folded BN biases
    out1 = _leaky_relu(t[:, :C])                           # conv1 branch
    res = t[:, C:]                                         # residual branch

    # ---- conv2 (3x3, pad 1) via im2col + single MXU matmul (K = 9*C) -------
    zr = jnp.zeros((1, W + 2, C), cpad_ref.dtype)
    zc = jnp.zeros((H + 2, 1, C), cpad_ref.dtype)
    cpad_ref[0:1, :, :] = zr
    cpad_ref[H + 1:H + 2, :, :] = zr
    cpad_ref[:, 0:1, :] = zc
    cpad_ref[:, W + 1:W + 2, :] = zc
    cpad_ref[1:H + 1, 1:W + 1, :] = out1.reshape(H, W, C).astype(cpad_ref.dtype)

    for dh in range(3):
        for dw in range(3):
            tap = dh * 3 + dw
            col_ref[:, tap * C:(tap + 1) * C] = (
                cpad_ref[dh:dh + H, dw:dw + W, :].reshape(H * W, C))

    acc = jnp.dot(col_ref[...], w2_ref[...], preferred_element_type=jnp.float32)
    out2 = _leaky_relu(acc + b2_ref[...])

    # ---- conv3 (1x1) + bn3, residual add, LeakyReLU ------------------------
    out3 = jnp.dot(out2.astype(w3_ref.dtype), w3_ref[...],
                   preferred_element_type=jnp.float32)
    out = _leaky_relu(out3 + b3_ref[...] + res)

    # ---- max-pool 3x3, stride 2, pad 1 (true -inf halo), vectorized --------
    neg = jnp.float32(-jnp.inf)
    nr = jnp.full((1, W + 2, C), neg, jnp.float32)
    nc = jnp.full((H + 2, 1, C), neg, jnp.float32)
    ppad_ref[0:1, :, :] = nr
    ppad_ref[H + 1:H + 2, :, :] = nr
    ppad_ref[:, 0:1, :] = nc
    ppad_ref[:, W + 1:W + 2, :] = nc
    ppad_ref[1:H + 1, 1:W + 1, :] = out.reshape(H, W, C)

    P = ppad_ref[...]                                      # (H+2, W+2, C)
    # row pool: padded rows {2i, 2i+1, 2i+2} for output row i
    A = P[0:H].reshape(Ho, 2, W + 2, C)                    # A[:,0]=2i, A[:,1]=2i+1
    B = P[2:H + 2].reshape(Ho, 2, W + 2, C)                # B[:,0]=2i+2
    rp = jnp.maximum(jnp.maximum(A[:, 0], A[:, 1]), B[:, 0])   # (Ho, W+2, C)

    # column pool: padded cols {2j, 2j+1, 2j+2} for output col j
    CA = rp[:, 0:W, :].reshape(Ho, Wo, 2, C)               # [...,0]=2j, [...,1]=2j+1
    CB = rp[:, 2:W + 2, :].reshape(Ho, Wo, 2, C)           # [...,0]=2j+2
    pooled = jnp.maximum(jnp.maximum(CA[:, :, 0, :], CA[:, :, 1, :]),
                         CB[:, :, 0, :])                   # (Ho, Wo, C)

    # single lane-packed store
    o_ref[0] = pooled.reshape(Ho, Wo * C).astype(o_ref.dtype)


def _full(shape):
    return pl.BlockSpec(shape, lambda n: (0,) * len(shape))


def resnet12_block_forward(x_nchw, params, eps=1e-5):
    """Fused ResNet12Block forward (eval mode). x_nchw: (N, Cin, H, W) f32."""
    N, Cin, H, W = x_nchw.shape
    C = params['w1'].shape[0]
    assert H % 2 == 0 and W % 2 == 0, "even spatial dims assumed for H//2 pooling"
    Ho, Wo = H // 2, W // 2

    x = jnp.transpose(x_nchw, (0, 2, 3, 1)).astype(jnp.bfloat16)   # NHWC bf16

    def fold_bn(prefix):
        g = params[prefix + '_g']
        b = params[prefix + '_b']
        m = params[prefix + '_m']
        v = params[prefix + '_v']
        s = g / jnp.sqrt(v + eps)
        return (s.reshape(1, C).astype(jnp.float32),
                (b - m * s).reshape(1, C).astype(jnp.float32))

    def w1x1(w):  # torch (O, I, 1, 1) -> (I, O)
        return jnp.transpose(w[:, :, 0, 0], (1, 0))

    s1, b1 = fold_bn('bn1')
    sres, bres = fold_bn('bn')
    s2, b2 = fold_bn('bn2')
    s3, b3 = fold_bn('bn3')

    # BN scale folded into weights (per output channel = last weight axis).
    # fused 1x1 weight:  columns [0:C] = conv1/bn1 branch, [C:2C] = residual.
    w_a = jnp.concatenate([w1x1(params['w1']) * s1,
                           w1x1(params['w_res']) * sres],
                          axis=1).astype(jnp.bfloat16)              # (Cin, 2C)
    b_a = jnp.concatenate([b1, bres], axis=1)                       # (1, 2C)
    # torch (O, I, 3, 3) -> (tap*C + ic, O) with tap = dh*3 + dw
    w2 = jnp.transpose(params['w2'], (2, 3, 1, 0)).reshape(9 * C, C)
    w2 = (w2 * s2).astype(jnp.bfloat16)
    w3 = (w1x1(params['w3']) * s3).astype(jnp.bfloat16)

    out_flat = pl.pallas_call(
        _resnet12_block_kernel,
        out_shape=jax.ShapeDtypeStruct((N, Ho, Wo * C), jnp.float32),
        grid_spec=pltpu.PrefetchScalarGridSpec(
            num_scalar_prefetch=0,
            grid=(N,),
            in_specs=[
                pl.BlockSpec((1, H, W, Cin), lambda n: (n, 0, 0, 0)),
                _full((Cin, 2 * C)), _full((1, 2 * C)),
                _full((9 * C, C)), _full((1, C)),
                _full((C, C)), _full((1, C)),
            ],
            out_specs=pl.BlockSpec((1, Ho, Wo * C), lambda n: (n, 0, 0)),
            scratch_shapes=[
                pltpu.VMEM((H + 2, W + 2, C), jnp.bfloat16),   # zero-halo conv pad
                pltpu.VMEM((H * W, 9 * C), jnp.bfloat16),      # im2col buffer
                pltpu.VMEM((H + 2, W + 2, C), jnp.float32),    # -inf-halo pool pad
            ],
        ),
        compiler_params=pltpu.CompilerParams(
            dimension_semantics=("parallel",),
            vmem_limit_bytes=32 * 1024 * 1024,
        ),
    )(x, w_a, b_a, w2, b2, w3, b3)

    # (N, Ho, Wo*C) -> (N, Ho, Wo, C) -> (N, C, Ho, Wo)
    return jnp.transpose(out_flat.reshape(N, Ho, Wo, C), (0, 3, 1, 2))


def _reference(x, p, eps=1e-5):
    """Pure-JAX reference of the PyTorch forward (eval mode, drop_rate=0)."""
    hp = jax.lax.Precision.HIGHEST

    def conv(t, w, pad):
        return jax.lax.conv_general_dilated(
            t, w, (1, 1), pad,
            dimension_numbers=('NCHW', 'OIHW', 'NCHW'), precision=hp)

    def bn(t, prefix):
        g, b = p[prefix + '_g'], p[prefix + '_b']
        m, v = p[prefix + '_m'], p[prefix + '_v']
        s = g / jnp.sqrt(v + eps)
        return t * s[None, :, None, None] + (b - m * s)[None, :, None, None]

    lrelu = lambda t: jnp.where(t >= 0, t, 0.2 * t)

    res = bn(conv(x, p['w_res'], 'VALID'), 'bn')
    out = lrelu(bn(conv(x, p['w1'], 'VALID'), 'bn1'))
    out = lrelu(bn(conv(out, p['w2'], ((1, 1), (1, 1))), 'bn2'))
    out = lrelu(bn(conv(out, p['w3'], 'VALID'), 'bn3') + res)
    out = jax.lax.reduce_window(out, -jnp.inf, jax.lax.max,
                                (1, 1, 3, 3), (1, 1, 2, 2),
                                [(0, 0), (0, 0), (1, 1), (1, 1)])
    return out


if __name__ == "__main__":
    key = jax.random.PRNGKey(0)
    N, Cin, C, H, W = 2, 4, 8, 16, 16          # inplanes=4, planes=8
    ks = jax.random.split(key, 24)

    x = jax.random.normal(ks[0], (N, Cin, H, W), jnp.float32)

    params = {
        'w_res': 0.5 * jax.random.normal(ks[1], (C, Cin, 1, 1), jnp.float32),
        'w1':    0.5 * jax.random.normal(ks[2], (C, Cin, 1, 1), jnp.float32),
        'w2':    0.2 * jax.random.normal(ks[3], (C, C, 3, 3), jnp.float32),
        'w3':    0.5 * jax.random.normal(ks[4], (C, C, 1, 1), jnp.float32),
    }

    def add_bn(prefix, base):
        params[prefix + '_g'] = 0.5 + jax.random.uniform(ks[base + 0], (C,), jnp.float32)
        params[prefix + '_b'] = 0.1 * jax.random.normal(ks[base + 1], (C,), jnp.float32)
        params[prefix + '_m'] = 0.1 * jax.random.normal(ks[base + 2], (C,), jnp.float32)
        params[prefix + '_v'] = 0.5 + jax.random.uniform(ks[base + 3], (C,), jnp.float32)

    add_bn('bn', 5)
    add_bn('bn1', 9)
    add_bn('bn2', 13)
    add_bn('bn3', 17)

    out = resnet12_block_forward(x, params)
    out = jax.block_until_ready(out)

    ref = _reference(x, params)
    assert out.shape == (N, C, H // 2, W // 2), out.shape

    finite = bool(jnp.all(jnp.isfinite(out)))
    # tolerance accounts for bf16 matmul inputs / folded-bf16 weights (f32 accumulation)
    close = bool(jnp.all(jnp.abs(out - ref) <= 0.08 + 0.02 * jnp.abs(ref)))

    if finite and close:
        print("KERNEL_OK")
    else:
        err = float(jnp.max(jnp.abs(out - ref)))
        print(f"MISMATCH finite={finite} max_abs_err={err}")
</pallas_src>

<mosaic_0001>
module attributes {stable_mosaic.version = 11 : i64} {
  func.func @_resnet12_block_kernel(%arg0: i32, %arg1: memref<1x16x16x4xbf16, #tpu.memory_space<vmem>>, %arg2: memref<4x16xbf16, #tpu.memory_space<vmem>>, %arg3: memref<1x16xf32, #tpu.memory_space<vmem>>, %arg4: memref<72x8xbf16, #tpu.memory_space<vmem>>, %arg5: memref<1x8xf32, #tpu.memory_space<vmem>>, %arg6: memref<8x8xbf16, #tpu.memory_space<vmem>>, %arg7: memref<1x8xf32, #tpu.memory_space<vmem>>, %arg8: memref<1x8x64xf32, #tpu.memory_space<vmem>>, %arg9: memref<18x18x8xbf16, #tpu.memory_space<vmem>>, %arg10: memref<256x72xbf16, #tpu.memory_space<vmem>>, %arg11: memref<18x18x8xf32, #tpu.memory_space<vmem>>) attributes {dimension_semantics = [#tpu.dimension_semantics<parallel>], iteration_bounds = array<i64: 2>, scalar_prefetch = 0 : i64, scratch_operands = 3 : i64, tpu.core_type = #tpu.core_type<tc>, window_params = [{transform_indices = @transform_0, window_bounds = array<i64: 1, 16, 16, 4>}, {pipeline_mode = #tpu.pipeline_mode<synchronous>, transform_indices = @transform_1, window_bounds = array<i64: 4, 16>}, {pipeline_mode = #tpu.pipeline_mode<synchronous>, transform_indices = @transform_2, window_bounds = array<i64: 1, 16>}, {pipeline_mode = #tpu.pipeline_mode<synchronous>, transform_indices = @transform_3, window_bounds = array<i64: 72, 8>}, {pipeline_mode = #tpu.pipeline_mode<synchronous>, transform_indices = @transform_4, window_bounds = array<i64: 1, 8>}, {pipeline_mode = #tpu.pipeline_mode<synchronous>, transform_indices = @transform_5, window_bounds = array<i64: 8, 8>}, {pipeline_mode = #tpu.pipeline_mode<synchronous>, transform_indices = @transform_6, window_bounds = array<i64: 1, 8>}, {transform_indices = @transform_7, window_bounds = array<i64: 1, 8, 64>}]} {
    %c0 = arith.constant 0 : index
    %c0_0 = arith.constant 0 : index
    %c0_1 = arith.constant 0 : index
    %c0_2 = arith.constant 0 : index
    %0 = vector.load %arg1[%c0, %c0_0, %c0_1, %c0_2] : memref<1x16x16x4xbf16, #tpu.memory_space<vmem>>, vector<1x16x16x4xbf16>
    %1 = vector.shape_cast %0 : vector<1x16x16x4xbf16> to vector<16x16x4xbf16>
    %2 = vector.shape_cast %1 : vector<16x16x4xbf16> to vector<256x4xbf16>
    %c0_3 = arith.constant 0 : index
    %c0_4 = arith.constant 0 : index
    %3 = vector.load %arg2[%c0_3, %c0_4] : memref<4x16xbf16, #tpu.memory_space<vmem>>, vector<4x16xbf16>
    %cst = arith.constant dense<0.000000e+00> : vector<256x16xf32>
    %4 = tpu.matmul %2, %3, %cst {dimension_numbers = #tpu.dot_dimension_numbers<[1], [0], [0], [1], [0, 0, 1, 1], [], []>} : vector<256x4xbf16>, vector<4x16xbf16>, vector<256x16xf32> -> vector<256x16xf32>
    %c0_5 = arith.constant 0 : index
    %c0_6 = arith.constant 0 : index
    %5 = vector.load %arg3[%c0_5, %c0_6] : memref<1x16xf32, #tpu.memory_space<vmem>>, vector<1x16xf32>
    %6 = vector.broadcast %5 : vector<1x16xf32> to vector<256x16xf32>
    %7 = arith.addf %4, %6 : vector<256x16xf32>
    %8 = vector.extract_strided_slice %7 {offsets = [0, 0], sizes = [256, 8], strides = [1, 1]} : vector<256x16xf32> to vector<256x8xf32>
    %cst_7 = arith.constant 2.000000e-01 : f32
    %9 = vector.broadcast %cst_7 : f32 to vector<256x8xf32>
    %10 = arith.mulf %9, %8 : vector<256x8xf32>
    %11 = arith.maximumf %8, %10 : vector<256x8xf32>
    %12 = vector.extract_strided_slice %7 {offsets = [0, 8], sizes = [256, 8], strides = [1, 1]} : vector<256x16xf32> to vector<256x8xf32>
    %cst_8 = arith.constant 0.000000e+00 : bf16
    %13 = vector.broadcast %cst_8 : bf16 to vector<1x18x8xbf16>
    %cst_9 = arith.constant 0.000000e+00 : bf16
    %14 = vector.broadcast %cst_9 : bf16 to vector<18x1x8xbf16>
    %c0_10 = arith.constant 0 : index
    %c0_11 = arith.constant 0 : index
    %c0_12 = arith.constant 0 : index
    %15 = vector.load %arg9[%c0_10, %c0_11, %c0_12] : memref<18x18x8xbf16, #tpu.memory_space<vmem>>, vector<1x18x8xbf16>
    tpu.vector_store %arg9[%c0_10, %c0_11, %c0_12], %13 {strides = array<i32>} : memref<18x18x8xbf16, #tpu.memory_space<vmem>>, vector<1x18x8xbf16>,
    %c17 = arith.constant 17 : index
    %c0_13 = arith.constant 0 : index
    %c0_14 = arith.constant 0 : index
    %16 = vector.load %arg9[%c17, %c0_13, %c0_14] : memref<18x18x8xbf16, #tpu.memory_space<vmem>>, vector<1x18x8xbf16>
    tpu.vector_store %arg9[%c17, %c0_13, %c0_14], %13 {strides = array<i32>} : memref<18x18x8xbf16, #tpu.memory_space<vmem>>, vector<1x18x8xbf16>,
    %c0_15 = arith.constant 0 : index
    %c0_16 = arith.constant 0 : index
    %c0_17 = arith.constant 0 : index
    %17 = vector.load %arg9[%c0_15, %c0_16, %c0_17] : memref<18x18x8xbf16, #tpu.memory_space<vmem>>, vector<18x1x8xbf16>
    tpu.vector_store %arg9[%c0_15, %c0_16, %c0_17], %14 {strides = array<i32>} : memref<18x18x8xbf16, #tpu.memory_space<vmem>>, vector<18x1x8xbf16>,
    %c0_18 = arith.constant 0 : index
    %c17_19 = arith.constant 17 : index
    %c0_20 = arith.constant 0 : index
    %18 = vector.load %arg9[%c0_18, %c17_19, %c0_20] : memref<18x18x8xbf16, #tpu.memory_space<vmem>>, vector<18x1x8xbf16>
    tpu.vector_store %arg9[%c0_18, %c17_19, %c0_20], %14 {strides = array<i32>} : memref<18x18x8xbf16, #tpu.memory_space<vmem>>, vector<18x1x8xbf16>,
    %19 = vector.shape_cast %11 : vector<256x8xf32> to vector<16x16x8xf32>
    %20 = arith.truncf %19 : vector<16x16x8xf32> to vector<16x16x8xbf16>
    %c1 = arith.constant 1 : index
    %c1_21 = arith.constant 1 : index
    %c0_22 = arith.constant 0 : index
    %21 = vector.load %arg9[%c1, %c1_21, %c0_22] : memref<18x18x8xbf16, #tpu.memory_space<vmem>>, vector<16x16x8xbf16>
    tpu.vector_store %arg9[%c1, %c1_21, %c0_22], %20 {strides = array<i32>} : memref<18x18x8xbf16, #tpu.memory_space<vmem>>, vector<16x16x8xbf16>,
    %c0_23 = arith.constant 0 : index
    %c0_24 = arith.constant 0 : index
    %c0_25 = arith.constant 0 : index
    %22 = vector.load %arg9[%c0_23, %c0_24, %c0_25] : memref<18x18x8xbf16, #tpu.memory_space<vmem>>, vector<16x16x8xbf16>
    %23 = vector.shape_cast %22 : vector<16x16x8xbf16> to vector<256x8xbf16>
    %c0_26 = arith.constant 0 : index
    %c0_27 = arith.constant 0 : index
    %24 = vector.load %arg10[%c0_26, %c0_27] : memref<256x72xbf16, #tpu.memory_space<vmem>>, vector<256x8xbf16>
    tpu.vector_store %arg10[%c0_26, %c0_27], %23 {strides = array<i32>} : memref<256x72xbf16, #tpu.memory_space<vmem>>, vector<256x8xbf16>,
    %c0_28 = arith.constant 0 : index
    %c1_29 = arith.constant 1 : index
    %c0_30 = arith.constant 0 : index
    %25 = vector.load %arg9[%c0_28, %c1_29, %c0_30] : memref<18x18x8xbf16, #tpu.memory_space<vmem>>, vector<16x16x8xbf16>
    %26 = vector.shape_cast %25 : vector<16x16x8xbf16> to vector<256x8xbf16>
    %c0_31 = arith.constant 0 : index
    %c8 = arith.constant 8 : index
    %27 = vector.load %arg10[%c0_31, %c8] : memref<256x72xbf16, #tpu.memory_space<vmem>>, vector<256x8xbf16>
    tpu.vector_store %arg10[%c0_31, %c8], %26 {strides = array<i32>} : memref<256x72xbf16, #tpu.memory_space<vmem>>, vector<256x8xbf16>,
    %c0_32 = arith.constant 0 : index
    %c2 = arith.constant 2 : index
    %c0_33 = arith.constant 0 : index
    %28 = vector.load %arg9[%c0_32, %c2, %c0_33] : memref<18x18x8xbf16, #tpu.memory_space<vmem>>, vector<16x16x8xbf16>
    %29 = vector.shape_cast %28 : vector<16x16x8xbf16> to vector<256x8xbf16>
    %c0_34 = arith.constant 0 : index
    %c16 = arith.constant 16 : index
    %30 = vector.load %arg10[%c0_34, %c16] : memref<256x72xbf16, #tpu.memory_space<vmem>>, vector<256x8xbf16>
    tpu.vector_store %arg10[%c0_34, %c16], %29 {strides = array<i32>} : memref<256x72xbf16, #tpu.memory_space<vmem>>, vector<256x8xbf16>,
    %c1_35 = arith.constant 1 : index
    %c0_36 = arith.constant 0 : index
    %c0_37 = arith.constant 0 : index
    %31 = vector.load %arg9[%c1_35, %c0_36, %c0_37] : memref<18x18x8xbf16, #tpu.memory_space<vmem>>, vector<16x16x8xbf16>
    %32 = vector.shape_cast %31 : vector<16x16x8xbf16> to vector<256x8xbf16>
    %c0_38 = arith.constant 0 : index
    %c24 = arith.constant 24 : index
    %33 = vector.load %arg10[%c0_38, %c24] : memref<256x72xbf16, #tpu.memory_space<vmem>>, vector<256x8xbf16>
    tpu.vector_store %arg10[%c0_38, %c24], %32 {strides = array<i32>} : memref<256x72xbf16, #tpu.memory_space<vmem>>, vector<256x8xbf16>,
    %c1_39 = arith.constant 1 : index
    %c1_40 = arith.constant 1 : index
    %c0_41 = arith.constant 0 : index
    %34 = vector.load %arg9[%c1_39, %c1_40, %c0_41] : memref<18x18x8xbf16, #tpu.memory_space<vmem>>, vector<16x16x8xbf16>
    %35 = vector.shape_cast %34 : vector<16x16x8xbf16> to vector<256x8xbf16>
    %c0_42 = arith.constant 0 : index
    %c32 = arith.constant 32 : index
    %36 = vector.load %arg10[%c0_42, %c32] : memref<256x72xbf16, #tpu.memory_space<vmem>>, vector<256x8xbf16>
    tpu.vector_store %arg10[%c0_42, %c32], %35 {strides = array<i32>} : memref<256x72xbf16, #tpu.memory_space<vmem>>, vector<256x8xbf16>,
    %c1_43 = arith.constant 1 : index
    %c2_44 = arith.constant 2 : index
    %c0_45 = arith.constant 0 : index
    %37 = vector.load %arg9[%c1_43, %c2_44, %c0_45] : memref<18x18x8xbf16, #tpu.memory_space<vmem>>, vector<16x16x8xbf16>
    %38 = vector.shape_cast %37 : vector<16x16x8xbf16> to vector<256x8xbf16>
    %c0_46 = arith.constant 0 : index
    %c40 = arith.constant 40 : index
    %39 = vector.load %arg10[%c0_46, %c40] : memref<256x72xbf16, #tpu.memory_space<vmem>>, vector<256x8xbf16>
    tpu.vector_store %arg10[%c0_46, %c40], %38 {strides = array<i32>} : memref<256x72xbf16, #tpu.memory_space<vmem>>, vector<256x8xbf16>,
    %c2_47 = arith.constant 2 : index
    %c0_48 = arith.constant 0 : index
    %c0_49 = arith.constant 0 : index
    %40 = vector.load %arg9[%c2_47, %c0_48, %c0_49] : memref<18x18x8xbf16, #tpu.memory_space<vmem>>, vector<16x16x8xbf16>
    %41 = vector.shape_cast %40 : vector<16x16x8xbf16> to vector<256x8xbf16>
    %c0_50 = arith.constant 0 : index
    %c48 = arith.constant 48 : index
    %42 = vector.load %arg10[%c0_50, %c48] : memref<256x72xbf16, #tpu.memory_space<vmem>>, vector<256x8xbf16>
    tpu.vector_store %arg10[%c0_50, %c48], %41 {strides = array<i32>} : memref<256x72xbf16, #tpu.memory_space<vmem>>, vector<256x8xbf16>,
    %c2_51 = arith.constant 2 : index
    %c1_52 = arith.constant 1 : index
    %c0_53 = arith.constant 0 : index
    %43 = vector.load %arg9[%c2_51, %c1_52, %c0_53] : memref<18x18x8xbf16, #tpu.memory_space<vmem>>, vector<16x16x8xbf16>
    %44 = vector.shape_cast %43 : vector<16x16x8xbf16> to vector<256x8xbf16>
    %c0_54 = arith.constant 0 : index
    %c56 = arith.constant 56 : index
    %45 = vector.load %arg10[%c0_54, %c56] : memref<256x72xbf16, #tpu.memory_space<vmem>>, vector<256x8xbf16>
    tpu.vector_store %arg10[%c0_54, %c56], %44 {strides = array<i32>} : memref<256x72xbf16, #tpu.memory_space<vmem>>, vector<256x8xbf16>,
    %c2_55 = arith.constant 2 : index
    %c2_56 = arith.constant 2 : index
    %c0_57 = arith.constant 0 : index
    %46 = vector.load %arg9[%c2_55, %c2_56, %c0_57] : memref<18x18x8xbf16, #tpu.memory_space<vmem>>, vector<16x16x8xbf16>
    %47 = vector.shape_cast %46 : vector<16x16x8xbf16> to vector<256x8xbf16>
    %c0_58 = arith.constant 0 : index
    %c64 = arith.constant 64 : index
    %48 = vector.load %arg10[%c0_58, %c64] : memref<256x72xbf16, #tpu.memory_space<vmem>>, vector<256x8xbf16>
    tpu.vector_store %arg10[%c0_58, %c64], %47 {strides = array<i32>} : memref<256x72xbf16, #tpu.memory_space<vmem>>, vector<256x8xbf16>,
    %c0_59 = arith.constant 0 : index
    %c0_60 = arith.constant 0 : index
    %49 = vector.load %arg10[%c0_59, %c0_60] : memref<256x72xbf16, #tpu.memory_space<vmem>>, vector<256x72xbf16>
    %c0_61 = arith.constant 0 : index
    %c0_62 = arith.constant 0 : index
    %50 = vector.load %arg4[%c0_61, %c0_62] : memref<72x8xbf16, #tpu.memory_space<vmem>>, vector<72x8xbf16>
    %cst_63 = arith.constant dense<0.000000e+00> : vector<256x8xf32>
    %51 = tpu.matmul %49, %50, %cst_63 {dimension_numbers = #tpu.dot_dimension_numbers<[1], [0], [0], [1], [0, 0, 1, 1], [], []>} : vector<256x72xbf16>, vector<72x8xbf16>, vector<256x8xf32> -> vector<256x8xf32>
    %c0_64 = arith.constant 0 : index
    %c0_65 = arith.constant 0 : index
    %52 = vector.load %arg5[%c0_64, %c0_65] : memref<1x8xf32, #tpu.memory_space<vmem>>, vector<1x8xf32>
    %53 = vector.broadcast %52 : vector<1x8xf32> to vector<256x8xf32>
    %54 = arith.addf %51, %53 : vector<256x8xf32>
    %cst_66 = arith.constant 2.000000e-01 : f32
    %55 = vector.broadcast %cst_66 : f32 to vector<256x8xf32>
    %56 = arith.mulf %55, %54 : vector<256x8xf32>
    %57 = arith.maximumf %54, %56 : vector<256x8xf32>
    %58 = arith.truncf %57 : vector<256x8xf32> to vector<256x8xbf16>
    %c0_67 = arith.constant 0 : index
    %c0_68 = arith.constant 0 : index
    %59 = vector.load %arg6[%c0_67, %c0_68] : memref<8x8xbf16, #tpu.memory_space<vmem>>, vector<8x8xbf16>
    %cst_69 = arith.constant dense<0.000000e+00> : vector<256x8xf32>
    %60 = tpu.matmul %58, %59, %cst_69 {dimension_numbers = #tpu.dot_dimension_numbers<[1], [0], [0], [1], [0, 0, 1, 1], [], []>} : vector<256x8xbf16>, vector<8x8xbf16>, vector<256x8xf32> -> vector<256x8xf32>
    %c0_70 = arith.constant 0 : index
    %c0_71 = arith.constant 0 : index
    %61 = vector.load %arg7[%c0_70, %c0_71] : memref<1x8xf32, #tpu.memory_space<vmem>>, vector<1x8xf32>
    %62 = vector.broadcast %61 : vector<1x8xf32> to vector<256x8xf32>
    %63 = arith.addf %60, %62 : vector<256x8xf32>
    %64 = arith.addf %63, %12 : vector<256x8xf32>
    %cst_72 = arith.constant 2.000000e-01 : f32
    %65 = vector.broadcast %cst_72 : f32 to vector<256x8xf32>
    %66 = arith.mulf %65, %64 : vector<256x8xf32>
    %67 = arith.maximumf %64, %66 : vector<256x8xf32>
    %cst_73 = arith.constant 0xFF800000 : f32
    %68 = vector.broadcast %cst_73 : f32 to vector<1x18x8xf32>
    %cst_74 = arith.constant 0xFF800000 : f32
    %69 = vector.broadcast %cst_74 : f32 to vector<18x1x8xf32>
    %c0_75 = arith.constant 0 : index
    %c0_76 = arith.constant 0 : index
    %c0_77 = arith.constant 0 : index
    %70 = vector.load %arg11[%c0_75, %c0_76, %c0_77] : memref<18x18x8xf32, #tpu.memory_space<vmem>>, vector<1x18x8xf32>
    tpu.vector_store %arg11[%c0_75, %c0_76, %c0_77], %68 {strides = array<i32>} : memref<18x18x8xf32, #tpu.memory_space<vmem>>, vector<1x18x8xf32>,
    %c17_78 = arith.constant 17 : index
    %c0_79 = arith.constant 0 : index
    %c0_80 = arith.constant 0 : index
    %71 = vector.load %arg11[%c17_78, %c0_79, %c0_80] : memref<18x18x8xf32, #tpu.memory_space<vmem>>, vector<1x18x8xf32>
    tpu.vector_store %arg11[%c17_78, %c0_79, %c0_80], %68 {strides = array<i32>} : memref<18x18x8xf32, #tpu.memory_space<vmem>>, vector<1x18x8xf32>,
    %c0_81 = arith.constant 0 : index
    %c0_82 = arith.constant 0 : index
    %c0_83 = arith.constant 0 : index
    %72 = vector.load %arg11[%c0_81, %c0_82, %c0_83] : memref<18x18x8xf32, #tpu.memory_space<vmem>>, vector<18x1x8xf32>
    tpu.vector_store %arg11[%c0_81, %c0_82, %c0_83], %69 {strides = array<i32>} : memref<18x18x8xf32, #tpu.memory_space<vmem>>, vector<18x1x8xf32>,
    %c0_84 = arith.constant 0 : index
    %c17_85 = arith.constant 17 : index
    %c0_86 = arith.constant 0 : index
    %73 = vector.load %arg11[%c0_84, %c17_85, %c0_86] : memref<18x18x8xf32, #tpu.memory_space<vmem>>, vector<18x1x8xf32>
    tpu.vector_store %arg11[%c0_84, %c17_85, %c0_86], %69 {strides = array<i32>} : memref<18x18x8xf32, #tpu.memory_space<vmem>>, vector<18x1x8xf32>,
    %74 = vector.shape_cast %67 : vector<256x8xf32> to vector<16x16x8xf32>
    %c1_87 = arith.constant 1 : index
    %c1_88 = arith.constant 1 : index
    %c0_89 = arith.constant 0 : index
    %75 = vector.load %arg11[%c1_87, %c1_88, %c0_89] : memref<18x18x8xf32, #tpu.memory_space<vmem>>, vector<16x16x8xf32>
    tpu.vector_store %arg11[%c1_87, %c1_88, %c0_89], %74 {strides = array<i32>} : memref<18x18x8xf32, #tpu.memory_space<vmem>>, vector<16x16x8xf32>,
    %c0_90 = arith.constant 0 : index
    %c0_91 = arith.constant 0 : index
    %c0_92 = arith.constant 0 : index
    %76 = vector.load %arg11[%c0_90, %c0_91, %c0_92] : memref<18x18x8xf32, #tpu.memory_space<vmem>>, vector<18x18x8xf32>
    %77 = vector.extract_strided_slice %76 {offsets = [0, 0, 0], sizes = [16, 18, 8], strides = [1, 1, 1]} : vector<18x18x8xf32> to vector<16x18x8xf32>
    %78 = vector.shape_cast %77 : vector<16x18x8xf32> to vector<8x2x18x8xf32>
    %79 = vector.extract_strided_slice %76 {offsets = [2, 0, 0], sizes = [16, 18, 8], strides = [1, 1, 1]} : vector<18x18x8xf32> to vector<16x18x8xf32>
    %80 = vector.shape_cast %79 : vector<16x18x8xf32> to vector<8x2x18x8xf32>
    %81 = vector.extract_strided_slice %78 {offsets = [0, 0, 0, 0], sizes = [8, 1, 18, 8], strides = [1, 1, 1, 1]} : vector<8x2x18x8xf32> to vector<8x1x18x8xf32>
    %82 = vector.shape_cast %81 : vector<8x1x18x8xf32> to vector<8x18x8xf32>
    %83 = vector.extract_strided_slice %78 {offsets = [0, 1, 0, 0], sizes = [8, 1, 18, 8], strides = [1, 1, 1, 1]} : vector<8x2x18x8xf32> to vector<8x1x18x8xf32>
    %84 = vector.shape_cast %83 : vector<8x1x18x8xf32> to vector<8x18x8xf32>
    %85 = arith.maximumf %82, %84 : vector<8x18x8xf32>
    %86 = vector.extract_strided_slice %80 {offsets = [0, 0, 0, 0], sizes = [8, 1, 18, 8], strides = [1, 1, 1, 1]} : vector<8x2x18x8xf32> to vector<8x1x18x8xf32>
    %87 = vector.shape_cast %86 : vector<8x1x18x8xf32> to vector<8x18x8xf32>
    %88 = arith.maximumf %85, %87 : vector<8x18x8xf32>
    %89 = vector.extract_strided_slice %88 {offsets = [0, 0, 0], sizes = [8, 16, 8], strides = [1, 1, 1]} : vector<8x18x8xf32> to vector<8x16x8xf32>
    %90 = vector.shape_cast %89 : vector<8x16x8xf32> to vector<8x8x2x8xf32>
    %91 = vector.extract_strided_slice %88 {offsets = [0, 2, 0], sizes = [8, 16, 8], strides = [1, 1, 1]} : vector<8x18x8xf32> to vector<8x16x8xf32>
    %92 = vector.shape_cast %91 : vector<8x16x8xf32> to vector<8x8x2x8xf32>
    %93 = vector.extract_strided_slice %90 {offsets = [0, 0, 0, 0], sizes = [8, 8, 1, 8], strides = [1, 1, 1, 1]} : vector<8x8x2x8xf32> to vector<8x8x1x8xf32>
    %94 = vector.shape_cast %93 : vector<8x8x1x8xf32> to vector<8x8x8xf32>
    %95 = vector.extract_strided_slice %90 {offsets = [0, 0, 1, 0], sizes = [8, 8, 1, 8], strides = [1, 1, 1, 1]} : vector<8x8x2x8xf32> to vector<8x8x1x8xf32>
    %96 = vector.shape_cast %95 : vector<8x8x1x8xf32> to vector<8x8x8xf32>
    %97 = arith.maximumf %94, %96 : vector<8x8x8xf32>
    %98 = vector.extract_strided_slice %92 {offsets = [0, 0, 0, 0], sizes = [8, 8, 1, 8], strides = [1, 1, 1, 1]} : vector<8x8x2x8xf32> to vector<8x8x1x8xf32>
    %99 = vector.shape_cast %98 : vector<8x8x1x8xf32> to vector<8x8x8xf32>
    %100 = arith.maximumf %97, %99 : vector<8x8x8xf32>
    %101 = vector.shape_cast %100 : vector<8x8x8xf32> to vector<8x64xf32>
    %c0_93 = arith.constant 0 : index
    %c0_94 = arith.constant 0 : index
    %c0_95 = arith.constant 0 : index
    %102 = vector.load %arg8[%c0_93, %c0_94, %c0_95] : memref<1x8x64xf32, #tpu.memory_space<vmem>>, vector<1x8x64xf32>
    %103 = vector.shape_cast %102 : vector<1x8x64xf32> to vector<8x64xf32>
    %104 = vector.shape_cast %101 : vector<8x64xf32> to vector<1x8x64xf32>
    tpu.vector_store %arg8[%c0_93, %c0_94, %c0_95], %104 {strides = array<i32>} : memref<1x8x64xf32, #tpu.memory_space<vmem>>, vector<1x8x64xf32>,
    return
  }
  func.func @transform_0(%arg0: i32) -> (i32, i32, i32, i32) {
    %c0_i32 = arith.constant 0 : i32
    %c0_i32_0 = arith.constant 0 : i32
    %c0_i32_1 = arith.constant 0 : i32
    %c0_i32_2 = arith.constant 0 : i32
    return %arg0, %c0_i32, %c0_i32_0, %c0_i32_1 : i32, i32, i32, i32
  }
  func.func @transform_1(%arg0: i32) -> (i32, i32) {
    %c0_i32 = arith.constant 0 : i32
    %c0_i32_0 = arith.constant 0 : i32
    %c0_i32_1 = arith.constant 0 : i32
    return %c0_i32, %c0_i32_0 : i32, i32
  }
  func.func @transform_2(%arg0: i32) -> (i32, i32) {
    %c0_i32 = arith.constant 0 : i32
    %c0_i32_0 = arith.constant 0 : i32
    %c0_i32_1 = arith.constant 0 : i32
    return %c0_i32, %c0_i32_0 : i32, i32
  }
  func.func @transform_3(%arg0: i32) -> (i32, i32) {
    %c0_i32 = arith.constant 0 : i32
    %c0_i32_0 = arith.constant 0 : i32
    %c0_i32_1 = arith.constant 0 : i32
    return %c0_i32, %c0_i32_0 : i32, i32
  }
  func.func @transform_4(%arg0: i32) -> (i32, i32) {
    %c0_i32 = arith.constant 0 : i32
    %c0_i32_0 = arith.constant 0 : i32
    %c0_i32_1 = arith.constant 0 : i32
    return %c0_i32, %c0_i32_0 : i32, i32
  }
  func.func @transform_5(%arg0: i32) -> (i32, i32) {
    %c0_i32 = arith.constant 0 : i32
    %c0_i32_0 = arith.constant 0 : i32
    %c0_i32_1 = arith.constant 0 : i32
    return %c0_i32, %c0_i32_0 : i32, i32
  }
  func.func @transform_6(%arg0: i32) -> (i32, i32) {
    %c0_i32 = arith.constant 0 : i32
    %c0_i32_0 = arith.constant 0 : i32
    %c0_i32_1 = arith.constant 0 : i32
    return %c0_i32, %c0_i32_0 : i32, i32
  }
  func.func @transform_7(%arg0: i32) -> (i32, i32, i32) {
    %c0_i32 = arith.constant 0 : i32
    %c0_i32_0 = arith.constant 0 : i32
    %c0_i32_1 = arith.constant 0 : i32
    return %arg0, %c0_i32, %c0_i32_0 : i32, i32, i32
  }
}

</mosaic_0001>

<llo_original>
// kernel: tpu_custom_call.1
$region0: #{tpu_custom_call.1}
  #allocation0 [shape = 'u32[]', space=smem, size = 0x4, offset = 0x4, fixed_abs, tag = 'smem constant byte address 0x4 - core index']
  #allocation1 [shape = 'u32[144,128]{1,0:T(1,128)}', space=vmem, size = 0x12000, scoped, tag = 'internal scratch']
  #allocation2 [shape = 'bf16[18,18,8]{2,1,0:T(8,128)(2,1)}', space=vmem, size = 0x1b000, scoped, tag = 'scratch operand']
  #allocation3 [shape = 'bf16[256,72]{1,0:T(8,128)(2,1)}', space=vmem, size = 0x10000, scoped, tag = 'scratch operand']
  #allocation4 [shape = 'f32[18,18,8]{2,1,0:T(8,128)}', space=vmem, size = 0x36000, scoped, tag = 'scratch operand']
  %s0 = inlined_call_operand.vmem [shape: bf16[2,16,16,4], index: 0, kind: input, shape index: {}]
  %s1 = inlined_call_operand.vmem [shape: bf16[4,16], index: 1, kind: input, shape index: {}]
  %s2 = inlined_call_operand.vmem [shape: f32[1,16], index: 2, kind: input, shape index: {}]
  %s3 = inlined_call_operand.vmem [shape: bf16[72,8], index: 3, kind: input, shape index: {}]
  %s4 = inlined_call_operand.vmem [shape: f32[1,8], index: 4, kind: input, shape index: {}]
  %s5 = inlined_call_operand.vmem [shape: bf16[8,8], index: 5, kind: input, shape index: {}]
  %s6 = inlined_call_operand.vmem [shape: f32[1,8], index: 6, kind: input, shape index: {}]
  %s7 = inlined_call_operand.hbm [shape: f32[2,8,64], index: 7, kind: output, shape index: {}]
  %s8 = sld [smem:[#allocation0]]
  $region61: #{tpu_custom_call.1} parent=0
    _
  %s10 = ssub.s32 1, %s8
  %s11 = scalar_select 0, %s10, %s8
  $region1: #{tpu_custom_call.1} parent=0
    #allocation5 [shape = 'u8[8192]{0}', space=vmem, size = 0x2000, scoped, tag = 'output window, operand 0']
    #allocation6 [shape = 's32[2]{0}', space=sflag, size = 0x8, scoped, tag = 'scoped memory for tpu_custom_call.1']
    %12 = vsyncpa [#allocation6], 0
    %s13 = scalar_lea.sflag [#allocation6], 1
    %14 = vsyncpa %s13, 0
    loop: start=0, step=1, limit=4
    $region2: #{tpu_custom_call.1} parent=1 // loop_pre_header
      _
    $region3: #{tpu_custom_call.1} parent=1 // loop_header
      %s16 = sphi 0, %s20
      %p17 = scmp.ge.s32.totalorder %s16, 4
      %s26 = sphi 0, %s28
      %s29 = sphi 0, %s26
      %s30 = sphi 0, %s29
      %s46 = sphi 0, %s30
      %s50 = sphi 0, %s50
      %s52 = sphi 0, %s50
      %s53 = sphi 0, %s52
      %s67 = sphi 0, %s53
      %s71 = sphi 0, %s71
      %s73 = sphi 0, %s71
      %s74 = sphi 0, %s73
      %s88 = sphi 0, %s74
      %s92 = sphi 0, %s92
      %s94 = sphi 0, %s92
      %s95 = sphi 0, %s94
      %s109 = sphi 0, %s95
      %s113 = sphi 0, %s113
      %s115 = sphi 0, %s113
      %s116 = sphi 0, %s115
      %s130 = sphi 0, %s116
      %s134 = sphi 0, %s134
      %s136 = sphi 0, %s134
      %s137 = sphi 0, %s136
      %s151 = sphi 0, %s137
      %s155 = sphi 0, %s155
      %s157 = sphi 0, %s155
      %s158 = sphi 0, %s157
      %s172 = sphi 0, %s158
      %s178 = sphi 0, %s180
      %s181 = sphi 0, %s178
      %s182 = sphi 0, %s181
      %s198 = sphi 0, %s182
    $region4: #{tpu_custom_call.1} parent=1 // loop_header_branch
      %19 = sbr.rel (%p17) target = $region8
    $region5: #{tpu_custom_call.1} parent=1 // loop_body
      %s21 = ssub.s32 %s16, 1
      %s22 = ssub.s32 %s16, 2
      %s23 = sadd.s32 %s16, 1
      %s24 = ssub.s32 %s16, %s23
      %p25 = scmp.eq.s32.totalorder %s24, 0
      %s27 = sadd.s32 %s26, 1
      %s28 = scalar_select %p25, %s26, %s27
      %p31 = pneg %p25
      %p32 = scmp.eq.s32.totalorder %s16, 1
      %p33 = por %p31, %p32
      %p34 = scmp.ne.s32.totalorder %s26, %s29
      %p35 = scmp.eq.s32.totalorder %s16, 0
      %p36 = por %p34, %p35
      %p37 = scmp.ne.s32.totalorder %s26, %s29
      %p38 = scmp.eq.s32.totalorder %s21, 1
      %p39 = por %p37, %p38
      %p40 = scmp.ne.s32.totalorder %s29, %s30
      %p41 = scmp.eq.s32.totalorder %s21, 0
      %p42 = por %p40, %p41
      %p43 = scmp.ne.s32.totalorder %s29, %s30
      %p44 = scmp.eq.s32.totalorder %s22, 1
      %p45 = por %p43, %p44
      %p47 = scmp.ne.s32.totalorder %s30, %s46
      %p48 = scmp.eq.s32.totalorder %s22, 0
      %p49 = por %p47, %p48
      %s51 = sadd.s32 %s50, 1
      %p54 = scmp.eq.s32.totalorder %s16, 1
      %p55 = scmp.ne.s32.totalorder %s50, %s52
      %p56 = scmp.eq.s32.totalorder %s16, 0
      %p57 = por %p55, %p56
      %p58 = scmp.ne.s32.totalorder %s50, %s52
      %p59 = scmp.eq.s32.totalorder %s21, 1
      %p60 = por %p58, %p59
      %p61 = scmp.ne.s32.totalorder %s52, %s53
      %p62 = scmp.eq.s32.totalorder %s21, 0
      %p63 = por %p61, %p62
      %p64 = scmp.ne.s32.totalorder %s52, %s53
      %p65 = scmp.eq.s32.totalorder %s22, 1
      %p66 = por %p64, %p65
      %p68 = scmp.ne.s32.totalorder %s53, %s67
      %p69 = scmp.eq.s32.totalorder %s22, 0
      %p70 = por %p68, %p69
      %s72 = sadd.s32 %s71, 1
      %p75 = scmp.eq.s32.totalorder %s16, 1
      %p76 = scmp.ne.s32.totalorder %s71, %s73
      %p77 = scmp.eq.s32.totalorder %s16, 0
      %p78 = por %p76, %p77
      %p79 = scmp.ne.s32.totalorder %s71, %s73
      %p80 = scmp.eq.s32.totalorder %s21, 1
      %p81 = por %p79, %p80
      %p82 = scmp.ne.s32.totalorder %s73, %s74
      %p83 = scmp.eq.s32.totalorder %s21, 0
      %p84 = por %p82, %p83
      %p85 = scmp.ne.s32.totalorder %s73, %s74
      %p86 = scmp.eq.s32.totalorder %s22, 1
      %p87 = por %p85, %p86
      %p89 = scmp.ne.s32.totalorder %s74, %s88
      %p90 = scmp.eq.s32.totalorder %s22, 0
      %p91 = por %p89, %p90
      %s93 = sadd.s32 %s92, 1
      %p96 = scmp.eq.s32.totalorder %s16, 1
      %p97 = scmp.ne.s32.totalorder %s92, %s94
      %p98 = scmp.eq.s32.totalorder %s16, 0
      %p99 = por %p97, %p98
      %p100 = scmp.ne.s32.totalorder %s92, %s94
      %p101 = scmp.eq.s32.totalorder %s21, 1
      %p102 = por %p100, %p101
      %p103 = scmp.ne.s32.totalorder %s94, %s95
      %p104 = scmp.eq.s32.totalorder %s21, 0
      %p105 = por %p103, %p104
      %p106 = scmp.ne.s32.totalorder %s94, %s95
      %p107 = scmp.eq.s32.totalorder %s22, 1
      %p108 = por %p106, %p107
      %p110 = scmp.ne.s32.totalorder %s95, %s109
      %p111 = scmp.eq.s32.totalorder %s22, 0
      %p112 = por %p110, %p111
      %s114 = sadd.s32 %s113, 1
      %p117 = scmp.eq.s32.totalorder %s16, 1
      %p118 = scmp.ne.s32.totalorder %s113, %s115
      %p119 = scmp.eq.s32.totalorder %s16, 0
      %p120 = por %p118, %p119
      %p121 = scmp.ne.s32.totalorder %s113, %s115
      %p122 = scmp.eq.s32.totalorder %s21, 1
      %p123 = por %p121, %p122
      %p124 = scmp.ne.s32.totalorder %s115, %s116
      %p125 = scmp.eq.s32.totalorder %s21, 0
      %p126 = por %p124, %p125
      %p127 = scmp.ne.s32.totalorder %s115, %s116
      %p128 = scmp.eq.s32.totalorder %s22, 1
      %p129 = por %p127, %p128
      %p131 = scmp.ne.s32.totalorder %s116, %s130
      %p132 = scmp.eq.s32.totalorder %s22, 0
      %p133 = por %p131, %p132
      %s135 = sadd.s32 %s134, 1
      %p138 = scmp.eq.s32.totalorder %s16, 1
      %p139 = scmp.ne.s32.totalorder %s134, %s136
      %p140 = scmp.eq.s32.totalorder %s16, 0
      %p141 = por %p139, %p140
      %p142 = scmp.ne.s32.totalorder %s134, %s136
      %p143 = scmp.eq.s32.totalorder %s21, 1
      %p144 = por %p142, %p143
      %p145 = scmp.ne.s32.totalorder %s136, %s137
      %p146 = scmp.eq.s32.totalorder %s21, 0
      %p147 = por %p145, %p146
      %p148 = scmp.ne.s32.totalorder %s136, %s137
      %p149 = scmp.eq.s32.totalorder %s22, 1
      %p150 = por %p148, %p149
      %p152 = scmp.ne.s32.totalorder %s137, %s151
      %p153 = scmp.eq.s32.totalorder %s22, 0
      %p154 = por %p152, %p153
      %s156 = sadd.s32 %s155, 1
      %p159 = scmp.eq.s32.totalorder %s16, 1
      %p160 = scmp.ne.s32.totalorder %s155, %s157
      %p161 = scmp.eq.s32.totalorder %s16, 0
      %p162 = por %p160, %p161
      %p163 = scmp.ne.s32.totalorder %s155, %s157
      %p164 = scmp.eq.s32.totalorder %s21, 1
      %p165 = por %p163, %p164
      %p166 = scmp.ne.s32.totalorder %s157, %s158
      %p167 = scmp.eq.s32.totalorder %s21, 0
      %p168 = por %p166, %p167
      %p169 = scmp.ne.s32.totalorder %s157, %s158
      %p170 = scmp.eq.s32.totalorder %s22, 1
      %p171 = por %p169, %p170
      %p173 = scmp.ne.s32.totalorder %s158, %s172
      %p174 = scmp.eq.s32.totalorder %s22, 0
      %p175 = por %p173, %p174
      %s176 = ssub.s32 %s16, %s23
      %p177 = scmp.eq.s32.totalorder %s176, 0
      %s179 = sadd.s32 %s178, 1
      %s180 = scalar_select %p177, %s178, %s179
      %p183 = pneg %p177
      %p184 = scmp.eq.s32.totalorder %s16, 1
      %p185 = por %p183, %p184
      %p186 = scmp.ne.s32.totalorder %s178, %s181
      %p187 = scmp.eq.s32.totalorder %s16, 0
      %p188 = por %p186, %p187
      %p189 = scmp.ne.s32.totalorder %s178, %s181
      %p190 = scmp.eq.s32.totalorder %s21, 1
      %p191 = por %p189, %p190
      %p192 = scmp.ne.s32.totalorder %s181, %s182
      %p193 = scmp.eq.s32.totalorder %s21, 0
      %p194 = por %p192, %p193
      %p195 = scmp.ne.s32.totalorder %s181, %s182
      %p196 = scmp.eq.s32.totalorder %s22, 1
      %p197 = por %p195, %p196
      %p199 = scmp.ne.s32.totalorder %s182, %s198
      %p200 = scmp.eq.s32.totalorder %s22, 0
      %p201 = por %p199, %p200
      %p202 = scmp.le.s32.totalorder 1, %s16
      %p203 = scmp.lt.s32.totalorder %s16, 3
      %p204 = pnand %p202, %p203
      %p205 = pneg %p204
      // Predicated region
      $region9: #{tpu_custom_call.1} parent=5 // pred_check
        _
      $region10: #{tpu_custom_call.1} parent=5 // pred_check_branch
        %207 = sbr.rel (%p204) target = $region12
      $region11: #{tpu_custom_call.1} parent=5 // pred_region
        %s208 = ssub.s32 %s16, 1
        // Predicated region
        $region13: #{tpu_custom_call.1} parent=11 // pred_check
          %p209 = pneg %p63
        $region14: #{tpu_custom_call.1} parent=11 // pred_check_branch
          %211 = sbr.rel (%p209) target = $region16
        $region15: #{tpu_custom_call.1} parent=11 // pred_region
          _
        $region16: #{tpu_custom_call.1} parent=11 // pred_fallthru
          _
        // Predicated region
        $region17: #{tpu_custom_call.1} parent=11 // pred_check
          %p212 = pneg %p84
        $region18: #{tpu_custom_call.1} parent=11 // pred_check_branch
          %214 = sbr.rel (%p212) target = $region20
        $region19: #{tpu_custom_call.1} parent=11 // pred_region
          _
        $region20: #{tpu_custom_call.1} parent=11 // pred_fallthru
          _
        // Predicated region
        $region21: #{tpu_custom_call.1} parent=11 // pred_check
          %p215 = pneg %p105
        $region22: #{tpu_custom_call.1} parent=11 // pred_check_branch
          %217 = sbr.rel (%p215) target = $region24
        $region23: #{tpu_custom_call.1} parent=11 // pred_region
          _
        $region24: #{tpu_custom_call.1} parent=11 // pred_fallthru
          _
        // Predicated region
        $region25: #{tpu_custom_call.1} parent=11 // pred_check
          %p218 = pneg %p126
        $region26: #{tpu_custom_call.1} parent=11 // pred_check_branch
          %220 = sbr.rel (%p218) target = $region28
        $region27: #{tpu_custom_call.1} parent=11 // pred_region
          _
        $region28: #{tpu_custom_call.1} parent=11 // pred_fallthru
          _
        // Predicated region
        $region29: #{tpu_custom_call.1} parent=11 // pred_check
          %p221 = pneg %p147
        $region30: #{tpu_custom_call.1} parent=11 // pred_check_branch
          %223 = sbr.rel (%p221) target = $region32
        $region31: #{tpu_custom_call.1} parent=11 // pred_region
          _
        $region32: #{tpu_custom_call.1} parent=11 // pred_fallthru
          _
        // Predicated region
        $region33: #{tpu_custom_call.1} parent=11 // pred_check
          %p224 = pneg %p168
        $region34: #{tpu_custom_call.1} parent=11 // pred_check_branch
          %226 = sbr.rel (%p224) target = $region36
        $region35: #{tpu_custom_call.1} parent=11 // pred_region
          _
        $region36: #{tpu_custom_call.1} parent=11 // pred_fallthru
          _
      $region12: #{tpu_custom_call.1} parent=5 // pred_fallthru
        _
      %p227 = scmp.lt.s32.totalorder %s16, 2
      // Predicated region
      $region37: #{tpu_custom_call.1} parent=5 // pred_check
        %p228 = pneg %p227
      $region38: #{tpu_custom_call.1} parent=5 // pred_check_branch
        %230 = sbr.rel (%p228) target = $region40
      $region39: #{tpu_custom_call.1} parent=5 // pred_region
        // Predicated region
        $region41: #{tpu_custom_call.1} parent=39 // pred_check
          %p231 = pneg %p36
        $region42: #{tpu_custom_call.1} parent=39 // pred_check_branch
          %233 = sbr.rel (%p231) target = $region44
        $region43: #{tpu_custom_call.1} parent=39 // pred_region
          %p234 = scmp.lt.s32.totalorder %s16, 1
          %s235 = scalar_select %p234, %s16, 1
          %s236 = smul.addr %s235, 32
          %s237 = smul.addr %s236, 4
          %s238 = scalar_lea.vmem %s0, %s237
        $region44: #{tpu_custom_call.1} parent=39 // pred_fallthru
          _
      $region40: #{tpu_custom_call.1} parent=5 // pred_fallthru
        _
      %p239 = scmp.le.s32.totalorder 1, %s16
      %p240 = scmp.lt.s32.totalorder %s16, 3
      %p241 = pnand %p239, %p240
      %p242 = pneg %p241
      // Predicated region
      $region45: #{tpu_custom_call.1} parent=5 // pred_check
        _
      $region46: #{tpu_custom_call.1} parent=5 // pred_check_branch
        %244 = sbr.rel (%p241) target = $region48
      $region47: #{tpu_custom_call.1} parent=5 // pred_region
        %s245 = ssub.s32 %s16, 1
        %p246 = scmp.lt.s32.totalorder %s21, 1
        %s247 = scalar_select %p246, %s21, 1
        %s248 = smul.addr %s247, 32
        %s249 = smul.addr %s248, 4
        %s250 = scalar_lea.vmem %s0, %s249
        %p251 = pneg %p42
        %p252 = pneg %p39
        %p253 = pneg %p63
        %p254 = pneg %p60
        %p255 = pneg %p84
        %p256 = pneg %p81
        %p257 = pneg %p105
        %p258 = pneg %p102
        %p259 = pneg %p126
        %p260 = pneg %p123
        %p261 = pneg %p147
        %p262 = pneg %p144
        %p263 = pneg %p168
        %p264 = pneg %p165
        %p265 = pneg %p194
        %p266 = pneg %p191
        %s267 = sand.u32 %s181, 1
        %s268 = scalar_lea.sflag [#allocation6], %s267
        %s269 = sand.u32 %s181, 1
        %s270 = smul.addr %s269, 8
        %s271 = scalar_lea.vmem [#allocation5], %s270
        %p272 = scmp.lt.s32.totalorder %s21, 1
        %s273 = scalar_select %p272, %s21, 1
        %s274 = smul.addr %s273, 32
        %s275 = smul.addr %s274, 4
        %s276 = scalar_lea.vmem %s0, %s275
        %v278 = vld [vmem:[%s276] sm:$0xf]
        %v279 = vld [vmem:[%s276 + $0x4] sm:$0xf]
        %v280 = vld [vmem:[%s276 + $0x8] sm:$0xf]
        %v281 = vld [vmem:[%s276 + $0xc] sm:$0xf]
        %v282 = vld [vmem:[%s276 + $0x10] sm:$0xf]
        %v283 = vld [vmem:[%s276 + $0x14] sm:$0xf]
        %v284 = vld [vmem:[%s276 + $0x18] sm:$0xf]
        %v285 = vld [vmem:[%s276 + $0x1c] sm:$0xf]
        %v286 = vld [vmem:[%s276 + $0x20] sm:$0xf]
        %v287 = vld [vmem:[%s276 + $0x24] sm:$0xf]
        %v288 = vld [vmem:[%s276 + $0x28] sm:$0xf]
        %v289 = vld [vmem:[%s276 + $0x2c] sm:$0xf]
        %v290 = vld [vmem:[%s276 + $0x30] sm:$0xf]
        %v291 = vld [vmem:[%s276 + $0x34] sm:$0xf]
        %v292 = vld [vmem:[%s276 + $0x38] sm:$0xf]
        %v293 = vld [vmem:[%s276 + $0x3c] sm:$0xf]
        %v294 = vld [vmem:[%s276 + $0x40] sm:$0xf]
        %v295 = vld [vmem:[%s276 + $0x44] sm:$0xf]
        %v296 = vld [vmem:[%s276 + $0x48] sm:$0xf]
        %v297 = vld [vmem:[%s276 + $0x4c] sm:$0xf]
        %v298 = vld [vmem:[%s276 + $0x50] sm:$0xf]
        %v299 = vld [vmem:[%s276 + $0x54] sm:$0xf]
        %v300 = vld [vmem:[%s276 + $0x58] sm:$0xf]
        %v301 = vld [vmem:[%s276 + $0x5c] sm:$0xf]
        %v302 = vld [vmem:[%s276 + $0x60] sm:$0xf]
        %v303 = vld [vmem:[%s276 + $0x64] sm:$0xf]
        %v304 = vld [vmem:[%s276 + $0x68] sm:$0xf]
        %v305 = vld [vmem:[%s276 + $0x6c] sm:$0xf]
        %v306 = vld [vmem:[%s276 + $0x70] sm:$0xf]
        %v307 = vld [vmem:[%s276 + $0x74] sm:$0xf]
        %v308 = vld [vmem:[%s276 + $0x78] sm:$0xf]
        %v309 = vld [vmem:[%s276 + $0x7c] sm:$0xf]
        %v310 = vld [vmem:[%s1] sm:$0x3]
        %v311 = vld [vmem:[%s2] sm:$0x1]
        %v313 = vlaneseq
        %v314 = vshrl.u32 %v313, 7
        %v315 = vsub.s32 0, %v314
        %v316 = vrot.slane %v311, %v315
        %v350 = vunpack.c.l.b16 %v278
        %v351 = vunpack.c.l.b16 %v279
        %v352 = vunpack.c.l.b16 %v280
        %v353 = vunpack.c.l.b16 %v281
        %v354 = vunpack.c.l.b16 %v282
        %v355 = vunpack.c.l.b16 %v283
        %v356 = vunpack.c.l.b16 %v284
        %v357 = vunpack.c.l.b16 %v285
        %v358 = vunpack.c.l.b16 %v286
        %v359 = vunpack.c.l.b16 %v287
        %v360 = vunpack.c.l.b16 %v288
        %v361 = vunpack.c.l.b16 %v289
        %v362 = vunpack.c.l.b16 %v290
        %v363 = vunpack.c.l.b16 %v291
        %v364 = vunpack.c.l.b16 %v292
        %v365 = vunpack.c.l.b16 %v293
        %v366 = vunpack.c.l.b16 %v294
        %v367 = vunpack.c.l.b16 %v295
        %v368 = vunpack.c.l.b16 %v296
        %v369 = vunpack.c.l.b16 %v297
        %v370 = vunpack.c.l.b16 %v298
        %v371 = vunpack.c.l.b16 %v299
        %v372 = vunpack.c.l.b16 %v300
        %v373 = vunpack.c.l.b16 %v301
        %v374 = vunpack.c.l.b16 %v302
        %v375 = vunpack.c.l.b16 %v303
        %v376 = vunpack.c.l.b16 %v304
        %v377 = vunpack.c.l.b16 %v305
        %v378 = vunpack.c.l.b16 %v306
        %v379 = vunpack.c.l.b16 %v307
        %v380 = vunpack.c.l.b16 %v308
        %v381 = vunpack.c.l.b16 %v309
        %v382 = vpack.c.b16 %v351, %v350
        %v383 = vpack.c.b16 %v353, %v352
        %v384 = vpack.c.b16 %v355, %v354
        %v385 = vpack.c.b16 %v357, %v356
        %v386 = vpack.c.b16 %v359, %v358
        %v387 = vpack.c.b16 %v361, %v360
        %v388 = vpack.c.b16 %v363, %v362
        %v389 = vpack.c.b16 %v365, %v364
        %v390 = vpack.c.b16 %v367, %v366
        %v391 = vpack.c.b16 %v369, %v368
        %v392 = vpack.c.b16 %v371, %v370
        %v393 = vpack.c.b16 %v373, %v372
        %v394 = vpack.c.b16 %v375, %v374
        %v395 = vpack.c.b16 %v377, %v376
        %v396 = vpack.c.b16 %v379, %v378
        %v397 = vpack.c.b16 %v381, %v380
        %vm398 = vcmask 31744
        %v400 = vsel %vm398, %v382, 0
        %v403 = vsel %vm398, %v383, 0
        %v406 = vsel %vm398, %v384, 0
        %v409 = vsel %vm398, %v385, 0
        %v412 = vsel %vm398, %v386, 0
        %v415 = vsel %vm398, %v387, 0
        %v418 = vsel %vm398, %v388, 0
        %v421 = vsel %vm398, %v389, 0
        %v424 = vsel %vm398, %v390, 0
        %v427 = vsel %vm398, %v391, 0
        %v430 = vsel %vm398, %v392, 0
        %v433 = vsel %vm398, %v393, 0
        %v436 = vsel %vm398, %v394, 0
        %v439 = vsel %vm398, %v395, 0
        %v442 = vsel %vm398, %v396, 0
        %v445 = vsel %vm398, %v397, 0
        %vm447 = vcmask 1041408
        %v449 = vsel %vm447, %v310, 0
        %451 = vmatprep.subr.bf16.mxu0 0
        %452 = vmatpush1.bf16.msra.mxu0 0
        %453 = vmatprep.subr.bf16.mxu0 0
        %454 = vmatpush1.bf16.msra.mxu0 0
        %455 = vmatprep.subr.bf16.mxu0 0
        %456 = vmatpush1.bf16.msra.mxu0 0
        %457 = vmatprep.subr.bf16.mxu0 0
        %458 = vmatpush1.bf16.msra.mxu0 0
        %459 = vmatprep.subr.bf16.mxu0 0
        %460 = vmatpush1.bf16.msra.mxu0 0
        %461 = vmatprep.subr.bf16.mxu0 0
        %462 = vmatpush1.bf16.msra.mxu0 0
        %463 = vmatprep.subr.bf16.mxu0 0
        %464 = vmatpush1.bf16.msra.mxu0 0
        %465 = vmatprep.subr.bf16.mxu0 0
        %466 = vmatpush1.bf16.msra.mxu0 %v449
        %467 = vmatprep.subr.bf16.mxu0 0
        %468 = vmatpush2.bf16.msra.mxu0 0
        %469 = vmatprep.subr.bf16.mxu0 0
        %470 = vmatpush2.bf16.msra.mxu0 0
        %471 = vmatprep.subr.bf16.mxu0 0
        %472 = vmatpush2.bf16.msra.mxu0 0
        %473 = vmatprep.subr.bf16.mxu0 0
        %474 = vmatpush2.bf16.msra.mxu0 0
        %475 = vmatprep.subr.bf16.mxu0 0
        %476 = vmatpush2.bf16.msra.mxu0 0
        %477 = vmatprep.subr.bf16.mxu0 0
        %478 = vmatpush2.bf16.msra.mxu0 0
        %479 = vmatprep.subr.bf16.mxu0 0
        %480 = vmatpush2.bf16.msra.mxu0 0
        %481 = vmatprep.subr.bf16.mxu0 0
        %482 = vmatpush2.bf16.msra.mxu0 0
        %483 = vmatprep.mubr.bf16.mxu0 0
        %484 = vmatmul.mubr.bf16.gmra.mxu0 %v400
        %v485 = vpop.f32.mrf.mxu0
        %v486 = vadd.f32 %v316, %v485
        %v487 = vpop.f32.mrf.mxu0
        %v488 = vpop.f32.mrf.mxu0
        %v489 = vadd.f32 %v316, %v488
        %v490 = vpop.f32.mrf.mxu0
        %491 = vmatprep.mubr.bf16.mxu0 0
        %492 = vmatmul.mubr.bf16.gmra.mxu0 %v403
        %v493 = vpop.f32.mrf.mxu0
        %v494 = vadd.f32 %v316, %v493
        %v495 = vpop.f32.mrf.mxu0
        %v496 = vpop.f32.mrf.mxu0
        %v497 = vadd.f32 %v316, %v496
        %v498 = vpop.f32.mrf.mxu0
        %499 = vmatprep.mubr.bf16.mxu0 0
        %500 = vmatmul.mubr.bf16.gmra.mxu0 %v406
        %v501 = vpop.f32.mrf.mxu0
        %v502 = vadd.f32 %v316, %v501
        %v503 = vpop.f32.mrf.mxu0
        %v504 = vpop.f32.mrf.mxu0
        %v505 = vadd.f32 %v316, %v504
        %v506 = vpop.f32.mrf.mxu0
        %507 = vmatprep.mubr.bf16.mxu0 0
        %508 = vmatmul.mubr.bf16.gmra.mxu0 %v409
        %v509 = vpop.f32.mrf.mxu0
        %v510 = vadd.f32 %v316, %v509
        %v511 = vpop.f32.mrf.mxu0
        %v512 = vpop.f32.mrf.mxu0
        %v513 = vadd.f32 %v316, %v512
        %v514 = vpop.f32.mrf.mxu0
        %515 = vmatprep.mubr.bf16.mxu0 0
        %516 = vmatmul.mubr.bf16.gmra.mxu0 %v412
        %v517 = vpop.f32.mrf.mxu0
        %v518 = vadd.f32 %v316, %v517
        %v519 = vpop.f32.mrf.mxu0
        %v520 = vpop.f32.mrf.mxu0
        %v521 = vadd.f32 %v316, %v520
        %v522 = vpop.f32.mrf.mxu0
        %523 = vmatprep.mubr.bf16.mxu0 0
        %524 = vmatmul.mubr.bf16.gmra.mxu0 %v415
        %v525 = vpop.f32.mrf.mxu0
        %v526 = vadd.f32 %v316, %v525
        %v527 = vpop.f32.mrf.mxu0
        %v528 = vpop.f32.mrf.mxu0
        %v529 = vadd.f32 %v316, %v528
        %v530 = vpop.f32.mrf.mxu0
        %531 = vmatprep.mubr.bf16.mxu0 0
        %532 = vmatmul.mubr.bf16.gmra.mxu0 %v418
        %v533 = vpop.f32.mrf.mxu0
        %v534 = vadd.f32 %v316, %v533
        %v535 = vpop.f32.mrf.mxu0
        %v536 = vpop.f32.mrf.mxu0
        %v537 = vadd.f32 %v316, %v536
        %v538 = vpop.f32.mrf.mxu0
        %539 = vmatprep.mubr.bf16.mxu0 0
        %540 = vmatmul.mubr.bf16.gmra.mxu0 %v421
        %v541 = vpop.f32.mrf.mxu0
        %v542 = vadd.f32 %v316, %v541
        %v543 = vpop.f32.mrf.mxu0
        %v544 = vpop.f32.mrf.mxu0
        %v545 = vadd.f32 %v316, %v544
        %v546 = vpop.f32.mrf.mxu0
        %547 = vmatprep.mubr.bf16.mxu0 0
        %548 = vmatmul.mubr.bf16.gmra.mxu0 %v424
        %v549 = vpop.f32.mrf.mxu0
        %v550 = vadd.f32 %v316, %v549
        %v551 = vpop.f32.mrf.mxu0
        %v552 = vpop.f32.mrf.mxu0
        %v553 = vadd.f32 %v316, %v552
        %v554 = vpop.f32.mrf.mxu0
        %555 = vmatprep.mubr.bf16.mxu0 0
        %556 = vmatmul.mubr.bf16.gmra.mxu0 %v427
        %v557 = vpop.f32.mrf.mxu0
        %v558 = vadd.f32 %v316, %v557
        %v559 = vpop.f32.mrf.mxu0
        %v560 = vpop.f32.mrf.mxu0
        %v561 = vadd.f32 %v316, %v560
        %v562 = vpop.f32.mrf.mxu0
        %563 = vmatprep.mubr.bf16.mxu0 0
        %564 = vmatmul.mubr.bf16.gmra.mxu0 %v430
        %v565 = vpop.f32.mrf.mxu0
        %v566 = vadd.f32 %v316, %v565
        %v567 = vpop.f32.mrf.mxu0
        %v568 = vpop.f32.mrf.mxu0
        %v569 = vadd.f32 %v316, %v568
        %v570 = vpop.f32.mrf.mxu0
        %571 = vmatprep.mubr.bf16.mxu0 0
        %572 = vmatmul.mubr.bf16.gmra.mxu0 %v433
        %v573 = vpop.f32.mrf.mxu0
        %v574 = vadd.f32 %v316, %v573
        %v575 = vpop.f32.mrf.mxu0
        %v576 = vpop.f32.mrf.mxu0
        %v577 = vadd.f32 %v316, %v576
        %v578 = vpop.f32.mrf.mxu0
        %579 = vmatprep.mubr.bf16.mxu0 0
        %580 = vmatmul.mubr.bf16.gmra.mxu0 %v436
        %v581 = vpop.f32.mrf.mxu0
        %v582 = vadd.f32 %v316, %v581
        %v583 = vpop.f32.mrf.mxu0
        %v584 = vpop.f32.mrf.mxu0
        %v585 = vadd.f32 %v316, %v584
        %v586 = vpop.f32.mrf.mxu0
        %587 = vmatprep.mubr.bf16.mxu0 0
        %588 = vmatmul.mubr.bf16.gmra.mxu0 %v439
        %v589 = vpop.f32.mrf.mxu0
        %v590 = vadd.f32 %v316, %v589
        %v591 = vpop.f32.mrf.mxu0
        %v592 = vpop.f32.mrf.mxu0
        %v593 = vadd.f32 %v316, %v592
        %v594 = vpop.f32.mrf.mxu0
        %595 = vmatprep.mubr.bf16.mxu0 0
        %596 = vmatmul.mubr.bf16.gmra.mxu0 %v442
        %v597 = vpop.f32.mrf.mxu0
        %v598 = vadd.f32 %v316, %v597
        %v599 = vpop.f32.mrf.mxu0
        %v600 = vpop.f32.mrf.mxu0
        %v601 = vadd.f32 %v316, %v600
        %v602 = vpop.f32.mrf.mxu0
        %603 = vmatprep.mubr.bf16.mxu0 0
        %604 = vmatmul.mubr.bf16.gmra.mxu0 %v445
        %v605 = vpop.f32.mrf.mxu0
        %v606 = vadd.f32 %v316, %v605
        %v607 = vpop.f32.mrf.mxu0
        %v608 = vpop.f32.mrf.mxu0
        %v609 = vadd.f32 %v316, %v608
        %v610 = vpop.f32.mrf.mxu0
        %611 = vdwg.mxu0
        %v612 = vmul.f32 %v486, 0.2
        %v613 = vmul.f32 %v489, 0.2
        %v614 = vmul.f32 %v494, 0.2
        %v615 = vmul.f32 %v497, 0.2
        %v616 = vmul.f32 %v502, 0.2
        %v617 = vmul.f32 %v505, 0.2
        %v618 = vmul.f32 %v510, 0.2
        %v619 = vmul.f32 %v513, 0.2
        %v620 = vmul.f32 %v518, 0.2
        %v621 = vmul.f32 %v521, 0.2
        %v622 = vmul.f32 %v526, 0.2
        %v623 = vmul.f32 %v529, 0.2
        %v624 = vmul.f32 %v534, 0.2
        %v625 = vmul.f32 %v537, 0.2
        %v626 = vmul.f32 %v542, 0.2
        %v627 = vmul.f32 %v545, 0.2
        %v628 = vmul.f32 %v550, 0.2
        %v629 = vmul.f32 %v553, 0.2
        %v630 = vmul.f32 %v558, 0.2
        %v631 = vmul.f32 %v561, 0.2
        %v632 = vmul.f32 %v566, 0.2
        %v633 = vmul.f32 %v569, 0.2
        %v634 = vmul.f32 %v574, 0.2
        %v635 = vmul.f32 %v577, 0.2
        %v636 = vmul.f32 %v582, 0.2
        %v637 = vmul.f32 %v585, 0.2
        %v638 = vmul.f32 %v590, 0.2
        %v639 = vmul.f32 %v593, 0.2
        %v640 = vmul.f32 %v598, 0.2
        %v641 = vmul.f32 %v601, 0.2
        %v642 = vmul.f32 %v606, 0.2
        %v643 = vmul.f32 %v609, 0.2
        %v644 = vmax.f32 %v486, %v612
        %v645 = vmax.f32 %v489, %v613
        %v646 = vmax.f32 %v494, %v614
        %v647 = vmax.f32 %v497, %v615
        %v648 = vmax.f32 %v502, %v616
        %v649 = vmax.f32 %v505, %v617
        %v650 = vmax.f32 %v510, %v618
        %v651 = vmax.f32 %v513, %v619
        %v652 = vmax.f32 %v518, %v620
        %v653 = vmax.f32 %v521, %v621
        %v654 = vmax.f32 %v526, %v622
        %v655 = vmax.f32 %v529, %v623
        %v656 = vmax.f32 %v534, %v624
        %v657 = vmax.f32 %v537, %v625
        %v658 = vmax.f32 %v542, %v626
        %v659 = vmax.f32 %v545, %v627
        %v660 = vmax.f32 %v550, %v628
        %v661 = vmax.f32 %v553, %v629
        %v662 = vmax.f32 %v558, %v630
        %v663 = vmax.f32 %v561, %v631
        %v664 = vmax.f32 %v566, %v632
        %v665 = vmax.f32 %v569, %v633
        %v666 = vmax.f32 %v574, %v634
        %v667 = vmax.f32 %v577, %v635
        %v668 = vmax.f32 %v582, %v636
        %v669 = vmax.f32 %v585, %v637
        %v670 = vmax.f32 %v590, %v638
        %v671 = vmax.f32 %v593, %v639
        %v672 = vmax.f32 %v598, %v640
        %v673 = vmax.f32 %v601, %v641
        %v674 = vmax.f32 %v606, %v642
        %v675 = vmax.f32 %v609, %v643
        %vm676 = vcmask 60416
        %677 = vst.msk [vmem:[#allocation2] sm:$0xf] %vm676, 0
        %678 = vst.msk [vmem:[#allocation2 + $0x4] sm:$0xf] %vm676, 0
        %vm679 = vcmask 57344
        %680 = vst.msk [vmem:[#allocation2 + $0x8] sm:$0x1] %vm679, 0
        %s681 = scalar_lea.vmem [#allocation2], 204
        %682 = vst.msk [vmem:[%s681] sm:$0xf] %vm676, 0
        %683 = vst.msk [vmem:[%s681 + $0x4] sm:$0xf] %vm676, 0
        %684 = vst.msk [vmem:[%s681 + $0x8] sm:$0x1] %vm679, 0
        %vm685 = vcmask 57344
        %vm686 = vsmask.f32 256
        %vm687 = vmand %vm685, %vm686
        %v688 = vld [vmem:[#allocation2] sm:$0x1]
        %v689 = vsel %vm687, 0, %v688
        %690 = vst [vmem:[#allocation2] sm:$0x1] %v689
        %v691 = vld [vmem:[#allocation2 + $0xc] sm:$0x1]
        %v692 = vsel %vm687, 0, %v691
        %693 = vst [vmem:[#allocation2 + $0xc] sm:$0x1] %v692
        %v694 = vld [vmem:[#allocation2 + $0x18] sm:$0x1]
        %v695 = vsel %vm687, 0, %v694
        %696 = vst [vmem:[#allocation2 + $0x18] sm:$0x1] %v695
        %v697 = vld [vmem:[#allocation2 + $0x24] sm:$0x1]
        %v698 = vsel %vm687, 0, %v697
        %699 = vst [vmem:[#allocation2 + $0x24] sm:$0x1] %v698
        %v700 = vld [vmem:[#allocation2 + $0x30] sm:$0x1]
        %v701 = vsel %vm687, 0, %v700
        %702 = vst [vmem:[#allocation2 + $0x30] sm:$0x1] %v701
        %v703 = vld [vmem:[#allocation2 + $0x3c] sm:$0x1]
        %v704 = vsel %vm687, 0, %v703
        %705 = vst [vmem:[#allocation2 + $0x3c] sm:$0x1] %v704
        %v706 = vld [vmem:[#allocation2 + $0x48] sm:$0x1]
        %v707 = vsel %vm687, 0, %v706
        %708 = vst [vmem:[#allocation2 + $0x48] sm:$0x1] %v707
        %v709 = vld [vmem:[#allocation2 + $0x54] sm:$0x1]
        %v710 = vsel %vm687, 0, %v709
        %711 = vst [vmem:[#allocation2 + $0x54] sm:$0x1] %v710
        %v712 = vld [vmem:[#allocation2 + $0x60] sm:$0x1]
        %v713 = vsel %vm687, 0, %v712
        %714 = vst [vmem:[#allocation2 + $0x60] sm:$0x1] %v713
        %v715 = vld [vmem:[#allocation2 + $0x6c] sm:$0x1]
        %v716 = vsel %vm687, 0, %v715
        %717 = vst [vmem:[#allocation2 + $0x6c] sm:$0x1] %v716
        %v718 = vld [vmem:[#allocation2 + $0x78] sm:$0x1]
        %v719 = vsel %vm687, 0, %v718
        %720 = vst [vmem:[#allocation2 + $0x78] sm:$0x1] %v719
        %v721 = vld [vmem:[#allocation2 + $0x84] sm:$0x1]
        %v722 = vsel %vm687, 0, %v721
        %723 = vst [vmem:[#allocation2 + $0x84] sm:$0x1] %v722
        %v724 = vld [vmem:[#allocation2 + $0x90] sm:$0x1]
        %v725 = vsel %vm687, 0, %v724
        %726 = vst [vmem:[#allocation2 + $0x90] sm:$0x1] %v725
        %v727 = vld [vmem:[#allocation2 + $0x9c] sm:$0x1]
        %v728 = vsel %vm687, 0, %v727
        %729 = vst [vmem:[#allocation2 + $0x9c] sm:$0x1] %v728
        %v730 = vld [vmem:[#allocation2 + $0xa8] sm:$0x1]
        %v731 = vsel %vm687, 0, %v730
        %732 = vst [vmem:[#allocation2 + $0xa8] sm:$0x1] %v731
        %v733 = vld [vmem:[#allocation2 + $0xb4] sm:$0x1]
        %v734 = vsel %vm687, 0, %v733
        %735 = vst [vmem:[#allocation2 + $0xb4] sm:$0x1] %v734
        %v736 = vld [vmem:[#allocation2 + $0xc0] sm:$0x1]
        %v737 = vsel %vm687, 0, %v736
        %738 = vst [vmem:[#allocation2 + $0xc0] sm:$0x1] %v737
        %v739 = vld [vmem:[#allocation2 + $0xcc] sm:$0x1]
        %v740 = vsel %vm687, 0, %v739
        %741 = vst [vmem:[#allocation2 + $0xcc] sm:$0x1] %v740
        %vm742 = vsmask.f32 7938
        %vm743 = vmand %vm685, %vm742
        %v744 = vld [vmem:[#allocation2 + $0x8] sm:$0x1]
        %v745 = vsel %vm743, 0, %v744
        %746 = vst [vmem:[#allocation2 + $0x8] sm:$0x1] %v745
        %v747 = vld [vmem:[#allocation2 + $0x14] sm:$0x1]
        %v748 = vsel %vm743, 0, %v747
        %749 = vst [vmem:[#allocation2 + $0x14] sm:$0x1] %v748
        %v750 = vld [vmem:[#allocation2 + $0x20] sm:$0x1]
        %v751 = vsel %vm743, 0, %v750
        %752 = vst [vmem:[#allocation2 + $0x20] sm:$0x1] %v751
        %v753 = vld [vmem:[#allocation2 + $0x2c] sm:$0x1]
        %v754 = vsel %vm743, 0, %v753
        %755 = vst [vmem:[#allocation2 + $0x2c] sm:$0x1] %v754
        %v756 = vld [vmem:[#allocation2 + $0x38] sm:$0x1]
        %v757 = vsel %vm743, 0, %v756
        %758 = vst [vmem:[#allocation2 + $0x38] sm:$0x1] %v757
        %v759 = vld [vmem:[#allocation2 + $0x44] sm:$0x1]
        %v760 = vsel %vm743, 0, %v759
        %761 = vst [vmem:[#allocation2 + $0x44] sm:$0x1] %v760
        %v762 = vld [vmem:[#allocation2 + $0x50] sm:$0x1]
        %v763 = vsel %vm743, 0, %v762
        %764 = vst [vmem:[#allocation2 + $0x50] sm:$0x1] %v763
        %v765 = vld [vmem:[#allocation2 + $0x5c] sm:$0x1]
        %v766 = vsel %vm743, 0, %v765
        %767 = vst [vmem:[#allocation2 + $0x5c] sm:$0x1] %v766
        %v768 = vld [vmem:[#allocation2 + $0x68] sm:$0x1]
        %v769 = vsel %vm743, 0, %v768
        %770 = vst [vmem:[#allocation2 + $0x68] sm:$0x1] %v769
        %v771 = vld [vmem:[#allocation2 + $0x74] sm:$0x1]
        %v772 = vsel %vm743, 0, %v771
        %773 = vst [vmem:[#allocation2 + $0x74] sm:$0x1] %v772
        %v774 = vld [vmem:[#allocation2 + $0x80] sm:$0x1]
        %v775 = vsel %vm743, 0, %v774
        %776 = vst [vmem:[#allocation2 + $0x80] sm:$0x1] %v775
        %v777 = vld [vmem:[#allocation2 + $0x8c] sm:$0x1]
        %v778 = vsel %vm743, 0, %v777
        %779 = vst [vmem:[#allocation2 + $0x8c] sm:$0x1] %v778
        %v780 = vld [vmem:[#allocation2 + $0x98] sm:$0x1]
        %v781 = vsel %vm743, 0, %v780
        %782 = vst [vmem:[#allocation2 + $0x98] sm:$0x1] %v781
        %v783 = vld [vmem:[#allocation2 + $0xa4] sm:$0x1]
        %v784 = vsel %vm743, 0, %v783
        %785 = vst [vmem:[#allocation2 + $0xa4] sm:$0x1] %v784
        %v786 = vld [vmem:[#allocation2 + $0xb0] sm:$0x1]
        %v787 = vsel %vm743, 0, %v786
        %788 = vst [vmem:[#allocation2 + $0xb0] sm:$0x1] %v787
        %v789 = vld [vmem:[#allocation2 + $0xbc] sm:$0x1]
        %v790 = vsel %vm743, 0, %v789
        %791 = vst [vmem:[#allocation2 + $0xbc] sm:$0x1] %v790
        %v792 = vld [vmem:[#allocation2 + $0xc8] sm:$0x1]
        %v793 = vsel %vm743, 0, %v792
        %794 = vst [vmem:[#allocation2 + $0xc8] sm:$0x1] %v793
        %v795 = vld [vmem:[#allocation2 + $0xd4] sm:$0x1]
        %v796 = vsel %vm743, 0, %v795
        %797 = vst [vmem:[#allocation2 + $0xd4] sm:$0x1] %v796
        %v798 = vpack.c.bf16 %v645, %v644
        %v799 = vpack.c.bf16 %v647, %v646
        %v800 = vpack.c.bf16 %v649, %v648
        %v801 = vpack.c.bf16 %v651, %v650
        %v802 = vpack.c.bf16 %v653, %v652
        %v803 = vpack.c.bf16 %v655, %v654
        %v804 = vpack.c.bf16 %v657, %v656
        %v805 = vpack.c.bf16 %v659, %v658
        %v806 = vpack.c.bf16 %v661, %v660
        %v807 = vpack.c.bf16 %v663, %v662
        %v808 = vpack.c.bf16 %v665, %v664
        %v809 = vpack.c.bf16 %v667, %v666
        %v810 = vpack.c.bf16 %v669, %v668
        %v811 = vpack.c.bf16 %v671, %v670
        %v812 = vpack.c.bf16 %v673, %v672
        %v813 = vpack.c.bf16 %v675, %v674
        %v830 = vunpack.c.l.b16 %v798
        %v831 = vunpack.c.h.b16 %v798
        %v832 = vunpack.c.l.b16 %v799
        %v833 = vunpack.c.h.b16 %v799
        %v834 = vunpack.c.l.b16 %v800
        %v835 = vunpack.c.h.b16 %v800
        %v836 = vunpack.c.l.b16 %v801
        %v837 = vunpack.c.h.b16 %v801
        %v838 = vunpack.c.l.b16 %v802
        %v839 = vunpack.c.h.b16 %v802
        %v840 = vunpack.c.l.b16 %v803
        %v841 = vunpack.c.h.b16 %v803
        %v842 = vunpack.c.l.b16 %v804
        %v843 = vunpack.c.h.b16 %v804
        %v844 = vunpack.c.l.b16 %v805
        %v845 = vunpack.c.h.b16 %v805
        %v846 = vunpack.c.l.b16 %v806
        %v847 = vunpack.c.h.b16 %v806
        %v848 = vunpack.c.l.b16 %v807
        %v849 = vunpack.c.h.b16 %v807
        %v850 = vunpack.c.l.b16 %v808
        %v851 = vunpack.c.h.b16 %v808
        %v852 = vunpack.c.l.b16 %v809
        %v853 = vunpack.c.h.b16 %v809
        %v854 = vunpack.c.l.b16 %v810
        %v855 = vunpack.c.h.b16 %v810
        %v856 = vunpack.c.l.b16 %v811
        %v857 = vunpack.c.h.b16 %v811
        %v858 = vunpack.c.l.b16 %v812
        %v859 = vunpack.c.h.b16 %v812
        %v860 = vunpack.c.l.b16 %v813
        %v861 = vunpack.c.h.b16 %v813
        %v862 = vpack.c.b16 %v830, %v830
        %v863 = vpack.c.b16 %v831, %v831
        %v864 = vpack.c.b16 %v832, %v832
        %v865 = vpack.c.b16 %v833, %v833
        %v866 = vpack.c.b16 %v834, %v834
        %v867 = vpack.c.b16 %v835, %v835
        %v868 = vpack.c.b16 %v836, %v836
        %v869 = vpack.c.b16 %v837, %v837
        %v870 = vpack.c.b16 %v838, %v838
        %v871 = vpack.c.b16 %v839, %v839
        %v872 = vpack.c.b16 %v840, %v840
        %v873 = vpack.c.b16 %v841, %v841
        %v874 = vpack.c.b16 %v842, %v842
        %v875 = vpack.c.b16 %v843, %v843
        %v876 = vpack.c.b16 %v844, %v844
        %v877 = vpack.c.b16 %v845, %v845
        %v878 = vpack.c.b16 %v846, %v846
        %v879 = vpack.c.b16 %v847, %v847
        %v880 = vpack.c.b16 %v848, %v848
        %v881 = vpack.c.b16 %v849, %v849
        %v882 = vpack.c.b16 %v850, %v850
        %v883 = vpack.c.b16 %v851, %v851
        %v884 = vpack.c.b16 %v852, %v852
        %v885 = vpack.c.b16 %v853, %v853
        %v886 = vpack.c.b16 %v854, %v854
        %v887 = vpack.c.b16 %v855, %v855
        %v888 = vpack.c.b16 %v856, %v856
        %v889 = vpack.c.b16 %v857, %v857
        %v890 = vpack.c.b16 %v858, %v858
        %v891 = vpack.c.b16 %v859, %v859
        %v892 = vpack.c.b16 %v860, %v860
        %v893 = vpack.c.b16 %v861, %v861
        %vm894 = vsmask.f32 4368
        %vm895 = vmor %vm686, %vm894
        %v897 = vshrl.u32 %v862, 16
        %v899 = vrot.slane %v897, 7
        %v900 = vshll.u32 %v862, 16
        %v902 = vor.u32 %v899, %v900
        %v903 = vrot.slane %v899, 4
        %v905 = vshrl.u32 %v863, 16
        %v907 = vrot.slane %v905, 7
        %v908 = vshll.u32 %v863, 16
        %v910 = vor.u32 %v907, %v908
        %v911 = vsel %vm895, %v903, %v910
        %v912 = vrot.slane %v907, 4
        %v914 = vshrl.u32 %v864, 16
        %v916 = vrot.slane %v914, 7
        %v917 = vshll.u32 %v864, 16
        %v919 = vor.u32 %v916, %v917
        %v920 = vrot.slane %v916, 4
        %v922 = vshrl.u32 %v865, 16
        %v924 = vrot.slane %v922, 7
        %v925 = vshll.u32 %v865, 16
        %v927 = vor.u32 %v924, %v925
        %v928 = vsel %vm895, %v920, %v927
        %v929 = vrot.slane %v924, 4
        %v931 = vshrl.u32 %v866, 16
        %v933 = vrot.slane %v931, 7
        %v934 = vshll.u32 %v866, 16
        %v936 = vor.u32 %v933, %v934
        %v937 = vrot.slane %v933, 4
        %v939 = vshrl.u32 %v867, 16
        %v941 = vrot.slane %v939, 7
        %v942 = vshll.u32 %v867, 16
        %v944 = vor.u32 %v941, %v942
        %v945 = vsel %vm895, %v937, %v944
        %v946 = vrot.slane %v941, 4
        %v948 = vshrl.u32 %v868, 16
        %v950 = vrot.slane %v948, 7
        %v951 = vshll.u32 %v868, 16
        %v953 = vor.u32 %v950, %v951
        %v954 = vrot.slane %v950, 4
        %v956 = vshrl.u32 %v869, 16
        %v958 = vrot.slane %v956, 7
        %v959 = vshll.u32 %v869, 16
        %v961 = vor.u32 %v958, %v959
        %v962 = vsel %vm895, %v954, %v961
        %v963 = vrot.slane %v958, 4
        %v965 = vshrl.u32 %v870, 16
        %v967 = vrot.slane %v965, 7
        %v968 = vshll.u32 %v870, 16
        %v970 = vor.u32 %v967, %v968
        %v971 = vrot.slane %v967, 4
        %v973 = vshrl.u32 %v871, 16
        %v975 = vrot.slane %v973, 7
        %v976 = vshll.u32 %v871, 16
        %v978 = vor.u32 %v975, %v976
        %v979 = vsel %vm895, %v971, %v978
        %v980 = vrot.slane %v975, 4
        %v982 = vshrl.u32 %v872, 16
        %v984 = vrot.slane %v982, 7
        %v985 = vshll.u32 %v872, 16
        %v987 = vor.u32 %v984, %v985
        %v988 = vrot.slane %v984, 4
        %v990 = vshrl.u32 %v873, 16
        %v992 = vrot.slane %v990, 7
        %v993 = vshll.u32 %v873, 16
        %v995 = vor.u32 %v992, %v993
        %v996 = vsel %vm895, %v988, %v995
        %v997 = vrot.slane %v992, 4
        %v999 = vshrl.u32 %v874, 16
        %v1001 = vrot.slane %v999, 7
        %v1002 = vshll.u32 %v874, 16
        %v1004 = vor.u32 %v1001, %v1002
        %v1005 = vrot.slane %v1001, 4
        %v1007 = vshrl.u32 %v875, 16
        %v1009 = vrot.slane %v1007, 7
        %v1010 = vshll.u32 %v875, 16
        %v1012 = vor.u32 %v1009, %v1010
        %v1013 = vsel %vm895, %v1005, %v1012
        %v1014 = vrot.slane %v1009, 4
        %v1016 = vshrl.u32 %v876, 16
        %v1018 = vrot.slane %v1016, 7
        %v1019 = vshll.u32 %v876, 16
        %v1021 = vor.u32 %v1018, %v1019
        %v1022 = vrot.slane %v1018, 4
        %v1024 = vshrl.u32 %v877, 16
        %v1026 = vrot.slane %v1024, 7
        %v1027 = vshll.u32 %v877, 16
        %v1029 = vor.u32 %v1026, %v1027
        %v1030 = vsel %vm895, %v1022, %v1029
        %v1031 = vrot.slane %v1026, 4
        %v1033 = vshrl.u32 %v878, 16
        %v1035 = vrot.slane %v1033, 7
        %v1036 = vshll.u32 %v878, 16
        %v1038 = vor.u32 %v1035, %v1036
        %v1039 = vrot.slane %v1035, 4
        %v1041 = vshrl.u32 %v879, 16
        %v1043 = vrot.slane %v1041, 7
        %v1044 = vshll.u32 %v879, 16
        %v1046 = vor.u32 %v1043, %v1044
        %v1047 = vsel %vm895, %v1039, %v1046
        %v1048 = vrot.slane %v1043, 4
        %v1050 = vshrl.u32 %v880, 16
        %v1052 = vrot.slane %v1050, 7
        %v1053 = vshll.u32 %v880, 16
        %v1055 = vor.u32 %v1052, %v1053
        %v1056 = vrot.slane %v1052, 4
        %v1058 = vshrl.u32 %v881, 16
        %v1060 = vrot.slane %v1058, 7
        %v1061 = vshll.u32 %v881, 16
        %v1063 = vor.u32 %v1060, %v1061
        %v1064 = vsel %vm895, %v1056, %v1063
        %v1065 = vrot.slane %v1060, 4
        %v1067 = vshrl.u32 %v882, 16
        %v1069 = vrot.slane %v1067, 7
        %v1070 = vshll.u32 %v882, 16
        %v1072 = vor.u32 %v1069, %v1070
        %v1073 = vrot.slane %v1069, 4
        %v1075 = vshrl.u32 %v883, 16
        %v1077 = vrot.slane %v1075, 7
        %v1078 = vshll.u32 %v883, 16
        %v1080 = vor.u32 %v1077, %v1078
        %v1081 = vsel %vm895, %v1073, %v1080
        %v1082 = vrot.slane %v1077, 4
        %v1084 = vshrl.u32 %v884, 16
        %v1086 = vrot.slane %v1084, 7
        %v1087 = vshll.u32 %v884, 16
        %v1089 = vor.u32 %v1086, %v1087
        %v1090 = vrot.slane %v1086, 4
        %v1092 = vshrl.u32 %v885, 16
        %v1094 = vrot.slane %v1092, 7
        %v1095 = vshll.u32 %v885, 16
        %v1097 = vor.u32 %v1094, %v1095
        %v1098 = vsel %vm895, %v1090, %v1097
        %v1099 = vrot.slane %v1094, 4
        %v1101 = vshrl.u32 %v886, 16
        %v1103 = vrot.slane %v1101, 7
        %v1104 = vshll.u32 %v886, 16
        %v1106 = vor.u32 %v1103, %v1104
        %v1107 = vrot.slane %v1103, 4
        %v1109 = vshrl.u32 %v887, 16
        %v1111 = vrot.slane %v1109, 7
        %v1112 = vshll.u32 %v887, 16
        %v1114 = vor.u32 %v1111, %v1112
        %v1115 = vsel %vm895, %v1107, %v1114
        %v1116 = vrot.slane %v1111, 4
        %v1118 = vshrl.u32 %v888, 16
        %v1120 = vrot.slane %v1118, 7
        %v1121 = vshll.u32 %v888, 16
        %v1123 = vor.u32 %v1120, %v1121
        %v1124 = vrot.slane %v1120, 4
        %v1126 = vshrl.u32 %v889, 16
        %v1128 = vrot.slane %v1126, 7
        %v1129 = vshll.u32 %v889, 16
        %v1131 = vor.u32 %v1128, %v1129
        %v1132 = vsel %vm895, %v1124, %v1131
        %v1133 = vrot.slane %v1128, 4
        %v1135 = vshrl.u32 %v890, 16
        %v1137 = vrot.slane %v1135, 7
        %v1138 = vshll.u32 %v890, 16
        %v1140 = vor.u32 %v1137, %v1138
        %v1141 = vrot.slane %v1137, 4
        %v1143 = vshrl.u32 %v891, 16
        %v1145 = vrot.slane %v1143, 7
        %v1146 = vshll.u32 %v891, 16
        %v1148 = vor.u32 %v1145, %v1146
        %v1149 = vsel %vm895, %v1141, %v1148
        %v1150 = vrot.slane %v1145, 4
        %v1152 = vshrl.u32 %v892, 16
        %v1154 = vrot.slane %v1152, 7
        %v1155 = vshll.u32 %v892, 16
        %v1157 = vor.u32 %v1154, %v1155
        %v1158 = vrot.slane %v1154, 4
        %v1160 = vshrl.u32 %v893, 16
        %v1162 = vrot.slane %v1160, 7
        %v1163 = vshll.u32 %v893, 16
        %v1165 = vor.u32 %v1162, %v1163
        %v1166 = vsel %vm895, %v1158, %v1165
        %v1167 = vrot.slane %v1162, 4
        %s1216 = scalar_lea.vmem [#allocation2], 12
        %vm1217 = vcmask 60416
        %vm1218 = vmand %vm1217, %vm742
        %v1219 = vld [vmem:[%s1216] sm:$0xf]
        %v1220 = vsel %vm1218, %v902, %v1219
        %1221 = vst [vmem:[%s1216] sm:$0xf] %v1220
        %1222 = vst.msk [vmem:[%s1216 + $0x4] sm:$0xf] %vm676, %v911
        %v1223 = vld [vmem:[%s1216 + $0x8] sm:$0x1]
        %v1224 = vsel %vm687, %v912, %v1223
        %1225 = vst [vmem:[%s1216 + $0x8] sm:$0x1] %v1224
        %v1226 = vld [vmem:[%s1216 + $0xc] sm:$0xf]
        %v1227 = vsel %vm1218, %v919, %v1226
        %1228 = vst [vmem:[%s1216 + $0xc] sm:$0xf] %v1227
        %1229 = vst.msk [vmem:[%s1216 + $0x10] sm:$0xf] %vm676, %v928
        %v1230 = vld [vmem:[%s1216 + $0x14] sm:$0x1]
        %v1231 = vsel %vm687, %v929, %v1230
        %1232 = vst [vmem:[%s1216 + $0x14] sm:$0x1] %v1231
        %v1233 = vld [vmem:[%s1216 + $0x18] sm:$0xf]
        %v1234 = vsel %vm1218, %v936, %v1233
        %1235 = vst [vmem:[%s1216 + $0x18] sm:$0xf] %v1234
        %1236 = vst.msk [vmem:[%s1216 + $0x1c] sm:$0xf] %vm676, %v945
        %v1237 = vld [vmem:[%s1216 + $0x20] sm:$0x1]
        %v1238 = vsel %vm687, %v946, %v1237
        %1239 = vst [vmem:[%s1216 + $0x20] sm:$0x1] %v1238
        %v1240 = vld [vmem:[%s1216 + $0x24] sm:$0xf]
        %v1241 = vsel %vm1218, %v953, %v1240
        %1242 = vst [vmem:[%s1216 + $0x24] sm:$0xf] %v1241
        %1243 = vst.msk [vmem:[%s1216 + $0x28] sm:$0xf] %vm676, %v962
        %v1244 = vld [vmem:[%s1216 + $0x2c] sm:$0x1]
        %v1245 = vsel %vm687, %v963, %v1244
        %1246 = vst [vmem:[%s1216 + $0x2c] sm:$0x1] %v1245
        %v1247 = vld [vmem:[%s1216 + $0x30] sm:$0xf]
        %v1248 = vsel %vm1218, %v970, %v1247
        %1249 = vst [vmem:[%s1216 + $0x30] sm:$0xf] %v1248
        %1250 = vst.msk [vmem:[%s1216 + $0x34] sm:$0xf] %vm676, %v979
        %v1251 = vld [vmem:[%s1216 + $0x38] sm:$0x1]
        %v1252 = vsel %vm687, %v980, %v1251
        %1253 = vst [vmem:[%s1216 + $0x38] sm:$0x1] %v1252
        %v1254 = vld [vmem:[%s1216 + $0x3c] sm:$0xf]
        %v1255 = vsel %vm1218, %v987, %v1254
        %1256 = vst [vmem:[%s1216 + $0x3c] sm:$0xf] %v1255
        %1257 = vst.msk [vmem:[%s1216 + $0x40] sm:$0xf] %vm676, %v996
        %v1258 = vld [vmem:[%s1216 + $0x44] sm:$0x1]
        %v1259 = vsel %vm687, %v997, %v1258
        %1260 = vst [vmem:[%s1216 + $0x44] sm:$0x1] %v1259
        %v1261 = vld [vmem:[%s1216 + $0x48] sm:$0xf]
        %v1262 = vsel %vm1218, %v1004, %v1261
        %1263 = vst [vmem:[%s1216 + $0x48] sm:$0xf] %v1262
        %1264 = vst.msk [vmem:[%s1216 + $0x4c] sm:$0xf] %vm676, %v1013
        %v1265 = vld [vmem:[%s1216 + $0x50] sm:$0x1]
        %v1266 = vsel %vm687, %v1014, %v1265
        %1267 = vst [vmem:[%s1216 + $0x50] sm:$0x1] %v1266
        %v1268 = vld [vmem:[%s1216 + $0x54] sm:$0xf]
        %v1269 = vsel %vm1218, %v1021, %v1268
        %1270 = vst [vmem:[%s1216 + $0x54] sm:$0xf] %v1269
        %1271 = vst.msk [vmem:[%s1216 + $0x58] sm:$0xf] %vm676, %v1030
        %v1272 = vld [vmem:[%s1216 + $0x5c] sm:$0x1]
        %v1273 = vsel %vm687, %v1031, %v1272
        %1274 = vst [vmem:[%s1216 + $0x5c] sm:$0x1] %v1273
        %v1275 = vld [vmem:[%s1216 + $0x60] sm:$0xf]
        %v1276 = vsel %vm1218, %v1038, %v1275
        %1277 = vst [vmem:[%s1216 + $0x60] sm:$0xf] %v1276
        %1278 = vst.msk [vmem:[%s1216 + $0x64] sm:$0xf] %vm676, %v1047
        %v1279 = vld [vmem:[%s1216 + $0x68] sm:$0x1]
        %v1280 = vsel %vm687, %v1048, %v1279
        %1281 = vst [vmem:[%s1216 + $0x68] sm:$0x1] %v1280
        %v1282 = vld [vmem:[%s1216 + $0x6c] sm:$0xf]
        %v1283 = vsel %vm1218, %v1055, %v1282
        %1284 = vst [vmem:[%s1216 + $0x6c] sm:$0xf] %v1283
        %1285 = vst.msk [vmem:[%s1216 + $0x70] sm:$0xf] %vm676, %v1064
        %v1286 = vld [vmem:[%s1216 + $0x74] sm:$0x1]
        %v1287 = vsel %vm687, %v1065, %v1286
        %1288 = vst [vmem:[%s1216 + $0x74] sm:$0x1] %v1287
        %v1289 = vld [vmem:[%s1216 + $0x78] sm:$0xf]
        %v1290 = vsel %vm1218, %v1072, %v1289
        %1291 = vst [vmem:[%s1216 + $0x78] sm:$0xf] %v1290
        %1292 = vst.msk [vmem:[%s1216 + $0x7c] sm:$0xf] %vm676, %v1081
        %v1293 = vld [vmem:[%s1216 + $0x80] sm:$0x1]
        %v1294 = vsel %vm687, %v1082, %v1293
        %1295 = vst [vmem:[%s1216 + $0x80] sm:$0x1] %v1294
        %v1296 = vld [vmem:[%s1216 + $0x84] sm:$0xf]
        %v1297 = vsel %vm1218, %v1089, %v1296
        %1298 = vst [vmem:[%s1216 + $0x84] sm:$0xf] %v1297
        %1299 = vst.msk [vmem:[%s1216 + $0x88] sm:$0xf] %vm676, %v1098
        %v1300 = vld [vmem:[%s1216 + $0x8c] sm:$0x1]
        %v1301 = vsel %vm687, %v1099, %v1300
        %1302 = vst [vmem:[%s1216 + $0x8c] sm:$0x1] %v1301
        %v1303 = vld [vmem:[%s1216 + $0x90] sm:$0xf]
        %v1304 = vsel %vm1218, %v1106, %v1303
        %1305 = vst [vmem:[%s1216 + $0x90] sm:$0xf] %v1304
        %1306 = vst.msk [vmem:[%s1216 + $0x94] sm:$0xf] %vm676, %v1115
        %v1307 = vld [vmem:[%s1216 + $0x98] sm:$0x1]
        %v1308 = vsel %vm687, %v1116, %v1307
        %1309 = vst [vmem:[%s1216 + $0x98] sm:$0x1] %v1308
        %v1310 = vld [vmem:[%s1216 + $0x9c] sm:$0xf]
        %v1311 = vsel %vm1218, %v1123, %v1310
        %1312 = vst [vmem:[%s1216 + $0x9c] sm:$0xf] %v1311
        %1313 = vst.msk [vmem:[%s1216 + $0xa0] sm:$0xf] %vm676, %v1132
        %v1314 = vld [vmem:[%s1216 + $0xa4] sm:$0x1]
        %v1315 = vsel %vm687, %v1133, %v1314
        %1316 = vst [vmem:[%s1216 + $0xa4] sm:$0x1] %v1315
        %v1317 = vld [vmem:[%s1216 + $0xa8] sm:$0xf]
        %v1318 = vsel %vm1218, %v1140, %v1317
        %1319 = vst [vmem:[%s1216 + $0xa8] sm:$0xf] %v1318
        %1320 = vst.msk [vmem:[%s1216 + $0xac] sm:$0xf] %vm676, %v1149
        %v1321 = vld [vmem:[%s1216 + $0xb0] sm:$0x1]
        %v1322 = vsel %vm687, %v1150, %v1321
        %1323 = vst [vmem:[%s1216 + $0xb0] sm:$0x1] %v1322
        %v1324 = vld [vmem:[%s1216 + $0xb4] sm:$0xf]
        %v1325 = vsel %vm1218, %v1157, %v1324
        %1326 = vst [vmem:[%s1216 + $0xb4] sm:$0xf] %v1325
        %1327 = vst.msk [vmem:[%s1216 + $0xb8] sm:$0xf] %vm676, %v1166
        %v1328 = vld [vmem:[%s1216 + $0xbc] sm:$0x1]
        %v1329 = vsel %vm687, %v1167, %v1328
        %1330 = vst [vmem:[%s1216 + $0xbc] sm:$0x1] %v1329
        %v1331 = vld [vmem:[#allocation2] sm:$0xf]
        %v1332 = vld [vmem:[#allocation2 + $0x4] sm:$0xf]
        %v1333 = vld [vmem:[#allocation2 + $0xc] sm:$0xf]
        %v1334 = vld [vmem:[#allocation2 + $0x10] sm:$0xf]
        %v1335 = vld [vmem:[#allocation2 + $0x18] sm:$0xf]
        %v1336 = vld [vmem:[#allocation2 + $0x1c] sm:$0xf]
        %v1337 = vld [vmem:[#allocation2 + $0x24] sm:$0xf]
        %v1338 = vld [vmem:[#allocation2 + $0x28] sm:$0xf]
        %v1339 = vld [vmem:[#allocation2 + $0x30] sm:$0xf]
        %v1340 = vld [vmem:[#allocation2 + $0x34] sm:$0xf]
        %v1341 = vld [vmem:[#allocation2 + $0x3c] sm:$0xf]
        %v1342 = vld [vmem:[#allocation2 + $0x40] sm:$0xf]
        %v1343 = vld [vmem:[#allocation2 + $0x48] sm:$0xf]
        %v1344 = vld [vmem:[#allocation2 + $0x4c] sm:$0xf]
        %v1345 = vld [vmem:[#allocation2 + $0x54] sm:$0xf]
        %v1346 = vld [vmem:[#allocation2 + $0x58] sm:$0xf]
        %v1347 = vld [vmem:[#allocation2 + $0x60] sm:$0xf]
        %v1348 = vld [vmem:[#allocation2 + $0x64] sm:$0xf]
        %v1349 = vld [vmem:[#allocation2 + $0x6c] sm:$0xf]
        %v1350 = vld [vmem:[#allocation2 + $0x70] sm:$0xf]
        %v1351 = vld [vmem:[#allocation2 + $0x78] sm:$0xf]
        %v1352 = vld [vmem:[#allocation2 + $0x7c] sm:$0xf]
        %v1353 = vld [vmem:[#allocation2 + $0x84] sm:$0xf]
        %v1354 = vld [vmem:[#allocation2 + $0x88] sm:$0xf]
        %v1355 = vld [vmem:[#allocation2 + $0x90] sm:$0xf]
        %v1356 = vld [vmem:[#allocation2 + $0x94] sm:$0xf]
        %v1357 = vld [vmem:[#allocation2 + $0x9c] sm:$0xf]
        %v1358 = vld [vmem:[#allocation2 + $0xa0] sm:$0xf]
        %v1359 = vld [vmem:[#allocation2 + $0xa8] sm:$0xf]
        %v1360 = vld [vmem:[#allocation2 + $0xac] sm:$0xf]
        %v1361 = vld [vmem:[#allocation2 + $0xb4] sm:$0xf]
        %v1362 = vld [vmem:[#allocation2 + $0xb8] sm:$0xf]
        %1363 = vst.msk [vmem:[#allocation3] sm:$0xf] %vm676, %v1331
        %1364 = vst.msk [vmem:[#allocation3 + $0x4] sm:$0xf] %vm676, %v1332
        %1365 = vst.msk [vmem:[#allocation3 + $0x8] sm:$0xf] %vm676, %v1333
        %1366 = vst.msk [vmem:[#allocation3 + $0xc] sm:$0xf] %vm676, %v1334
        %1367 = vst.msk [vmem:[#allocation3 + $0x10] sm:$0xf] %vm676, %v1335
        %1368 = vst.msk [vmem:[#allocation3 + $0x14] sm:$0xf] %vm676, %v1336
        %1369 = vst.msk [vmem:[#allocation3 + $0x18] sm:$0xf] %vm676, %v1337
        %1370 = vst.msk [vmem:[#allocation3 + $0x1c] sm:$0xf] %vm676, %v1338
        %1371 = vst.msk [vmem:[#allocation3 + $0x20] sm:$0xf] %vm676, %v1339
        %1372 = vst.msk [vmem:[#allocation3 + $0x24] sm:$0xf] %vm676, %v1340
        %1373 = vst.msk [vmem:[#allocation3 + $0x28] sm:$0xf] %vm676, %v1341
        %1374 = vst.msk [vmem:[#allocation3 + $0x2c] sm:$0xf] %vm676, %v1342
        %1375 = vst.msk [vmem:[#allocation3 + $0x30] sm:$0xf] %vm676, %v1343
        %1376 = vst.msk [vmem:[#allocation3 + $0x34] sm:$0xf] %vm676, %v1344
        %1377 = vst.msk [vmem:[#allocation3 + $0x38] sm:$0xf] %vm676, %v1345
        %1378 = vst.msk [vmem:[#allocation3 + $0x3c] sm:$0xf] %vm676, %v1346
        %1379 = vst.msk [vmem:[#allocation3 + $0x40] sm:$0xf] %vm676, %v1347
        %1380 = vst.msk [vmem:[#allocation3 + $0x44] sm:$0xf] %vm676, %v1348
        %1381 = vst.msk [vmem:[#allocation3 + $0x48] sm:$0xf] %vm676, %v1349
        %1382 = vst.msk [vmem:[#allocation3 + $0x4c] sm:$0xf] %vm676, %v1350
        %1383 = vst.msk [vmem:[#allocation3 + $0x50] sm:$0xf] %vm676, %v1351
        %1384 = vst.msk [vmem:[#allocation3 + $0x54] sm:$0xf] %vm676, %v1352
        %1385 = vst.msk [vmem:[#allocation3 + $0x58] sm:$0xf] %vm676, %v1353
        %1386 = vst.msk [vmem:[#allocation3 + $0x5c] sm:$0xf] %vm676, %v1354
        %1387 = vst.msk [vmem:[#allocation3 + $0x60] sm:$0xf] %vm676, %v1355
        %1388 = vst.msk [vmem:[#allocation3 + $0x64] sm:$0xf] %vm676, %v1356
        %1389 = vst.msk [vmem:[#allocation3 + $0x68] sm:$0xf] %vm676, %v1357
        %1390 = vst.msk [vmem:[#allocation3 + $0x6c] sm:$0xf] %vm676, %v1358
        %1391 = vst.msk [vmem:[#allocation3 + $0x70] sm:$0xf] %vm676, %v1359
        %1392 = vst.msk [vmem:[#allocation3 + $0x74] sm:$0xf] %vm676, %v1360
        %1393 = vst.msk [vmem:[#allocation3 + $0x78] sm:$0xf] %vm676, %v1361
        %1394 = vst.msk [vmem:[#allocation3 + $0x7c] sm:$0xf] %vm676, %v1362
        %v1395 = vld [vmem:[#allocation2] sm:$0xf]
        %v1396 = vld [vmem:[#allocation2 + $0x4] sm:$0xf]
        %v1397 = vld [vmem:[#allocation2 + $0x8] sm:$0x1]
        %v1398 = vld [vmem:[#allocation2 + $0xc] sm:$0xf]
        %v1399 = vld [vmem:[#allocation2 + $0x10] sm:$0xf]
        %v1400 = vld [vmem:[#allocation2 + $0x14] sm:$0x1]
        %v1401 = vld [vmem:[#allocation2 + $0x18] sm:$0xf]
        %v1402 = vld [vmem:[#allocation2 + $0x1c] sm:$0xf]
        %v1403 = vld [vmem:[#allocation2 + $0x20] sm:$0x1]
        %v1404 = vld [vmem:[#allocation2 + $0x24] sm:$0xf]
        %v1405 = vld [vmem:[#allocation2 + $0x28] sm:$0xf]
        %v1406 = vld [vmem:[#allocation2 + $0x2c] sm:$0x1]
        %v1407 = vld [vmem:[#allocation2 + $0x30] sm:$0xf]
        %v1408 = vld [vmem:[#allocation2 + $0x34] sm:$0xf]
        %v1409 = vld [vmem:[#allocation2 + $0x38] sm:$0x1]
        %v1410 = vld [vmem:[#allocation2 + $0x3c] sm:$0xf]
        %v1411 = vld [vmem:[#allocation2 + $0x40] sm:$0xf]
        %v1412 = vld [vmem:[#allocation2 + $0x44] sm:$0x1]
        %v1413 = vld [vmem:[#allocation2 + $0x48] sm:$0xf]
        %v1414 = vld [vmem:[#allocation2 + $0x4c] sm:$0xf]
        %v1415 = vld [vmem:[#allocation2 + $0x50] sm:$0x1]
        %v1416 = vld [vmem:[#allocation2 + $0x54] sm:$0xf]
        %v1417 = vld [vmem:[#allocation2 + $0x58] sm:$0xf]
        %v1418 = vld [vmem:[#allocation2 + $0x5c] sm:$0x1]
        %v1419 = vld [vmem:[#allocation2 + $0x60] sm:$0xf]
        %v1420 = vld [vmem:[#allocation2 + $0x64] sm:$0xf]
        %v1421 = vld [vmem:[#allocation2 + $0x68] sm:$0x1]
        %v1422 = vld [vmem:[#allocation2 + $0x6c] sm:$0xf]
        %v1423 = vld [vmem:[#allocation2 + $0x70] sm:$0xf]
        %v1424 = vld [vmem:[#allocation2 + $0x74] sm:$0x1]
        %v1425 = vld [vmem:[#allocation2 + $0x78] sm:$0xf]
        %v1426 = vld [vmem:[#allocation2 + $0x7c] sm:$0xf]
        %v1427 = vld [vmem:[#allocation2 + $0x80] sm:$0x1]
        %v1428 = vld [vmem:[#allocation2 + $0x84] sm:$0xf]
        %v1429 = vld [vmem:[#allocation2 + $0x88] sm:$0xf]
        %v1430 = vld [vmem:[#allocation2 + $0x8c] sm:$0x1]
        %v1431 = vld [vmem:[#allocation2 + $0x90] sm:$0xf]
        %v1432 = vld [vmem:[#allocation2 + $0x94] sm:$0xf]
        %v1433 = vld [vmem:[#allocation2 + $0x98] sm:$0x1]
        %v1434 = vld [vmem:[#allocation2 + $0x9c] sm:$0xf]
        %v1435 = vld [vmem:[#allocation2 + $0xa0] sm:$0xf]
        %v1436 = vld [vmem:[#allocation2 + $0xa4] sm:$0x1]
        %v1437 = vld [vmem:[#allocation2 + $0xa8] sm:$0xf]
        %v1438 = vld [vmem:[#allocation2 + $0xac] sm:$0xf]
        %v1439 = vld [vmem:[#allocation2 + $0xb0] sm:$0x1]
        %v1440 = vld [vmem:[#allocation2 + $0xb4] sm:$0xf]
        %v1441 = vld [vmem:[#allocation2 + $0xb8] sm:$0xf]
        %v1442 = vld [vmem:[#allocation2 + $0xbc] sm:$0x1]
        %vm1443 = vsmask.f32 3328
        %vm1444 = vsmask.f32 7440
        %vm1445 = vmor %vm1443, %vm1444
        %v1447 = vshrl.u32 %v1395, 16
        %v1449 = vrot.slane %v1447, 4
        %v1450 = vshll.u32 %v1395, 16
        %v1452 = vrot.slane %v1450, 5
        %v1453 = vor.u32 %v1449, %v1452
        %v1454 = vrot.slane %v1453, 4
        %v1456 = vshll.u32 %v1396, 16
        %v1458 = vrot.slane %v1456, 5
        %v1459 = vsel %vm1445, %v1454, %v1458
        %v1460 = vshrl.u32 %v1396, 16
        %v1462 = vrot.slane %v1460, 4
        %v1463 = vor.u32 %v1462, %v1458
        %v1464 = vrot.slane %v1463, 4
        %v1466 = vshll.u32 %v1397, 16
        %v1468 = vrot.slane %v1466, 5
        %v1469 = vsel %vm1445, %v1464, %v1468
        %v1471 = vshrl.u32 %v1398, 16
        %v1473 = vrot.slane %v1471, 4
        %v1474 = vshll.u32 %v1398, 16
        %v1476 = vrot.slane %v1474, 5
        %v1477 = vor.u32 %v1473, %v1476
        %v1478 = vrot.slane %v1477, 4
        %v1480 = vshll.u32 %v1399, 16
        %v1482 = vrot.slane %v1480, 5
        %v1483 = vsel %vm1445, %v1478, %v1482
        %v1484 = vshrl.u32 %v1399, 16
        %v1486 = vrot.slane %v1484, 4
        %v1487 = vor.u32 %v1486, %v1482
        %v1488 = vrot.slane %v1487, 4
        %v1490 = vshll.u32 %v1400, 16
        %v1492 = vrot.slane %v1490, 5
        %v1493 = vsel %vm1445, %v1488, %v1492
        %v1495 = vshrl.u32 %v1401, 16
        %v1497 = vrot.slane %v1495, 4
        %v1498 = vshll.u32 %v1401, 16
        %v1500 = vrot.slane %v1498, 5
        %v1501 = vor.u32 %v1497, %v1500
        %v1502 = vrot.slane %v1501, 4
        %v1504 = vshll.u32 %v1402, 16
        %v1506 = vrot.slane %v1504, 5
        %v1507 = vsel %vm1445, %v1502, %v1506
        %v1508 = vshrl.u32 %v1402, 16
        %v1510 = vrot.slane %v1508, 4
        %v1511 = vor.u32 %v1510, %v1506
        %v1512 = vrot.slane %v1511, 4
        %v1514 = vshll.u32 %v1403, 16
        %v1516 = vrot.slane %v1514, 5
        %v1517 = vsel %vm1445, %v1512, %v1516
        %v1519 = vshrl.u32 %v1404, 16
        %v1521 = vrot.slane %v1519, 4
        %v1522 = vshll.u32 %v1404, 16
        %v1524 = vrot.slane %v1522, 5
        %v1525 = vor.u32 %v1521, %v1524
        %v1526 = vrot.slane %v1525, 4
        %v1528 = vshll.u32 %v1405, 16
        %v1530 = vrot.slane %v1528, 5
        %v1531 = vsel %vm1445, %v1526, %v1530
        %v1532 = vshrl.u32 %v1405, 16
        %v1534 = vrot.slane %v1532, 4
        %v1535 = vor.u32 %v1534, %v1530
        %v1536 = vrot.slane %v1535, 4
        %v1538 = vshll.u32 %v1406, 16
        %v1540 = vrot.slane %v1538, 5
        %v1541 = vsel %vm1445, %v1536, %v1540
        %v1543 = vshrl.u32 %v1407, 16
        %v1545 = vrot.slane %v1543, 4
        %v1546 = vshll.u32 %v1407, 16
        %v1548 = vrot.slane %v1546, 5
        %v1549 = vor.u32 %v1545, %v1548
        %v1550 = vrot.slane %v1549, 4
        %v1552 = vshll.u32 %v1408, 16
        %v1554 = vrot.slane %v1552, 5
        %v1555 = vsel %vm1445, %v1550, %v1554
        %v1556 = vshrl.u32 %v1408, 16
        %v1558 = vrot.slane %v1556, 4
        %v1559 = vor.u32 %v1558, %v1554
        %v1560 = vrot.slane %v1559, 4
        %v1562 = vshll.u32 %v1409, 16
        %v1564 = vrot.slane %v1562, 5
        %v1565 = vsel %vm1445, %v1560, %v1564
        %v1567 = vshrl.u32 %v1410, 16
        %v1569 = vrot.slane %v1567, 4
        %v1570 = vshll.u32 %v1410, 16
        %v1572 = vrot.slane %v1570, 5
        %v1573 = vor.u32 %v1569, %v1572
        %v1574 = vrot.slane %v1573, 4
        %v1576 = vshll.u32 %v1411, 16
        %v1578 = vrot.slane %v1576, 5
        %v1579 = vsel %vm1445, %v1574, %v1578
        %v1580 = vshrl.u32 %v1411, 16
        %v1582 = vrot.slane %v1580, 4
        %v1583 = vor.u32 %v1582, %v1578
        %v1584 = vrot.slane %v1583, 4
        %v1586 = vshll.u32 %v1412, 16
        %v1588 = vrot.slane %v1586, 5
        %v1589 = vsel %vm1445, %v1584, %v1588
        %v1591 = vshrl.u32 %v1413, 16
        %v1593 = vrot.slane %v1591, 4
        %v1594 = vshll.u32 %v1413, 16
        %v1596 = vrot.slane %v1594, 5
        %v1597 = vor.u32 %v1593, %v1596
        %v1598 = vrot.slane %v1597, 4
        %v1600 = vshll.u32 %v1414, 16
        %v1602 = vrot.slane %v1600, 5
        %v1603 = vsel %vm1445, %v1598, %v1602
        %v1604 = vshrl.u32 %v1414, 16
        %v1606 = vrot.slane %v1604, 4
        %v1607 = vor.u32 %v1606, %v1602
        %v1608 = vrot.slane %v1607, 4
        %v1610 = vshll.u32 %v1415, 16
        %v1612 = vrot.slane %v1610, 5
        %v1613 = vsel %vm1445, %v1608, %v1612
        %v1615 = vshrl.u32 %v1416, 16
        %v1617 = vrot.slane %v1615, 4
        %v1618 = vshll.u32 %v1416, 16
        %v1620 = vrot.slane %v1618, 5
        %v1621 = vor.u32 %v1617, %v1620
        %v1622 = vrot.slane %v1621, 4
        %v1624 = vshll.u32 %v1417, 16
        %v1626 = vrot.slane %v1624, 5
        %v1627 = vsel %vm1445, %v1622, %v1626
        %v1628 = vshrl.u32 %v1417, 16
        %v1630 = vrot.slane %v1628, 4
        %v1631 = vor.u32 %v1630, %v1626
        %v1632 = vrot.slane %v1631, 4
        %v1634 = vshll.u32 %v1418, 16
        %v1636 = vrot.slane %v1634, 5
        %v1637 = vsel %vm1445, %v1632, %v1636
        %v1639 = vshrl.u32 %v1419, 16
        %v1641 = vrot.slane %v1639, 4
        %v1642 = vshll.u32 %v1419, 16
        %v1644 = vrot.slane %v1642, 5
        %v1645 = vor.u32 %v1641, %v1644
        %v1646 = vrot.slane %v1645, 4
        %v1648 = vshll.u32 %v1420, 16
        %v1650 = vrot.slane %v1648, 5
        %v1651 = vsel %vm1445, %v1646, %v1650
        %v1652 = vshrl.u32 %v1420, 16
        %v1654 = vrot.slane %v1652, 4
        %v1655 = vor.u32 %v1654, %v1650
        %v1656 = vrot.slane %v1655, 4
        %v1658 = vshll.u32 %v1421, 16
        %v1660 = vrot.slane %v1658, 5
        %v1661 = vsel %vm1445, %v1656, %v1660
        %v1663 = vshrl.u32 %v1422, 16
        %v1665 = vrot.slane %v1663, 4
        %v1666 = vshll.u32 %v1422, 16
        %v1668 = vrot.slane %v1666, 5
        %v1669 = vor.u32 %v1665, %v1668
        %v1670 = vrot.slane %v1669, 4
        %v1672 = vshll.u32 %v1423, 16
        %v1674 = vrot.slane %v1672, 5
        %v1675 = vsel %vm1445, %v1670, %v1674
        %v1676 = vshrl.u32 %v1423, 16
        %v1678 = vrot.slane %v1676, 4
        %v1679 = vor.u32 %v1678, %v1674
        %v1680 = vrot.slane %v1679, 4
        %v1682 = vshll.u32 %v1424, 16
        %v1684 = vrot.slane %v1682, 5
        %v1685 = vsel %vm1445, %v1680, %v1684
        %v1687 = vshrl.u32 %v1425, 16
        %v1689 = vrot.slane %v1687, 4
        %v1690 = vshll.u32 %v1425, 16
        %v1692 = vrot.slane %v1690, 5
        %v1693 = vor.u32 %v1689, %v1692
        %v1694 = vrot.slane %v1693, 4
        %v1696 = vshll.u32 %v1426, 16
        %v1698 = vrot.slane %v1696, 5
        %v1699 = vsel %vm1445, %v1694, %v1698
        %v1700 = vshrl.u32 %v1426, 16
        %v1702 = vrot.slane %v1700, 4
        %v1703 = vor.u32 %v1702, %v1698
        %v1704 = vrot.slane %v1703, 4
        %v1706 = vshll.u32 %v1427, 16
        %v1708 = vrot.slane %v1706, 5
        %v1709 = vsel %vm1445, %v1704, %v1708
        %v1711 = vshrl.u32 %v1428, 16
        %v1713 = vrot.slane %v1711, 4
        %v1714 = vshll.u32 %v1428, 16
        %v1716 = vrot.slane %v1714, 5
        %v1717 = vor.u32 %v1713, %v1716
        %v1718 = vrot.slane %v1717, 4
        %v1720 = vshll.u32 %v1429, 16
        %v1722 = vrot.slane %v1720, 5
        %v1723 = vsel %vm1445, %v1718, %v1722
        %v1724 = vshrl.u32 %v1429, 16
        %v1726 = vrot.slane %v1724, 4
        %v1727 = vor.u32 %v1726, %v1722
        %v1728 = vrot.slane %v1727, 4
        %v1730 = vshll.u32 %v1430, 16
        %v1732 = vrot.slane %v1730, 5
        %v1733 = vsel %vm1445, %v1728, %v1732
        %v1735 = vshrl.u32 %v1431, 16
        %v1737 = vrot.slane %v1735, 4
        %v1738 = vshll.u32 %v1431, 16
        %v1740 = vrot.slane %v1738, 5
        %v1741 = vor.u32 %v1737, %v1740
        %v1742 = vrot.slane %v1741, 4
        %v1744 = vshll.u32 %v1432, 16
        %v1746 = vrot.slane %v1744, 5
        %v1747 = vsel %vm1445, %v1742, %v1746
        %v1748 = vshrl.u32 %v1432, 16
        %v1750 = vrot.slane %v1748, 4
        %v1751 = vor.u32 %v1750, %v1746
        %v1752 = vrot.slane %v1751, 4
        %v1754 = vshll.u32 %v1433, 16
        %v1756 = vrot.slane %v1754, 5
        %v1757 = vsel %vm1445, %v1752, %v1756
        %v1759 = vshrl.u32 %v1434, 16
        %v1761 = vrot.slane %v1759, 4
        %v1762 = vshll.u32 %v1434, 16
        %v1764 = vrot.slane %v1762, 5
        %v1765 = vor.u32 %v1761, %v1764
        %v1766 = vrot.slane %v1765, 4
        %v1768 = vshll.u32 %v1435, 16
        %v1770 = vrot.slane %v1768, 5
        %v1771 = vsel %vm1445, %v1766, %v1770
        %v1772 = vshrl.u32 %v1435, 16
        %v1774 = vrot.slane %v1772, 4
        %v1775 = vor.u32 %v1774, %v1770
        %v1776 = vrot.slane %v1775, 4
        %v1778 = vshll.u32 %v1436, 16
        %v1780 = vrot.slane %v1778, 5
        %v1781 = vsel %vm1445, %v1776, %v1780
        %v1783 = vshrl.u32 %v1437, 16
        %v1785 = vrot.slane %v1783, 4
        %v1786 = vshll.u32 %v1437, 16
        %v1788 = vrot.slane %v1786, 5
        %v1789 = vor.u32 %v1785, %v1788
        %v1790 = vrot.slane %v1789, 4
        %v1792 = vshll.u32 %v1438, 16
        %v1794 = vrot.slane %v1792, 5
        %v1795 = vsel %vm1445, %v1790, %v1794
        %v1796 = vshrl.u32 %v1438, 16
        %v1798 = vrot.slane %v1796, 4
        %v1799 = vor.u32 %v1798, %v1794
        %v1800 = vrot.slane %v1799, 4
        %v1802 = vshll.u32 %v1439, 16
        %v1804 = vrot.slane %v1802, 5
        %v1805 = vsel %vm1445, %v1800, %v1804
        %v1807 = vshrl.u32 %v1440, 16
        %v1809 = vrot.slane %v1807, 4
        %v1810 = vshll.u32 %v1440, 16
        %v1812 = vrot.slane %v1810, 5
        %v1813 = vor.u32 %v1809, %v1812
        %v1814 = vrot.slane %v1813, 4
        %v1816 = vshll.u32 %v1441, 16
        %v1818 = vrot.slane %v1816, 5
        %v1819 = vsel %vm1445, %v1814, %v1818
        %v1820 = vshrl.u32 %v1441, 16
        %v1822 = vrot.slane %v1820, 4
        %v1823 = vor.u32 %v1822, %v1818
        %v1824 = vrot.slane %v1823, 4
        %v1826 = vshll.u32 %v1442, 16
        %v1828 = vrot.slane %v1826, 5
        %v1829 = vsel %vm1445, %v1824, %v1828
        %1830 = vrot.lane.b32.xlu0 %v1459, 8
        %v1831 = vpop.permute.xlu0 %1830
        %1832 = vrot.lane.b32.xlu0 %v1469, 8
        %v1833 = vpop.permute.xlu0 %1832
        %1834 = vrot.lane.b32.xlu0 %v1483, 8
        %v1835 = vpop.permute.xlu0 %1834
        %1836 = vrot.lane.b32.xlu0 %v1493, 8
        %v1837 = vpop.permute.xlu0 %1836
        %1838 = vrot.lane.b32.xlu0 %v1507, 8
        %v1839 = vpop.permute.xlu0 %1838
        %1840 = vrot.lane.b32.xlu0 %v1517, 8
        %v1841 = vpop.permute.xlu0 %1840
        %1842 = vrot.lane.b32.xlu0 %v1531, 8
        %v1843 = vpop.permute.xlu0 %1842
        %1844 = vrot.lane.b32.xlu0 %v1541, 8
        %v1845 = vpop.permute.xlu0 %1844
        %1846 = vrot.lane.b32.xlu0 %v1555, 8
        %v1847 = vpop.permute.xlu0 %1846
        %1848 = vrot.lane.b32.xlu0 %v1565, 8
        %v1849 = vpop.permute.xlu0 %1848
        %1850 = vrot.lane.b32.xlu0 %v1579, 8
        %v1851 = vpop.permute.xlu0 %1850
        %1852 = vrot.lane.b32.xlu0 %v1589, 8
        %v1853 = vpop.permute.xlu0 %1852
        %1854 = vrot.lane.b32.xlu0 %v1603, 8
        %v1855 = vpop.permute.xlu0 %1854
        %1856 = vrot.lane.b32.xlu0 %v1613, 8
        %v1857 = vpop.permute.xlu0 %1856
        %1858 = vrot.lane.b32.xlu0 %v1627, 8
        %v1859 = vpop.permute.xlu0 %1858
        %1860 = vrot.lane.b32.xlu0 %v1637, 8
        %v1861 = vpop.permute.xlu0 %1860
        %1862 = vrot.lane.b32.xlu0 %v1651, 8
        %v1863 = vpop.permute.xlu0 %1862
        %1864 = vrot.lane.b32.xlu0 %v1661, 8
        %v1865 = vpop.permute.xlu0 %1864
        %1866 = vrot.lane.b32.xlu0 %v1675, 8
        %v1867 = vpop.permute.xlu0 %1866
        %1868 = vrot.lane.b32.xlu0 %v1685, 8
        %v1869 = vpop.permute.xlu0 %1868
        %1870 = vrot.lane.b32.xlu0 %v1699, 8
        %v1871 = vpop.permute.xlu0 %1870
        %1872 = vrot.lane.b32.xlu0 %v1709, 8
        %v1873 = vpop.permute.xlu0 %1872
        %1874 = vrot.lane.b32.xlu0 %v1723, 8
        %v1875 = vpop.permute.xlu0 %1874
        %1876 = vrot.lane.b32.xlu0 %v1733, 8
        %v1877 = vpop.permute.xlu0 %1876
        %1878 = vrot.lane.b32.xlu0 %v1747, 8
        %v1879 = vpop.permute.xlu0 %1878
        %1880 = vrot.lane.b32.xlu0 %v1757, 8
        %v1881 = vpop.permute.xlu0 %1880
        %1882 = vrot.lane.b32.xlu0 %v1771, 8
        %v1883 = vpop.permute.xlu0 %1882
        %1884 = vrot.lane.b32.xlu0 %v1781, 8
        %v1885 = vpop.permute.xlu0 %1884
        %1886 = vrot.lane.b32.xlu0 %v1795, 8
        %v1887 = vpop.permute.xlu0 %1886
        %1888 = vrot.lane.b32.xlu0 %v1805, 8
        %v1889 = vpop.permute.xlu0 %1888
        %1890 = vrot.lane.b32.xlu0 %v1819, 8
        %v1891 = vpop.permute.xlu0 %1890
        %1892 = vrot.lane.b32.xlu0 %v1829, 8
        %v1893 = vpop.permute.xlu0 %1892
        %vm1926 = vcmask 126016
        %1927 = vst.msk [vmem:[#allocation3] sm:$0xf] %vm1926, %v1831
        %1928 = vst.msk [vmem:[#allocation3 + $0x4] sm:$0xf] %vm1926, %v1833
        %1929 = vst.msk [vmem:[#allocation3 + $0x8] sm:$0xf] %vm1926, %v1835
        %1930 = vst.msk [vmem:[#allocation3 + $0xc] sm:$0xf] %vm1926, %v1837
        %1931 = vst.msk [vmem:[#allocation3 + $0x10] sm:$0xf] %vm1926, %v1839
        %1932 = vst.msk [vmem:[#allocation3 + $0x14] sm:$0xf] %vm1926, %v1841
        %1933 = vst.msk [vmem:[#allocation3 + $0x18] sm:$0xf] %vm1926, %v1843
        %1934 = vst.msk [vmem:[#allocation3 + $0x1c] sm:$0xf] %vm1926, %v1845
        %1935 = vst.msk [vmem:[#allocation3 + $0x20] sm:$0xf] %vm1926, %v1847
        %1936 = vst.msk [vmem:[#allocation3 + $0x24] sm:$0xf] %vm1926, %v1849
        %1937 = vst.msk [vmem:[#allocation3 + $0x28] sm:$0xf] %vm1926, %v1851
        %1938 = vst.msk [vmem:[#allocation3 + $0x2c] sm:$0xf] %vm1926, %v1853
        %1939 = vst.msk [vmem:[#allocation3 + $0x30] sm:$0xf] %vm1926, %v1855
        %1940 = vst.msk [vmem:[#allocation3 + $0x34] sm:$0xf] %vm1926, %v1857
        %1941 = vst.msk [vmem:[#allocation3 + $0x38] sm:$0xf] %vm1926, %v1859
        %1942 = vst.msk [vmem:[#allocation3 + $0x3c] sm:$0xf] %vm1926, %v1861
        %1943 = vst.msk [vmem:[#allocation3 + $0x40] sm:$0xf] %vm1926, %v1863
        %1944 = vst.msk [vmem:[#allocation3 + $0x44] sm:$0xf] %vm1926, %v1865
        %1945 = vst.msk [vmem:[#allocation3 + $0x48] sm:$0xf] %vm1926, %v1867
        %1946 = vst.msk [vmem:[#allocation3 + $0x4c] sm:$0xf] %vm1926, %v1869
        %1947 = vst.msk [vmem:[#allocation3 + $0x50] sm:$0xf] %vm1926, %v1871
        %1948 = vst.msk [vmem:[#allocation3 + $0x54] sm:$0xf] %vm1926, %v1873
        %1949 = vst.msk [vmem:[#allocation3 + $0x58] sm:$0xf] %vm1926, %v1875
        %1950 = vst.msk [vmem:[#allocation3 + $0x5c] sm:$0xf] %vm1926, %v1877
        %1951 = vst.msk [vmem:[#allocation3 + $0x60] sm:$0xf] %vm1926, %v1879
        %1952 = vst.msk [vmem:[#allocation3 + $0x64] sm:$0xf] %vm1926, %v1881
        %1953 = vst.msk [vmem:[#allocation3 + $0x68] sm:$0xf] %vm1926, %v1883
        %1954 = vst.msk [vmem:[#allocation3 + $0x6c] sm:$0xf] %vm1926, %v1885
        %1955 = vst.msk [vmem:[#allocation3 + $0x70] sm:$0xf] %vm1926, %v1887
        %1956 = vst.msk [vmem:[#allocation3 + $0x74] sm:$0xf] %vm1926, %v1889
        %1957 = vst.msk [vmem:[#allocation3 + $0x78] sm:$0xf] %vm1926, %v1891
        %1958 = vst.msk [vmem:[#allocation3 + $0x7c] sm:$0xf] %vm1926, %v1893
        %v1959 = vld [vmem:[#allocation2] sm:$0xe]
        %v1960 = vld [vmem:[#allocation2 + $0x4] sm:$0xf]
        %v1961 = vld [vmem:[#allocation2 + $0x8] sm:$0x1]
        %v1962 = vld [vmem:[#allocation2 + $0xc] sm:$0xe]
        %v1963 = vld [vmem:[#allocation2 + $0x10] sm:$0xf]
        %v1964 = vld [vmem:[#allocation2 + $0x14] sm:$0x1]
        %v1965 = vld [vmem:[#allocation2 + $0x18] sm:$0xe]
        %v1966 = vld [vmem:[#allocation2 + $0x1c] sm:$0xf]
        %v1967 = vld [vmem:[#allocation2 + $0x20] sm:$0x1]
        %v1968 = vld [vmem:[#allocation2 + $0x24] sm:$0xe]
        %v1969 = vld [vmem:[#allocation2 + $0x28] sm:$0xf]
        %v1970 = vld [vmem:[#allocation2 + $0x2c] sm:$0x1]
        %v1971 = vld [vmem:[#allocation2 + $0x30] sm:$0xe]
        %v1972 = vld [vmem:[#allocation2 + $0x34] sm:$0xf]
        %v1973 = vld [vmem:[#allocation2 + $0x38] sm:$0x1]
        %v1974 = vld [vmem:[#allocation2 + $0x3c] sm:$0xe]
        %v1975 = vld [vmem:[#allocation2 + $0x40] sm:$0xf]
        %v1976 = vld [vmem:[#allocation2 + $0x44] sm:$0x1]
        %v1977 = vld [vmem:[#allocation2 + $0x48] sm:$0xe]
        %v1978 = vld [vmem:[#allocation2 + $0x4c] sm:$0xf]
        %v1979 = vld [vmem:[#allocation2 + $0x50] sm:$0x1]
        %v1980 = vld [vmem:[#allocation2 + $0x54] sm:$0xe]
        %v1981 = vld [vmem:[#allocation2 + $0x58] sm:$0xf]
        %v1982 = vld [vmem:[#allocation2 + $0x5c] sm:$0x1]
        %v1983 = vld [vmem:[#allocation2 + $0x60] sm:$0xe]
        %v1984 = vld [vmem:[#allocation2 + $0x64] sm:$0xf]
        %v1985 = vld [vmem:[#allocation2 + $0x68] sm:$0x1]
        %v1986 = vld [vmem:[#allocation2 + $0x6c] sm:$0xe]
        %v1987 = vld [vmem:[#allocation2 + $0x70] sm:$0xf]
        %v1988 = vld [vmem:[#allocation2 + $0x74] sm:$0x1]
        %v1989 = vld [vmem:[#allocation2 + $0x78] sm:$0xe]
        %v1990 = vld [vmem:[#allocation2 + $0x7c] sm:$0xf]
        %v1991 = vld [vmem:[#allocation2 + $0x80] sm:$0x1]
        %v1992 = vld [vmem:[#allocation2 + $0x84] sm:$0xe]
        %v1993 = vld [vmem:[#allocation2 + $0x88] sm:$0xf]
        %v1994 = vld [vmem:[#allocation2 + $0x8c] sm:$0x1]
        %v1995 = vld [vmem:[#allocation2 + $0x90] sm:$0xe]
        %v1996 = vld [vmem:[#allocation2 + $0x94] sm:$0xf]
        %v1997 = vld [vmem:[#allocation2 + $0x98] sm:$0x1]
        %v1998 = vld [vmem:[#allocation2 + $0x9c] sm:$0xe]
        %v1999 = vld [vmem:[#allocation2 + $0xa0] sm:$0xf]
        %v2000 = vld [vmem:[#allocation2 + $0xa4] sm:$0x1]
        %v2001 = vld [vmem:[#allocation2 + $0xa8] sm:$0xe]
        %v2002 = vld [vmem:[#allocation2 + $0xac] sm:$0xf]
        %v2003 = vld [vmem:[#allocation2 + $0xb0] sm:$0x1]
        %v2004 = vld [vmem:[#allocation2 + $0xb4] sm:$0xe]
        %v2005 = vld [vmem:[#allocation2 + $0xb8] sm:$0xf]
        %v2006 = vld [vmem:[#allocation2 + $0xbc] sm:$0x1]
        %vm2055 = vcmask 1042432
        %vm2056 = vcmask 1046532
        %vm2057 = vmor %vm2055, %vm2056
        %v2058 = vrot.slane %v1959, 5
        %v2059 = vrot.slane %v2058, 4
        %v2060 = vrot.slane %v1960, 5
        %v2061 = vsel %vm2057, %v2059, %v2060
        %v2062 = vrot.slane %v2060, 4
        %v2063 = vrot.slane %v1961, 5
        %v2064 = vsel %vm2057, %v2062, %v2063
        %v2065 = vrot.slane %v1962, 5
        %v2066 = vrot.slane %v2065, 4
        %v2067 = vrot.slane %v1963, 5
        %v2068 = vsel %vm2057, %v2066, %v2067
        %v2069 = vrot.slane %v2067, 4
        %v2070 = vrot.slane %v1964, 5
        %v2071 = vsel %vm2057, %v2069, %v2070
        %v2072 = vrot.slane %v1965, 5
        %v2073 = vrot.slane %v2072, 4
        %v2074 = vrot.slane %v1966, 5
        %v2075 = vsel %vm2057, %v2073, %v2074
        %v2076 = vrot.slane %v2074, 4
        %v2077 = vrot.slane %v1967, 5
        %v2078 = vsel %vm2057, %v2076, %v2077
        %v2079 = vrot.slane %v1968, 5
        %v2080 = vrot.slane %v2079, 4
        %v2081 = vrot.slane %v1969, 5
        %v2082 = vsel %vm2057, %v2080, %v2081
        %v2083 = vrot.slane %v2081, 4
        %v2084 = vrot.slane %v1970, 5
        %v2085 = vsel %vm2057, %v2083, %v2084
        %v2086 = vrot.slane %v1971, 5
        %v2087 = vrot.slane %v2086, 4
        %v2088 = vrot.slane %v1972, 5
        %v2089 = vsel %vm2057, %v2087, %v2088
        %v2090 = vrot.slane %v2088, 4
        %v2091 = vrot.slane %v1973, 5
        %v2092 = vsel %vm2057, %v2090, %v2091
        %v2093 = vrot.slane %v1974, 5
        %v2094 = vrot.slane %v2093, 4
        %v2095 = vrot.slane %v1975, 5
        %v2096 = vsel %vm2057, %v2094, %v2095
        %v2097 = vrot.slane %v2095, 4
        %v2098 = vrot.slane %v1976, 5
        %v2099 = vsel %vm2057, %v2097, %v2098
        %v2100 = vrot.slane %v1977, 5
        %v2101 = vrot.slane %v2100, 4
        %v2102 = vrot.slane %v1978, 5
        %v2103 = vsel %vm2057, %v2101, %v2102
        %v2104 = vrot.slane %v2102, 4
        %v2105 = vrot.slane %v1979, 5
        %v2106 = vsel %vm2057, %v2104, %v2105
        %v2107 = vrot.slane %v1980, 5
        %v2108 = vrot.slane %v2107, 4
        %v2109 = vrot.slane %v1981, 5
        %v2110 = vsel %vm2057, %v2108, %v2109
        %v2111 = vrot.slane %v2109, 4
        %v2112 = vrot.slane %v1982, 5
        %v2113 = vsel %vm2057, %v2111, %v2112
        %v2114 = vrot.slane %v1983, 5
        %v2115 = vrot.slane %v2114, 4
        %v2116 = vrot.slane %v1984, 5
        %v2117 = vsel %vm2057, %v2115, %v2116
        %v2118 = vrot.slane %v2116, 4
        %v2119 = vrot.slane %v1985, 5
        %v2120 = vsel %vm2057, %v2118, %v2119
        %v2121 = vrot.slane %v1986, 5
        %v2122 = vrot.slane %v2121, 4
        %v2123 = vrot.slane %v1987, 5
        %v2124 = vsel %vm2057, %v2122, %v2123
        %v2125 = vrot.slane %v2123, 4
        %v2126 = vrot.slane %v1988, 5
        %v2127 = vsel %vm2057, %v2125, %v2126
        %v2128 = vrot.slane %v1989, 5
        %v2129 = vrot.slane %v2128, 4
        %v2130 = vrot.slane %v1990, 5
        %v2131 = vsel %vm2057, %v2129, %v2130
        %v2132 = vrot.slane %v2130, 4
        %v2133 = vrot.slane %v1991, 5
        %v2134 = vsel %vm2057, %v2132, %v2133
        %v2135 = vrot.slane %v1992, 5
        %v2136 = vrot.slane %v2135, 4
        %v2137 = vrot.slane %v1993, 5
        %v2138 = vsel %vm2057, %v2136, %v2137
        %v2139 = vrot.slane %v2137, 4
        %v2140 = vrot.slane %v1994, 5
        %v2141 = vsel %vm2057, %v2139, %v2140
        %v2142 = vrot.slane %v1995, 5
        %v2143 = vrot.slane %v2142, 4
        %v2144 = vrot.slane %v1996, 5
        %v2145 = vsel %vm2057, %v2143, %v2144
        %v2146 = vrot.slane %v2144, 4
        %v2147 = vrot.slane %v1997, 5
        %v2148 = vsel %vm2057, %v2146, %v2147
        %v2149 = vrot.slane %v1998, 5
        %v2150 = vrot.slane %v2149, 4
        %v2151 = vrot.slane %v1999, 5
        %v2152 = vsel %vm2057, %v2150, %v2151
        %v2153 = vrot.slane %v2151, 4
        %v2154 = vrot.slane %v2000, 5
        %v2155 = vsel %vm2057, %v2153, %v2154
        %v2156 = vrot.slane %v2001, 5
        %v2157 = vrot.slane %v2156, 4
        %v2158 = vrot.slane %v2002, 5
        %v2159 = vsel %vm2057, %v2157, %v2158
        %v2160 = vrot.slane %v2158, 4
        %v2161 = vrot.slane %v2003, 5
        %v2162 = vsel %vm2057, %v2160, %v2161
        %v2163 = vrot.slane %v2004, 5
        %v2164 = vrot.slane %v2163, 4
        %v2165 = vrot.slane %v2005, 5
        %v2166 = vsel %vm2057, %v2164, %v2165
        %v2167 = vrot.slane %v2165, 4
        %v2168 = vrot.slane %v2006, 5
        %v2169 = vsel %vm2057, %v2167, %v2168
        %2170 = vrot.lane.b32.xlu0 %v2061, 16
        %v2171 = vpop.permute.xlu0 %2170
        %2172 = vrot.lane.b32.xlu0 %v2064, 16
        %v2173 = vpop.permute.xlu0 %2172
        %2174 = vrot.lane.b32.xlu0 %v2068, 16
        %v2175 = vpop.permute.xlu0 %2174
        %2176 = vrot.lane.b32.xlu0 %v2071, 16
        %v2177 = vpop.permute.xlu0 %2176
        %2178 = vrot.lane.b32.xlu0 %v2075, 16
        %v2179 = vpop.permute.xlu0 %2178
        %2180 = vrot.lane.b32.xlu0 %v2078, 16
        %v2181 = vpop.permute.xlu0 %2180
        %2182 = vrot.lane.b32.xlu0 %v2082, 16
        %v2183 = vpop.permute.xlu0 %2182
        %2184 = vrot.lane.b32.xlu0 %v2085, 16
        %v2185 = vpop.permute.xlu0 %2184
        %2186 = vrot.lane.b32.xlu0 %v2089, 16
        %v2187 = vpop.permute.xlu0 %2186
        %2188 = vrot.lane.b32.xlu0 %v2092, 16
        %v2189 = vpop.permute.xlu0 %2188
        %2190 = vrot.lane.b32.xlu0 %v2096, 16
        %v2191 = vpop.permute.xlu0 %2190
        %2192 = vrot.lane.b32.xlu0 %v2099, 16
        %v2193 = vpop.permute.xlu0 %2192
        %2194 = vrot.lane.b32.xlu0 %v2103, 16
        %v2195 = vpop.permute.xlu0 %2194
        %2196 = vrot.lane.b32.xlu0 %v2106, 16
        %v2197 = vpop.permute.xlu0 %2196
        %2198 = vrot.lane.b32.xlu0 %v2110, 16
        %v2199 = vpop.permute.xlu0 %2198
        %2200 = vrot.lane.b32.xlu0 %v2113, 16
        %v2201 = vpop.permute.xlu0 %2200
        %2202 = vrot.lane.b32.xlu0 %v2117, 16
        %v2203 = vpop.permute.xlu0 %2202
        %2204 = vrot.lane.b32.xlu0 %v2120, 16
        %v2205 = vpop.permute.xlu0 %2204
        %2206 = vrot.lane.b32.xlu0 %v2124, 16
        %v2207 = vpop.permute.xlu0 %2206
        %2208 = vrot.lane.b32.xlu0 %v2127, 16
        %v2209 = vpop.permute.xlu0 %2208
        %2210 = vrot.lane.b32.xlu0 %v2131, 16
        %v2211 = vpop.permute.xlu0 %2210
        %2212 = vrot.lane.b32.xlu0 %v2134, 16
        %v2213 = vpop.permute.xlu0 %2212
        %2214 = vrot.lane.b32.xlu0 %v2138, 16
        %v2215 = vpop.permute.xlu0 %2214
        %2216 = vrot.lane.b32.xlu0 %v2141, 16
        %v2217 = vpop.permute.xlu0 %2216
        %2218 = vrot.lane.b32.xlu0 %v2145, 16
        %v2219 = vpop.permute.xlu0 %2218
        %2220 = vrot.lane.b32.xlu0 %v2148, 16
        %v2221 = vpop.permute.xlu0 %2220
        %2222 = vrot.lane.b32.xlu0 %v2152, 16
        %v2223 = vpop.permute.xlu0 %2222
        %2224 = vrot.lane.b32.xlu0 %v2155, 16
        %v2225 = vpop.permute.xlu0 %2224
        %2226 = vrot.lane.b32.xlu0 %v2159, 16
        %v2227 = vpop.permute.xlu0 %2226
        %2228 = vrot.lane.b32.xlu0 %v2162, 16
        %v2229 = vpop.permute.xlu0 %2228
        %2230 = vrot.lane.b32.xlu0 %v2166, 16
        %v2231 = vpop.permute.xlu0 %2230
        %2232 = vrot.lane.b32.xlu0 %v2169, 16
        %v2233 = vpop.permute.xlu0 %2232
        %vm2266 = vcmask 191616
        %2267 = vst.msk [vmem:[#allocation3] sm:$0xf] %vm2266, %v2171
        %2268 = vst.msk [vmem:[#allocation3 + $0x4] sm:$0xf] %vm2266, %v2173
        %2269 = vst.msk [vmem:[#allocation3 + $0x8] sm:$0xf] %vm2266, %v2175
        %2270 = vst.msk [vmem:[#allocation3 + $0xc] sm:$0xf] %vm2266, %v2177
        %2271 = vst.msk [vmem:[#allocation3 + $0x10] sm:$0xf] %vm2266, %v2179
        %2272 = vst.msk [vmem:[#allocation3 + $0x14] sm:$0xf] %vm2266, %v2181
        %2273 = vst.msk [vmem:[#allocation3 + $0x18] sm:$0xf] %vm2266, %v2183
        %2274 = vst.msk [vmem:[#allocation3 + $0x1c] sm:$0xf] %vm2266, %v2185
        %2275 = vst.msk [vmem:[#allocation3 + $0x20] sm:$0xf] %vm2266, %v2187
        %2276 = vst.msk [vmem:[#allocation3 + $0x24] sm:$0xf] %vm2266, %v2189
        %2277 = vst.msk [vmem:[#allocation3 + $0x28] sm:$0xf] %vm2266, %v2191
        %2278 = vst.msk [vmem:[#allocation3 + $0x2c] sm:$0xf] %vm2266, %v2193
        %2279 = vst.msk [vmem:[#allocation3 + $0x30] sm:$0xf] %vm2266, %v2195
        %2280 = vst.msk [vmem:[#allocation3 + $0x34] sm:$0xf] %vm2266, %v2197
        %2281 = vst.msk [vmem:[#allocation3 + $0x38] sm:$0xf] %vm2266, %v2199
        %2282 = vst.msk [vmem:[#allocation3 + $0x3c] sm:$0xf] %vm2266, %v2201
        %2283 = vst.msk [vmem:[#allocation3 + $0x40] sm:$0xf] %vm2266, %v2203
        %2284 = vst.msk [vmem:[#allocation3 + $0x44] sm:$0xf] %vm2266, %v2205
        %2285 = vst.msk [vmem:[#allocation3 + $0x48] sm:$0xf] %vm2266, %v2207
        %2286 = vst.msk [vmem:[#allocation3 + $0x4c] sm:$0xf] %vm2266, %v2209
        %2287 = vst.msk [vmem:[#allocation3 + $0x50] sm:$0xf] %vm2266, %v2211
        %2288 = vst.msk [vmem:[#allocation3 + $0x54] sm:$0xf] %vm2266, %v2213
        %2289 = vst.msk [vmem:[#allocation3 + $0x58] sm:$0xf] %vm2266, %v2215
        %2290 = vst.msk [vmem:[#allocation3 + $0x5c] sm:$0xf] %vm2266, %v2217
        %2291 = vst.msk [vmem:[#allocation3 + $0x60] sm:$0xf] %vm2266, %v2219
        %2292 = vst.msk [vmem:[#allocation3 + $0x64] sm:$0xf] %vm2266, %v2221
        %2293 = vst.msk [vmem:[#allocation3 + $0x68] sm:$0xf] %vm2266, %v2223
        %2294 = vst.msk [vmem:[#allocation3 + $0x6c] sm:$0xf] %vm2266, %v2225
        %2295 = vst.msk [vmem:[#allocation3 + $0x70] sm:$0xf] %vm2266, %v2227
        %2296 = vst.msk [vmem:[#allocation3 + $0x74] sm:$0xf] %vm2266, %v2229
        %2297 = vst.msk [vmem:[#allocation3 + $0x78] sm:$0xf] %vm2266, %v2231
        %2298 = vst.msk [vmem:[#allocation3 + $0x7c] sm:$0xf] %vm2266, %v2233
        %v2299 = vld [vmem:[%s1216] sm:$0xf]
        %v2300 = vld [vmem:[%s1216 + $0x4] sm:$0xf]
        %v2301 = vld [vmem:[%s1216 + $0xc] sm:$0xf]
        %v2302 = vld [vmem:[%s1216 + $0x10] sm:$0xf]
        %v2303 = vld [vmem:[%s1216 + $0x18] sm:$0xf]
        %v2304 = vld [vmem:[%s1216 + $0x1c] sm:$0xf]
        %v2305 = vld [vmem:[%s1216 + $0x24] sm:$0xf]
        %v2306 = vld [vmem:[%s1216 + $0x28] sm:$0xf]
        %v2307 = vld [vmem:[%s1216 + $0x30] sm:$0xf]
        %v2308 = vld [vmem:[%s1216 + $0x34] sm:$0xf]
        %v2309 = vld [vmem:[%s1216 + $0x3c] sm:$0xf]
        %v2310 = vld [vmem:[%s1216 + $0x40] sm:$0xf]
        %v2311 = vld [vmem:[%s1216 + $0x48] sm:$0xf]
        %v2312 = vld [vmem:[%s1216 + $0x4c] sm:$0xf]
        %v2313 = vld [vmem:[%s1216 + $0x54] sm:$0xf]
        %v2314 = vld [vmem:[%s1216 + $0x58] sm:$0xf]
        %v2315 = vld [vmem:[%s1216 + $0x60] sm:$0xf]
        %v2316 = vld [vmem:[%s1216 + $0x64] sm:$0xf]
        %v2317 = vld [vmem:[%s1216 + $0x6c] sm:$0xf]
        %v2318 = vld [vmem:[%s1216 + $0x70] sm:$0xf]
        %v2319 = vld [vmem:[%s1216 + $0x78] sm:$0xf]
        %v2320 = vld [vmem:[%s1216 + $0x7c] sm:$0xf]
        %v2321 = vld [vmem:[%s1216 + $0x84] sm:$0xf]
        %v2322 = vld [vmem:[%s1216 + $0x88] sm:$0xf]
        %v2323 = vld [vmem:[%s1216 + $0x90] sm:$0xf]
        %v2324 = vld [vmem:[%s1216 + $0x94] sm:$0xf]
        %v2325 = vld [vmem:[%s1216 + $0x9c] sm:$0xf]
        %v2326 = vld [vmem:[%s1216 + $0xa0] sm:$0xf]
        %v2327 = vld [vmem:[%s1216 + $0xa8] sm:$0xf]
        %v2328 = vld [vmem:[%s1216 + $0xac] sm:$0xf]
        %v2329 = vld [vmem:[%s1216 + $0xb4] sm:$0xf]
        %v2330 = vld [vmem:[%s1216 + $0xb8] sm:$0xf]
        %2363 = vrot.lane.b32.xlu0 %v2299, 24
        %v2364 = vpop.permute.xlu0 %2363
        %2365 = vrot.lane.b32.xlu0 %v2300, 24
        %v2366 = vpop.permute.xlu0 %2365
        %2367 = vrot.lane.b32.xlu0 %v2301, 24
        %v2368 = vpop.permute.xlu0 %2367
        %2369 = vrot.lane.b32.xlu0 %v2302, 24
        %v2370 = vpop.permute.xlu0 %2369
        %2371 = vrot.lane.b32.xlu0 %v2303, 24
        %v2372 = vpop.permute.xlu0 %2371
        %2373 = vrot.lane.b32.xlu0 %v2304, 24
        %v2374 = vpop.permute.xlu0 %2373
        %2375 = vrot.lane.b32.xlu0 %v2305, 24
        %v2376 = vpop.permute.xlu0 %2375
        %2377 = vrot.lane.b32.xlu0 %v2306, 24
        %v2378 = vpop.permute.xlu0 %2377
        %2379 = vrot.lane.b32.xlu0 %v2307, 24
        %v2380 = vpop.permute.xlu0 %2379
        %2381 = vrot.lane.b32.xlu0 %v2308, 24
        %v2382 = vpop.permute.xlu0 %2381
        %2383 = vrot.lane.b32.xlu0 %v2309, 24
        %v2384 = vpop.permute.xlu0 %2383
        %2385 = vrot.lane.b32.xlu0 %v2310, 24
        %v2386 = vpop.permute.xlu0 %2385
        %2387 = vrot.lane.b32.xlu0 %v2311, 24
        %v2388 = vpop.permute.xlu0 %2387
        %2389 = vrot.lane.b32.xlu0 %v2312, 24
        %v2390 = vpop.permute.xlu0 %2389
        %2391 = vrot.lane.b32.xlu0 %v2313, 24
        %v2392 = vpop.permute.xlu0 %2391
        %2393 = vrot.lane.b32.xlu0 %v2314, 24
        %v2394 = vpop.permute.xlu0 %2393
        %2395 = vrot.lane.b32.xlu0 %v2315, 24
        %v2396 = vpop.permute.xlu0 %2395
        %2397 = vrot.lane.b32.xlu0 %v2316, 24
        %v2398 = vpop.permute.xlu0 %2397
        %2399 = vrot.lane.b32.xlu0 %v2317, 24
        %v2400 = vpop.permute.xlu0 %2399
        %2401 = vrot.lane.b32.xlu0 %v2318, 24
        %v2402 = vpop.permute.xlu0 %2401
        %2403 = vrot.lane.b32.xlu0 %v2319, 24
        %v2404 = vpop.permute.xlu0 %2403
        %2405 = vrot.lane.b32.xlu0 %v2320, 24
        %v2406 = vpop.permute.xlu0 %2405
        %2407 = vrot.lane.b32.xlu0 %v2321, 24
        %v2408 = vpop.permute.xlu0 %2407
        %2409 = vrot.lane.b32.xlu0 %v2322, 24
        %v2410 = vpop.permute.xlu0 %2409
        %2411 = vrot.lane.b32.xlu0 %v2323, 24
        %v2412 = vpop.permute.xlu0 %2411
        %2413 = vrot.lane.b32.xlu0 %v2324, 24
        %v2414 = vpop.permute.xlu0 %2413
        %2415 = vrot.lane.b32.xlu0 %v2325, 24
        %v2416 = vpop.permute.xlu0 %2415
        %2417 = vrot.lane.b32.xlu0 %v2326, 24
        %v2418 = vpop.permute.xlu0 %2417
        %2419 = vrot.lane.b32.xlu0 %v2327, 24
        %v2420 = vpop.permute.xlu0 %2419
        %2421 = vrot.lane.b32.xlu0 %v2328, 24
        %v2422 = vpop.permute.xlu0 %2421
        %2423 = vrot.lane.b32.xlu0 %v2329, 24
        %v2424 = vpop.permute.xlu0 %2423
        %2425 = vrot.lane.b32.xlu0 %v2330, 24
        %v2426 = vpop.permute.xlu0 %2425
        %vm2459 = vcmask 257216
        %2460 = vst.msk [vmem:[#allocation3] sm:$0xf] %vm2459, %v2364
        %2461 = vst.msk [vmem:[#allocation3 + $0x4] sm:$0xf] %vm2459, %v2366
        %2462 = vst.msk [vmem:[#allocation3 + $0x8] sm:$0xf] %vm2459, %v2368
        %2463 = vst.msk [vmem:[#allocation3 + $0xc] sm:$0xf] %vm2459, %v2370
        %2464 = vst.msk [vmem:[#allocation3 + $0x10] sm:$0xf] %vm2459, %v2372
        %2465 = vst.msk [vmem:[#allocation3 + $0x14] sm:$0xf] %vm2459, %v2374
        %2466 = vst.msk [vmem:[#allocation3 + $0x18] sm:$0xf] %vm2459, %v2376
        %2467 = vst.msk [vmem:[#allocation3 + $0x1c] sm:$0xf] %vm2459, %v2378
        %2468 = vst.msk [vmem:[#allocation3 + $0x20] sm:$0xf] %vm2459, %v2380
        %2469 = vst.msk [vmem:[#allocation3 + $0x24] sm:$0xf] %vm2459, %v2382
        %2470 = vst.msk [vmem:[#allocation3 + $0x28] sm:$0xf] %vm2459, %v2384
        %2471 = vst.msk [vmem:[#allocation3 + $0x2c] sm:$0xf] %vm2459, %v2386
        %2472 = vst.msk [vmem:[#allocation3 + $0x30] sm:$0xf] %vm2459, %v2388
        %2473 = vst.msk [vmem:[#allocation3 + $0x34] sm:$0xf] %vm2459, %v2390
        %2474 = vst.msk [vmem:[#allocation3 + $0x38] sm:$0xf] %vm2459, %v2392
        %2475 = vst.msk [vmem:[#allocation3 + $0x3c] sm:$0xf] %vm2459, %v2394
        %2476 = vst.msk [vmem:[#allocation3 + $0x40] sm:$0xf] %vm2459, %v2396
        %2477 = vst.msk [vmem:[#allocation3 + $0x44] sm:$0xf] %vm2459, %v2398
        %2478 = vst.msk [vmem:[#allocation3 + $0x48] sm:$0xf] %vm2459, %v2400
        %2479 = vst.msk [vmem:[#allocation3 + $0x4c] sm:$0xf] %vm2459, %v2402
        %2480 = vst.msk [vmem:[#allocation3 + $0x50] sm:$0xf] %vm2459, %v2404
        %2481 = vst.msk [vmem:[#allocation3 + $0x54] sm:$0xf] %vm2459, %v2406
        %2482 = vst.msk [vmem:[#allocation3 + $0x58] sm:$0xf] %vm2459, %v2408
        %2483 = vst.msk [vmem:[#allocation3 + $0x5c] sm:$0xf] %vm2459, %v2410
        %2484 = vst.msk [vmem:[#allocation3 + $0x60] sm:$0xf] %vm2459, %v2412
        %2485 = vst.msk [vmem:[#allocation3 + $0x64] sm:$0xf] %vm2459, %v2414
        %2486 = vst.msk [vmem:[#allocation3 + $0x68] sm:$0xf] %vm2459, %v2416
        %2487 = vst.msk [vmem:[#allocation3 + $0x6c] sm:$0xf] %vm2459, %v2418
        %2488 = vst.msk [vmem:[#allocation3 + $0x70] sm:$0xf] %vm2459, %v2420
        %2489 = vst.msk [vmem:[#allocation3 + $0x74] sm:$0xf] %vm2459, %v2422
        %2490 = vst.msk [vmem:[#allocation3 + $0x78] sm:$0xf] %vm2459, %v2424
        %2491 = vst.msk [vmem:[#allocation3 + $0x7c] sm:$0xf] %vm2459, %v2426
        %v2492 = vld [vmem:[%s1216] sm:$0xf]
        %v2493 = vld [vmem:[%s1216 + $0x4] sm:$0xf]
        %v2494 = vld [vmem:[%s1216 + $0x8] sm:$0x1]
        %v2495 = vld [vmem:[%s1216 + $0xc] sm:$0xf]
        %v2496 = vld [vmem:[%s1216 + $0x10] sm:$0xf]
        %v2497 = vld [vmem:[%s1216 + $0x14] sm:$0x1]
        %v2498 = vld [vmem:[%s1216 + $0x18] sm:$0xf]
        %v2499 = vld [vmem:[%s1216 + $0x1c] sm:$0xf]
        %v2500 = vld [vmem:[%s1216 + $0x20] sm:$0x1]
        %v2501 = vld [vmem:[%s1216 + $0x24] sm:$0xf]
        %v2502 = vld [vmem:[%s1216 + $0x28] sm:$0xf]
        %v2503 = vld [vmem:[%s1216 + $0x2c] sm:$0x1]
        %v2504 = vld [vmem:[%s1216 + $0x30] sm:$0xf]
        %v2505 = vld [vmem:[%s1216 + $0x34] sm:$0xf]
        %v2506 = vld [vmem:[%s1216 + $0x38] sm:$0x1]
        %v2507 = vld [vmem:[%s1216 + $0x3c] sm:$0xf]
        %v2508 = vld [vmem:[%s1216 + $0x40] sm:$0xf]
        %v2509 = vld [vmem:[%s1216 + $0x44] sm:$0x1]
        %v2510 = vld [vmem:[%s1216 + $0x48] sm:$0xf]
        %v2511 = vld [vmem:[%s1216 + $0x4c] sm:$0xf]
        %v2512 = vld [vmem:[%s1216 + $0x50] sm:$0x1]
        %v2513 = vld [vmem:[%s1216 + $0x54] sm:$0xf]
        %v2514 = vld [vmem:[%s1216 + $0x58] sm:$0xf]
        %v2515 = vld [vmem:[%s1216 + $0x5c] sm:$0x1]
        %v2516 = vld [vmem:[%s1216 + $0x60] sm:$0xf]
        %v2517 = vld [vmem:[%s1216 + $0x64] sm:$0xf]
        %v2518 = vld [vmem:[%s1216 + $0x68] sm:$0x1]
        %v2519 = vld [vmem:[%s1216 + $0x6c] sm:$0xf]
        %v2520 = vld [vmem:[%s1216 + $0x70] sm:$0xf]
        %v2521 = vld [vmem:[%s1216 + $0x74] sm:$0x1]
        %v2522 = vld [vmem:[%s1216 + $0x78] sm:$0xf]
        %v2523 = vld [vmem:[%s1216 + $0x7c] sm:$0xf]
        %v2524 = vld [vmem:[%s1216 + $0x80] sm:$0x1]
        %v2525 = vld [vmem:[%s1216 + $0x84] sm:$0xf]
        %v2526 = vld [vmem:[%s1216 + $0x88] sm:$0xf]
        %v2527 = vld [vmem:[%s1216 + $0x8c] sm:$0x1]
        %v2528 = vld [vmem:[%s1216 + $0x90] sm:$0xf]
        %v2529 = vld [vmem:[%s1216 + $0x94] sm:$0xf]
        %v2530 = vld [vmem:[%s1216 + $0x98] sm:$0x1]
        %v2531 = vld [vmem:[%s1216 + $0x9c] sm:$0xf]
        %v2532 = vld [vmem:[%s1216 + $0xa0] sm:$0xf]
        %v2533 = vld [vmem:[%s1216 + $0xa4] sm:$0x1]
        %v2534 = vld [vmem:[%s1216 + $0xa8] sm:$0xf]
        %v2535 = vld [vmem:[%s1216 + $0xac] sm:$0xf]
        %v2536 = vld [vmem:[%s1216 + $0xb0] sm:$0x1]
        %v2537 = vld [vmem:[%s1216 + $0xb4] sm:$0xf]
        %v2538 = vld [vmem:[%s1216 + $0xb8] sm:$0xf]
        %v2539 = vld [vmem:[%s1216 + $0xbc] sm:$0x1]
        %v2541 = vshrl.u32 %v2492, 16
        %v2543 = vrot.slane %v2541, 4
        %v2544 = vshll.u32 %v2492, 16
        %v2546 = vrot.slane %v2544, 5
        %v2547 = vor.u32 %v2543, %v2546
        %v2548 = vrot.slane %v2547, 4
        %v2550 = vshll.u32 %v2493, 16
        %v2552 = vrot.slane %v2550, 5
        %v2553 = vsel %vm1445, %v2548, %v2552
        %v2554 = vshrl.u32 %v2493, 16
        %v2556 = vrot.slane %v2554, 4
        %v2557 = vor.u32 %v2556, %v2552
        %v2558 = vrot.slane %v2557, 4
        %v2560 = vshll.u32 %v2494, 16
        %v2562 = vrot.slane %v2560, 5
        %v2563 = vsel %vm1445, %v2558, %v2562
        %v2565 = vshrl.u32 %v2495, 16
        %v2567 = vrot.slane %v2565, 4
        %v2568 = vshll.u32 %v2495, 16
        %v2570 = vrot.slane %v2568, 5
        %v2571 = vor.u32 %v2567, %v2570
        %v2572 = vrot.slane %v2571, 4
        %v2574 = vshll.u32 %v2496, 16
        %v2576 = vrot.slane %v2574, 5
        %v2577 = vsel %vm1445, %v2572, %v2576
        %v2578 = vshrl.u32 %v2496, 16
        %v2580 = vrot.slane %v2578, 4
        %v2581 = vor.u32 %v2580, %v2576
        %v2582 = vrot.slane %v2581, 4
        %v2584 = vshll.u32 %v2497, 16
        %v2586 = vrot.slane %v2584, 5
        %v2587 = vsel %vm1445, %v2582, %v2586
        %v2589 = vshrl.u32 %v2498, 16
        %v2591 = vrot.slane %v2589, 4
        %v2592 = vshll.u32 %v2498, 16
        %v2594 = vrot.slane %v2592, 5
        %v2595 = vor.u32 %v2591, %v2594
        %v2596 = vrot.slane %v2595, 4
        %v2598 = vshll.u32 %v2499, 16
        %v2600 = vrot.slane %v2598, 5
        %v2601 = vsel %vm1445, %v2596, %v2600
        %v2602 = vshrl.u32 %v2499, 16
        %v2604 = vrot.slane %v2602, 4
        %v2605 = vor.u32 %v2604, %v2600
        %v2606 = vrot.slane %v2605, 4
        %v2608 = vshll.u32 %v2500, 16
        %v2610 = vrot.slane %v2608, 5
        %v2611 = vsel %vm1445, %v2606, %v2610
        %v2613 = vshrl.u32 %v2501, 16
        %v2615 = vrot.slane %v2613, 4
        %v2616 = vshll.u32 %v2501, 16
        %v2618 = vrot.slane %v2616, 5
        %v2619 = vor.u32 %v2615, %v2618
        %v2620 = vrot.slane %v2619, 4
        %v2622 = vshll.u32 %v2502, 16
        %v2624 = vrot.slane %v2622, 5
        %v2625 = vsel %vm1445, %v2620, %v2624
        %v2626 = vshrl.u32 %v2502, 16
        %v2628 = vrot.slane %v2626, 4
        %v2629 = vor.u32 %v2628, %v2624
        %v2630 = vrot.slane %v2629, 4
        %v2632 = vshll.u32 %v2503, 16
        %v2634 = vrot.slane %v2632, 5
        %v2635 = vsel %vm1445, %v2630, %v2634
        %v2637 = vshrl.u32 %v2504, 16
        %v2639 = vrot.slane %v2637, 4
        %v2640 = vshll.u32 %v2504, 16
        %v2642 = vrot.slane %v2640, 5
        %v2643 = vor.u32 %v2639, %v2642
        %v2644 = vrot.slane %v2643, 4
        %v2646 = vshll.u32 %v2505, 16
        %v2648 = vrot.slane %v2646, 5
        %v2649 = vsel %vm1445, %v2644, %v2648
        %v2650 = vshrl.u32 %v2505, 16
        %v2652 = vrot.slane %v2650, 4
        %v2653 = vor.u32 %v2652, %v2648
        %v2654 = vrot.slane %v2653, 4
        %v2656 = vshll.u32 %v2506, 16
        %v2658 = vrot.slane %v2656, 5
        %v2659 = vsel %vm1445, %v2654, %v2658
        %v2661 = vshrl.u32 %v2507, 16
        %v2663 = vrot.slane %v2661, 4
        %v2664 = vshll.u32 %v2507, 16
        %v2666 = vrot.slane %v2664, 5
        %v2667 = vor.u32 %v2663, %v2666
        %v2668 = vrot.slane %v2667, 4
        %v2670 = vshll.u32 %v2508, 16
        %v2672 = vrot.slane %v2670, 5
        %v2673 = vsel %vm1445, %v2668, %v2672
        %v2674 = vshrl.u32 %v2508, 16
        %v2676 = vrot.slane %v2674, 4
        %v2677 = vor.u32 %v2676, %v2672
        %v2678 = vrot.slane %v2677, 4
        %v2680 = vshll.u32 %v2509, 16
        %v2682 = vrot.slane %v2680, 5
        %v2683 = vsel %vm1445, %v2678, %v2682
        %v2685 = vshrl.u32 %v2510, 16
        %v2687 = vrot.slane %v2685, 4
        %v2688 = vshll.u32 %v2510, 16
        %v2690 = vrot.slane %v2688, 5
        %v2691 = vor.u32 %v2687, %v2690
        %v2692 = vrot.slane %v2691, 4
        %v2694 = vshll.u32 %v2511, 16
        %v2696 = vrot.slane %v2694, 5
        %v2697 = vsel %vm1445, %v2692, %v2696
        %v2698 = vshrl.u32 %v2511, 16
        %v2700 = vrot.slane %v2698, 4
        %v2701 = vor.u32 %v2700, %v2696
        %v2702 = vrot.slane %v2701, 4
        %v2704 = vshll.u32 %v2512, 16
        %v2706 = vrot.slane %v2704, 5
        %v2707 = vsel %vm1445, %v2702, %v2706
        %v2709 = vshrl.u32 %v2513, 16
        %v2711 = vrot.slane %v2709, 4
        %v2712 = vshll.u32 %v2513, 16
        %v2714 = vrot.slane %v2712, 5
        %v2715 = vor.u32 %v2711, %v2714
        %v2716 = vrot.slane %v2715, 4
        %v2718 = vshll.u32 %v2514, 16
        %v2720 = vrot.slane %v2718, 5
        %v2721 = vsel %vm1445, %v2716, %v2720
        %v2722 = vshrl.u32 %v2514, 16
        %v2724 = vrot.slane %v2722, 4
        %v2725 = vor.u32 %v2724, %v2720
        %v2726 = vrot.slane %v2725, 4
        %v2728 = vshll.u32 %v2515, 16
        %v2730 = vrot.slane %v2728, 5
        %v2731 = vsel %vm1445, %v2726, %v2730
        %v2733 = vshrl.u32 %v2516, 16
        %v2735 = vrot.slane %v2733, 4
        %v2736 = vshll.u32 %v2516, 16
        %v2738 = vrot.slane %v2736, 5
        %v2739 = vor.u32 %v2735, %v2738
        %v2740 = vrot.slane %v2739, 4
        %v2742 = vshll.u32 %v2517, 16
        %v2744 = vrot.slane %v2742, 5
        %v2745 = vsel %vm1445, %v2740, %v2744
        %v2746 = vshrl.u32 %v2517, 16
        %v2748 = vrot.slane %v2746, 4
        %v2749 = vor.u32 %v2748, %v2744
        %v2750 = vrot.slane %v2749, 4
        %v2752 = vshll.u32 %v2518, 16
        %v2754 = vrot.slane %v2752, 5
        %v2755 = vsel %vm1445, %v2750, %v2754
        %v2757 = vshrl.u32 %v2519, 16
        %v2759 = vrot.slane %v2757, 4
        %v2760 = vshll.u32 %v2519, 16
        %v2762 = vrot.slane %v2760, 5
        %v2763 = vor.u32 %v2759, %v2762
        %v2764 = vrot.slane %v2763, 4
        %v2766 = vshll.u32 %v2520, 16
        %v2768 = vrot.slane %v2766, 5
        %v2769 = vsel %vm1445, %v2764, %v2768
        %v2770 = vshrl.u32 %v2520, 16
        %v2772 = vrot.slane %v2770, 4
        %v2773 = vor.u32 %v2772, %v2768
        %v2774 = vrot.slane %v2773, 4
        %v2776 = vshll.u32 %v2521, 16
        %v2778 = vrot.slane %v2776, 5
        %v2779 = vsel %vm1445, %v2774, %v2778
        %v2781 = vshrl.u32 %v2522, 16
        %v2783 = vrot.slane %v2781, 4
        %v2784 = vshll.u32 %v2522, 16
        %v2786 = vrot.slane %v2784, 5
        %v2787 = vor.u32 %v2783, %v2786
        %v2788 = vrot.slane %v2787, 4
        %v2790 = vshll.u32 %v2523, 16
        %v2792 = vrot.slane %v2790, 5
        %v2793 = vsel %vm1445, %v2788, %v2792
        %v2794 = vshrl.u32 %v2523, 16
        %v2796 = vrot.slane %v2794, 4
        %v2797 = vor.u32 %v2796, %v2792
        %v2798 = vrot.slane %v2797, 4
        %v2800 = vshll.u32 %v2524, 16
        %v2802 = vrot.slane %v2800, 5
        %v2803 = vsel %vm1445, %v2798, %v2802
        %v2805 = vshrl.u32 %v2525, 16
        %v2807 = vrot.slane %v2805, 4
        %v2808 = vshll.u32 %v2525, 16
        %v2810 = vrot.slane %v2808, 5
        %v2811 = vor.u32 %v2807, %v2810
        %v2812 = vrot.slane %v2811, 4
        %v2814 = vshll.u32 %v2526, 16
        %v2816 = vrot.slane %v2814, 5
        %v2817 = vsel %vm1445, %v2812, %v2816
        %v2818 = vshrl.u32 %v2526, 16
        %v2820 = vrot.slane %v2818, 4
        %v2821 = vor.u32 %v2820, %v2816
        %v2822 = vrot.slane %v2821, 4
        %v2824 = vshll.u32 %v2527, 16
        %v2826 = vrot.slane %v2824, 5
        %v2827 = vsel %vm1445, %v2822, %v2826
        %v2829 = vshrl.u32 %v2528, 16
        %v2831 = vrot.slane %v2829, 4
        %v2832 = vshll.u32 %v2528, 16
        %v2834 = vrot.slane %v2832, 5
        %v2835 = vor.u32 %v2831, %v2834
        %v2836 = vrot.slane %v2835, 4
        %v2838 = vshll.u32 %v2529, 16
        %v2840 = vrot.slane %v2838, 5
        %v2841 = vsel %vm1445, %v2836, %v2840
        %v2842 = vshrl.u32 %v2529, 16
        %v2844 = vrot.slane %v2842, 4
        %v2845 = vor.u32 %v2844, %v2840
        %v2846 = vrot.slane %v2845, 4
        %v2848 = vshll.u32 %v2530, 16
        %v2850 = vrot.slane %v2848, 5
        %v2851 = vsel %vm1445, %v2846, %v2850
        %v2853 = vshrl.u32 %v2531, 16
        %v2855 = vrot.slane %v2853, 4
        %v2856 = vshll.u32 %v2531, 16
        %v2858 = vrot.slane %v2856, 5
        %v2859 = vor.u32 %v2855, %v2858
        %v2860 = vrot.slane %v2859, 4
        %v2862 = vshll.u32 %v2532, 16
        %v2864 = vrot.slane %v2862, 5
        %v2865 = vsel %vm1445, %v2860, %v2864
        %v2866 = vshrl.u32 %v2532, 16
        %v2868 = vrot.slane %v2866, 4
        %v2869 = vor.u32 %v2868, %v2864
        %v2870 = vrot.slane %v2869, 4
        %v2872 = vshll.u32 %v2533, 16
        %v2874 = vrot.slane %v2872, 5
        %v2875 = vsel %vm1445, %v2870, %v2874
        %v2877 = vshrl.u32 %v2534, 16
        %v2879 = vrot.slane %v2877, 4
        %v2880 = vshll.u32 %v2534, 16
        %v2882 = vrot.slane %v2880, 5
        %v2883 = vor.u32 %v2879, %v2882
        %v2884 = vrot.slane %v2883, 4
        %v2886 = vshll.u32 %v2535, 16
        %v2888 = vrot.slane %v2886, 5
        %v2889 = vsel %vm1445, %v2884, %v2888
        %v2890 = vshrl.u32 %v2535, 16
        %v2892 = vrot.slane %v2890, 4
        %v2893 = vor.u32 %v2892, %v2888
        %v2894 = vrot.slane %v2893, 4
        %v2896 = vshll.u32 %v2536, 16
        %v2898 = vrot.slane %v2896, 5
        %v2899 = vsel %vm1445, %v2894, %v2898
        %v2901 = vshrl.u32 %v2537, 16
        %v2903 = vrot.slane %v2901, 4
        %v2904 = vshll.u32 %v2537, 16
        %v2906 = vrot.slane %v2904, 5
        %v2907 = vor.u32 %v2903, %v2906
        %v2908 = vrot.slane %v2907, 4
        %v2910 = vshll.u32 %v2538, 16
        %v2912 = vrot.slane %v2910, 5
        %v2913 = vsel %vm1445, %v2908, %v2912
        %v2914 = vshrl.u32 %v2538, 16
        %v2916 = vrot.slane %v2914, 4
        %v2917 = vor.u32 %v2916, %v2912
        %v2918 = vrot.slane %v2917, 4
        %v2920 = vshll.u32 %v2539, 16
        %v2922 = vrot.slane %v2920, 5
        %v2923 = vsel %vm1445, %v2918, %v2922
        %2924 = vrot.lane.b32.xlu0 %v2553, 32
        %v2925 = vpop.permute.xlu0 %2924
        %2926 = vrot.lane.b32.xlu0 %v2563, 32
        %v2927 = vpop.permute.xlu0 %2926
        %2928 = vrot.lane.b32.xlu0 %v2577, 32
        %v2929 = vpop.permute.xlu0 %2928
        %2930 = vrot.lane.b32.xlu0 %v2587, 32
        %v2931 = vpop.permute.xlu0 %2930
        %2932 = vrot.lane.b32.xlu0 %v2601, 32
        %v2933 = vpop.permute.xlu0 %2932
        %2934 = vrot.lane.b32.xlu0 %v2611, 32
        %v2935 = vpop.permute.xlu0 %2934
        %2936 = vrot.lane.b32.xlu0 %v2625, 32
        %v2937 = vpop.permute.xlu0 %2936
        %2938 = vrot.lane.b32.xlu0 %v2635, 32
        %v2939 = vpop.permute.xlu0 %2938
        %2940 = vrot.lane.b32.xlu0 %v2649, 32
        %v2941 = vpop.permute.xlu0 %2940
        %2942 = vrot.lane.b32.xlu0 %v2659, 32
        %v2943 = vpop.permute.xlu0 %2942
        %2944 = vrot.lane.b32.xlu0 %v2673, 32
        %v2945 = vpop.permute.xlu0 %2944
        %2946 = vrot.lane.b32.xlu0 %v2683, 32
        %v2947 = vpop.permute.xlu0 %2946
        %2948 = vrot.lane.b32.xlu0 %v2697, 32
        %v2949 = vpop.permute.xlu0 %2948
        %2950 = vrot.lane.b32.xlu0 %v2707, 32
        %v2951 = vpop.permute.xlu0 %2950
        %2952 = vrot.lane.b32.xlu0 %v2721, 32
        %v2953 = vpop.permute.xlu0 %2952
        %2954 = vrot.lane.b32.xlu0 %v2731, 32
        %v2955 = vpop.permute.xlu0 %2954
        %2956 = vrot.lane.b32.xlu0 %v2745, 32
        %v2957 = vpop.permute.xlu0 %2956
        %2958 = vrot.lane.b32.xlu0 %v2755, 32
        %v2959 = vpop.permute.xlu0 %2958
        %2960 = vrot.lane.b32.xlu0 %v2769, 32
        %v2961 = vpop.permute.xlu0 %2960
        %2962 = vrot.lane.b32.xlu0 %v2779, 32
        %v2963 = vpop.permute.xlu0 %2962
        %2964 = vrot.lane.b32.xlu0 %v2793, 32
        %v2965 = vpop.permute.xlu0 %2964
        %2966 = vrot.lane.b32.xlu0 %v2803, 32
        %v2967 = vpop.permute.xlu0 %2966
        %2968 = vrot.lane.b32.xlu0 %v2817, 32
        %v2969 = vpop.permute.xlu0 %2968
        %2970 = vrot.lane.b32.xlu0 %v2827, 32
        %v2971 = vpop.permute.xlu0 %2970
        %2972 = vrot.lane.b32.xlu0 %v2841, 32
        %v2973 = vpop.permute.xlu0 %2972
        %2974 = vrot.lane.b32.xlu0 %v2851, 32
        %v2975 = vpop.permute.xlu0 %2974
        %2976 = vrot.lane.b32.xlu0 %v2865, 32
        %v2977 = vpop.permute.xlu0 %2976
        %2978 = vrot.lane.b32.xlu0 %v2875, 32
        %v2979 = vpop.permute.xlu0 %2978
        %2980 = vrot.lane.b32.xlu0 %v2889, 32
        %v2981 = vpop.permute.xlu0 %2980
        %2982 = vrot.lane.b32.xlu0 %v2899, 32
        %v2983 = vpop.permute.xlu0 %2982
        %2984 = vrot.lane.b32.xlu0 %v2913, 32
        %v2985 = vpop.permute.xlu0 %2984
        %2986 = vrot.lane.b32.xlu0 %v2923, 32
        %v2987 = vpop.permute.xlu0 %2986
        %vm3020 = vcmask 322816
        %3021 = vst.msk [vmem:[#allocation3] sm:$0xf] %vm3020, %v2925
        %3022 = vst.msk [vmem:[#allocation3 + $0x4] sm:$0xf] %vm3020, %v2927
        %3023 = vst.msk [vmem:[#allocation3 + $0x8] sm:$0xf] %vm3020, %v2929
        %3024 = vst.msk [vmem:[#allocation3 + $0xc] sm:$0xf] %vm3020, %v2931
        %3025 = vst.msk [vmem:[#allocation3 + $0x10] sm:$0xf] %vm3020, %v2933
        %3026 = vst.msk [vmem:[#allocation3 + $0x14] sm:$0xf] %vm3020, %v2935
        %3027 = vst.msk [vmem:[#allocation3 + $0x18] sm:$0xf] %vm3020, %v2937
        %3028 = vst.msk [vmem:[#allocation3 + $0x1c] sm:$0xf] %vm3020, %v2939
        %3029 = vst.msk [vmem:[#allocation3 + $0x20] sm:$0xf] %vm3020, %v2941
        %3030 = vst.msk [vmem:[#allocation3 + $0x24] sm:$0xf] %vm3020, %v2943
        %3031 = vst.msk [vmem:[#allocation3 + $0x28] sm:$0xf] %vm3020, %v2945
        %3032 = vst.msk [vmem:[#allocation3 + $0x2c] sm:$0xf] %vm3020, %v2947
        %3033 = vst.msk [vmem:[#allocation3 + $0x30] sm:$0xf] %vm3020, %v2949
        %3034 = vst.msk [vmem:[#allocation3 + $0x34] sm:$0xf] %vm3020, %v2951
        %3035 = vst.msk [vmem:[#allocation3 + $0x38] sm:$0xf] %vm3020, %v2953
        %3036 = vst.msk [vmem:[#allocation3 + $0x3c] sm:$0xf] %vm3020, %v2955
        %3037 = vst.msk [vmem:[#allocation3 + $0x40] sm:$0xf] %vm3020, %v2957
        %3038 = vst.msk [vmem:[#allocation3 + $0x44] sm:$0xf] %vm3020, %v2959
        %3039 = vst.msk [vmem:[#allocation3 + $0x48] sm:$0xf] %vm3020, %v2961
        %3040 = vst.msk [vmem:[#allocation3 + $0x4c] sm:$0xf] %vm3020, %v2963
        %3041 = vst.msk [vmem:[#allocation3 + $0x50] sm:$0xf] %vm3020, %v2965
        %3042 = vst.msk [vmem:[#allocation3 + $0x54] sm:$0xf] %vm3020, %v2967
        %3043 = vst.msk [vmem:[#allocation3 + $0x58] sm:$0xf] %vm3020, %v2969
        %3044 = vst.msk [vmem:[#allocation3 + $0x5c] sm:$0xf] %vm3020, %v2971
        %3045 = vst.msk [vmem:[#allocation3 + $0x60] sm:$0xf] %vm3020, %v2973
        %3046 = vst.msk [vmem:[#allocation3 + $0x64] sm:$0xf] %vm3020, %v2975
        %3047 = vst.msk [vmem:[#allocation3 + $0x68] sm:$0xf] %vm3020, %v2977
        %3048 = vst.msk [vmem:[#allocation3 + $0x6c] sm:$0xf] %vm3020, %v2979
        %3049 = vst.msk [vmem:[#allocation3 + $0x70] sm:$0xf] %vm3020, %v2981
        %3050 = vst.msk [vmem:[#allocation3 + $0x74] sm:$0xf] %vm3020, %v2983
        %3051 = vst.msk [vmem:[#allocation3 + $0x78] sm:$0xf] %vm3020, %v2985
        %3052 = vst.msk [vmem:[#allocation3 + $0x7c] sm:$0xf] %vm3020, %v2987
        %v3053 = vld [vmem:[%s1216] sm:$0xe]
        %v3054 = vld [vmem:[%s1216 + $0x4] sm:$0xf]
        %v3055 = vld [vmem:[%s1216 + $0x8] sm:$0x1]
        %v3056 = vld [vmem:[%s1216 + $0xc] sm:$0xe]
        %v3057 = vld [vmem:[%s1216 + $0x10] sm:$0xf]
        %v3058 = vld [vmem:[%s1216 + $0x14] sm:$0x1]
        %v3059 = vld [vmem:[%s1216 + $0x18] sm:$0xe]
        %v3060 = vld [vmem:[%s1216 + $0x1c] sm:$0xf]
        %v3061 = vld [vmem:[%s1216 + $0x20] sm:$0x1]
        %v3062 = vld [vmem:[%s1216 + $0x24] sm:$0xe]
        %v3063 = vld [vmem:[%s1216 + $0x28] sm:$0xf]
        %v3064 = vld [vmem:[%s1216 + $0x2c] sm:$0x1]
        %v3065 = vld [vmem:[%s1216 + $0x30] sm:$0xe]
        %v3066 = vld [vmem:[%s1216 + $0x34] sm:$0xf]
        %v3067 = vld [vmem:[%s1216 + $0x38] sm:$0x1]
        %v3068 = vld [vmem:[%s1216 + $0x3c] sm:$0xe]
        %v3069 = vld [vmem:[%s1216 + $0x40] sm:$0xf]
        %v3070 = vld [vmem:[%s1216 + $0x44] sm:$0x1]
        %v3071 = vld [vmem:[%s1216 + $0x48] sm:$0xe]
        %v3072 = vld [vmem:[%s1216 + $0x4c] sm:$0xf]
        %v3073 = vld [vmem:[%s1216 + $0x50] sm:$0x1]
        %v3074 = vld [vmem:[%s1216 + $0x54] sm:$0xe]
        %v3075 = vld [vmem:[%s1216 + $0x58] sm:$0xf]
        %v3076 = vld [vmem:[%s1216 + $0x5c] sm:$0x1]
        %v3077 = vld [vmem:[%s1216 + $0x60] sm:$0xe]
        %v3078 = vld [vmem:[%s1216 + $0x64] sm:$0xf]
        %v3079 = vld [vmem:[%s1216 + $0x68] sm:$0x1]
        %v3080 = vld [vmem:[%s1216 + $0x6c] sm:$0xe]
        %v3081 = vld [vmem:[%s1216 + $0x70] sm:$0xf]
        %v3082 = vld [vmem:[%s1216 + $0x74] sm:$0x1]
        %v3083 = vld [vmem:[%s1216 + $0x78] sm:$0xe]
        %v3084 = vld [vmem:[%s1216 + $0x7c] sm:$0xf]
        %v3085 = vld [vmem:[%s1216 + $0x80] sm:$0x1]
        %v3086 = vld [vmem:[%s1216 + $0x84] sm:$0xe]
        %v3087 = vld [vmem:[%s1216 + $0x88] sm:$0xf]
        %v3088 = vld [vmem:[%s1216 + $0x8c] sm:$0x1]
        %v3089 = vld [vmem:[%s1216 + $0x90] sm:$0xe]
        %v3090 = vld [vmem:[%s1216 + $0x94] sm:$0xf]
        %v3091 = vld [vmem:[%s1216 + $0x98] sm:$0x1]
        %v3092 = vld [vmem:[%s1216 + $0x9c] sm:$0xe]
        %v3093 = vld [vmem:[%s1216 + $0xa0] sm:$0xf]
        %v3094 = vld [vmem:[%s1216 + $0xa4] sm:$0x1]
        %v3095 = vld [vmem:[%s1216 + $0xa8] sm:$0xe]
        %v3096 = vld [vmem:[%s1216 + $0xac] sm:$0xf]
        %v3097 = vld [vmem:[%s1216 + $0xb0] sm:$0x1]
        %v3098 = vld [vmem:[%s1216 + $0xb4] sm:$0xe]
        %v3099 = vld [vmem:[%s1216 + $0xb8] sm:$0xf]
        %v3100 = vld [vmem:[%s1216 + $0xbc] sm:$0x1]
        %v3149 = vrot.slane %v3053, 5
        %v3150 = vrot.slane %v3149, 4
        %v3151 = vrot.slane %v3054, 5
        %v3152 = vsel %vm2057, %v3150, %v3151
        %v3153 = vrot.slane %v3151, 4
        %v3154 = vrot.slane %v3055, 5
        %v3155 = vsel %vm2057, %v3153, %v3154
        %v3156 = vrot.slane %v3056, 5
        %v3157 = vrot.slane %v3156, 4
        %v3158 = vrot.slane %v3057, 5
        %v3159 = vsel %vm2057, %v3157, %v3158
        %v3160 = vrot.slane %v3158, 4
        %v3161 = vrot.slane %v3058, 5
        %v3162 = vsel %vm2057, %v3160, %v3161
        %v3163 = vrot.slane %v3059, 5
        %v3164 = vrot.slane %v3163, 4
        %v3165 = vrot.slane %v3060, 5
        %v3166 = vsel %vm2057, %v3164, %v3165
        %v3167 = vrot.slane %v3165, 4
        %v3168 = vrot.slane %v3061, 5
        %v3169 = vsel %vm2057, %v3167, %v3168
        %v3170 = vrot.slane %v3062, 5
        %v3171 = vrot.slane %v3170, 4
        %v3172 = vrot.slane %v3063, 5
        %v3173 = vsel %vm2057, %v3171, %v3172
        %v3174 = vrot.slane %v3172, 4
        %v3175 = vrot.slane %v3064, 5
        %v3176 = vsel %vm2057, %v3174, %v3175
        %v3177 = vrot.slane %v3065, 5
        %v3178 = vrot.slane %v3177, 4
        %v3179 = vrot.slane %v3066, 5
        %v3180 = vsel %vm2057, %v3178, %v3179
        %v3181 = vrot.slane %v3179, 4
        %v3182 = vrot.slane %v3067, 5
        %v3183 = vsel %vm2057, %v3181, %v3182
        %v3184 = vrot.slane %v3068, 5
        %v3185 = vrot.slane %v3184, 4
        %v3186 = vrot.slane %v3069, 5
        %v3187 = vsel %vm2057, %v3185, %v3186
        %v3188 = vrot.slane %v3186, 4
        %v3189 = vrot.slane %v3070, 5
        %v3190 = vsel %vm2057, %v3188, %v3189
        %v3191 = vrot.slane %v3071, 5
        %v3192 = vrot.slane %v3191, 4
        %v3193 = vrot.slane %v3072, 5
        %v3194 = vsel %vm2057, %v3192, %v3193
        %v3195 = vrot.slane %v3193, 4
        %v3196 = vrot.slane %v3073, 5
        %v3197 = vsel %vm2057, %v3195, %v3196
        %v3198 = vrot.slane %v3074, 5
        %v3199 = vrot.slane %v3198, 4
        %v3200 = vrot.slane %v3075, 5
        %v3201 = vsel %vm2057, %v3199, %v3200
        %v3202 = vrot.slane %v3200, 4
        %v3203 = vrot.slane %v3076, 5
        %v3204 = vsel %vm2057, %v3202, %v3203
        %v3205 = vrot.slane %v3077, 5
        %v3206 = vrot.slane %v3205, 4
        %v3207 = vrot.slane %v3078, 5
        %v3208 = vsel %vm2057, %v3206, %v3207
        %v3209 = vrot.slane %v3207, 4
        %v3210 = vrot.slane %v3079, 5
        %v3211 = vsel %vm2057, %v3209, %v3210
        %v3212 = vrot.slane %v3080, 5
        %v3213 = vrot.slane %v3212, 4
        %v3214 = vrot.slane %v3081, 5
        %v3215 = vsel %vm2057, %v3213, %v3214
        %v3216 = vrot.slane %v3214, 4
        %v3217 = vrot.slane %v3082, 5
        %v3218 = vsel %vm2057, %v3216, %v3217
        %v3219 = vrot.slane %v3083, 5
        %v3220 = vrot.slane %v3219, 4
        %v3221 = vrot.slane %v3084, 5
        %v3222 = vsel %vm2057, %v3220, %v3221
        %v3223 = vrot.slane %v3221, 4
        %v3224 = vrot.slane %v3085, 5
        %v3225 = vsel %vm2057, %v3223, %v3224
        %v3226 = vrot.slane %v3086, 5
        %v3227 = vrot.slane %v3226, 4
        %v3228 = vrot.slane %v3087, 5
        %v3229 = vsel %vm2057, %v3227, %v3228
        %v3230 = vrot.slane %v3228, 4
        %v3231 = vrot.slane %v3088, 5
        %v3232 = vsel %vm2057, %v3230, %v3231
        %v3233 = vrot.slane %v3089, 5
        %v3234 = vrot.slane %v3233, 4
        %v3235 = vrot.slane %v3090, 5
        %v3236 = vsel %vm2057, %v3234, %v3235
        %v3237 = vrot.slane %v3235, 4
        %v3238 = vrot.slane %v3091, 5
        %v3239 = vsel %vm2057, %v3237, %v3238
        %v3240 = vrot.slane %v3092, 5
        %v3241 = vrot.slane %v3240, 4
        %v3242 = vrot.slane %v3093, 5
        %v3243 = vsel %vm2057, %v3241, %v3242
        %v3244 = vrot.slane %v3242, 4
        %v3245 = vrot.slane %v3094, 5
        %v3246 = vsel %vm2057, %v3244, %v3245
        %v3247 = vrot.slane %v3095, 5
        %v3248 = vrot.slane %v3247, 4
        %v3249 = vrot.slane %v3096, 5
        %v3250 = vsel %vm2057, %v3248, %v3249
        %v3251 = vrot.slane %v3249, 4
        %v3252 = vrot.slane %v3097, 5
        %v3253 = vsel %vm2057, %v3251, %v3252
        %v3254 = vrot.slane %v3098, 5
        %v3255 = vrot.slane %v3254, 4
        %v3256 = vrot.slane %v3099, 5
        %v3257 = vsel %vm2057, %v3255, %v3256
        %v3258 = vrot.slane %v3256, 4
        %v3259 = vrot.slane %v3100, 5
        %v3260 = vsel %vm2057, %v3258, %v3259
        %3261 = vrot.lane.b32.xlu0 %v3152, 40
        %v3262 = vpop.permute.xlu0 %3261
        %3263 = vrot.lane.b32.xlu0 %v3155, 40
        %v3264 = vpop.permute.xlu0 %3263
        %3265 = vrot.lane.b32.xlu0 %v3159, 40
        %v3266 = vpop.permute.xlu0 %3265
        %3267 = vrot.lane.b32.xlu0 %v3162, 40
        %v3268 = vpop.permute.xlu0 %3267
        %3269 = vrot.lane.b32.xlu0 %v3166, 40
        %v3270 = vpop.permute.xlu0 %3269
        %3271 = vrot.lane.b32.xlu0 %v3169, 40
        %v3272 = vpop.permute.xlu0 %3271
        %3273 = vrot.lane.b32.xlu0 %v3173, 40
        %v3274 = vpop.permute.xlu0 %3273
        %3275 = vrot.lane.b32.xlu0 %v3176, 40
        %v3276 = vpop.permute.xlu0 %3275
        %3277 = vrot.lane.b32.xlu0 %v3180, 40
        %v3278 = vpop.permute.xlu0 %3277
        %3279 = vrot.lane.b32.xlu0 %v3183, 40
        %v3280 = vpop.permute.xlu0 %3279
        %3281 = vrot.lane.b32.xlu0 %v3187, 40
        %v3282 = vpop.permute.xlu0 %3281
        %3283 = vrot.lane.b32.xlu0 %v3190, 40
        %v3284 = vpop.permute.xlu0 %3283
        %3285 = vrot.lane.b32.xlu0 %v3194, 40
        %v3286 = vpop.permute.xlu0 %3285
        %3287 = vrot.lane.b32.xlu0 %v3197, 40
        %v3288 = vpop.permute.xlu0 %3287
        %3289 = vrot.lane.b32.xlu0 %v3201, 40
        %v3290 = vpop.permute.xlu0 %3289
        %3291 = vrot.lane.b32.xlu0 %v3204, 40
        %v3292 = vpop.permute.xlu0 %3291
        %3293 = vrot.lane.b32.xlu0 %v3208, 40
        %v3294 = vpop.permute.xlu0 %3293
        %3295 = vrot.lane.b32.xlu0 %v3211, 40
        %v3296 = vpop.permute.xlu0 %3295
        %3297 = vrot.lane.b32.xlu0 %v3215, 40
        %v3298 = vpop.permute.xlu0 %3297
        %3299 = vrot.lane.b32.xlu0 %v3218, 40
        %v3300 = vpop.permute.xlu0 %3299
        %3301 = vrot.lane.b32.xlu0 %v3222, 40
        %v3302 = vpop.permute.xlu0 %3301
        %3303 = vrot.lane.b32.xlu0 %v3225, 40
        %v3304 = vpop.permute.xlu0 %3303
        %3305 = vrot.lane.b32.xlu0 %v3229, 40
        %v3306 = vpop.permute.xlu0 %3305
        %3307 = vrot.lane.b32.xlu0 %v3232, 40
        %v3308 = vpop.permute.xlu0 %3307
        %3309 = vrot.lane.b32.xlu0 %v3236, 40
        %v3310 = vpop.permute.xlu0 %3309
        %3311 = vrot.lane.b32.xlu0 %v3239, 40
        %v3312 = vpop.permute.xlu0 %3311
        %3313 = vrot.lane.b32.xlu0 %v3243, 40
        %v3314 = vpop.permute.xlu0 %3313
        %3315 = vrot.lane.b32.xlu0 %v3246, 40
        %v3316 = vpop.permute.xlu0 %3315
        %3317 = vrot.lane.b32.xlu0 %v3250, 40
        %v3318 = vpop.permute.xlu0 %3317
        %3319 = vrot.lane.b32.xlu0 %v3253, 40
        %v3320 = vpop.permute.xlu0 %3319
        %3321 = vrot.lane.b32.xlu0 %v3257, 40
        %v3322 = vpop.permute.xlu0 %3321
        %3323 = vrot.lane.b32.xlu0 %v3260, 40
        %v3324 = vpop.permute.xlu0 %3323
        %vm3357 = vcmask 388416
        %3358 = vst.msk [vmem:[#allocation3] sm:$0xf] %vm3357, %v3262
        %3359 = vst.msk [vmem:[#allocation3 + $0x4] sm:$0xf] %vm3357, %v3264
        %3360 = vst.msk [vmem:[#allocation3 + $0x8] sm:$0xf] %vm3357, %v3266
        %3361 = vst.msk [vmem:[#allocation3 + $0xc] sm:$0xf] %vm3357, %v3268
        %3362 = vst.msk [vmem:[#allocation3 + $0x10] sm:$0xf] %vm3357, %v3270
        %3363 = vst.msk [vmem:[#allocation3 + $0x14] sm:$0xf] %vm3357, %v3272
        %3364 = vst.msk [vmem:[#allocation3 + $0x18] sm:$0xf] %vm3357, %v3274
        %3365 = vst.msk [vmem:[#allocation3 + $0x1c] sm:$0xf] %vm3357, %v3276
        %3366 = vst.msk [vmem:[#allocation3 + $0x20] sm:$0xf] %vm3357, %v3278
        %3367 = vst.msk [vmem:[#allocation3 + $0x24] sm:$0xf] %vm3357, %v3280
        %3368 = vst.msk [vmem:[#allocation3 + $0x28] sm:$0xf] %vm3357, %v3282
        %3369 = vst.msk [vmem:[#allocation3 + $0x2c] sm:$0xf] %vm3357, %v3284
        %3370 = vst.msk [vmem:[#allocation3 + $0x30] sm:$0xf] %vm3357, %v3286
        %3371 = vst.msk [vmem:[#allocation3 + $0x34] sm:$0xf] %vm3357, %v3288
        %3372 = vst.msk [vmem:[#allocation3 + $0x38] sm:$0xf] %vm3357, %v3290
        %3373 = vst.msk [vmem:[#allocation3 + $0x3c] sm:$0xf] %vm3357, %v3292
        %3374 = vst.msk [vmem:[#allocation3 + $0x40] sm:$0xf] %vm3357, %v3294
        %3375 = vst.msk [vmem:[#allocation3 + $0x44] sm:$0xf] %vm3357, %v3296
        %3376 = vst.msk [vmem:[#allocation3 + $0x48] sm:$0xf] %vm3357, %v3298
        %3377 = vst.msk [vmem:[#allocation3 + $0x4c] sm:$0xf] %vm3357, %v3300
        %3378 = vst.msk [vmem:[#allocation3 + $0x50] sm:$0xf] %vm3357, %v3302
        %3379 = vst.msk [vmem:[#allocation3 + $0x54] sm:$0xf] %vm3357, %v3304
        %3380 = vst.msk [vmem:[#allocation3 + $0x58] sm:$0xf] %vm3357, %v3306
        %3381 = vst.msk [vmem:[#allocation3 + $0x5c] sm:$0xf] %vm3357, %v3308
        %3382 = vst.msk [vmem:[#allocation3 + $0x60] sm:$0xf] %vm3357, %v3310
        %3383 = vst.msk [vmem:[#allocation3 + $0x64] sm:$0xf] %vm3357, %v3312
        %3384 = vst.msk [vmem:[#allocation3 + $0x68] sm:$0xf] %vm3357, %v3314
        %3385 = vst.msk [vmem:[#allocation3 + $0x6c] sm:$0xf] %vm3357, %v3316
        %3386 = vst.msk [vmem:[#allocation3 + $0x70] sm:$0xf] %vm3357, %v3318
        %3387 = vst.msk [vmem:[#allocation3 + $0x74] sm:$0xf] %vm3357, %v3320
        %3388 = vst.msk [vmem:[#allocation3 + $0x78] sm:$0xf] %vm3357, %v3322
        %3389 = vst.msk [vmem:[#allocation3 + $0x7c] sm:$0xf] %vm3357, %v3324
        %s3390 = scalar_lea.vmem [#allocation2], 24
        %v3391 = vld [vmem:[%s3390] sm:$0xf]
        %v3392 = vld [vmem:[%s3390 + $0x4] sm:$0xf]
        %v3393 = vld [vmem:[%s3390 + $0xc] sm:$0xf]
        %v3394 = vld [vmem:[%s3390 + $0x10] sm:$0xf]
        %v3395 = vld [vmem:[%s3390 + $0x18] sm:$0xf]
        %v3396 = vld [vmem:[%s3390 + $0x1c] sm:$0xf]
        %v3397 = vld [vmem:[%s3390 + $0x24] sm:$0xf]
        %v3398 = vld [vmem:[%s3390 + $0x28] sm:$0xf]
        %v3399 = vld [vmem:[%s3390 + $0x30] sm:$0xf]
        %v3400 = vld [vmem:[%s3390 + $0x34] sm:$0xf]
        %v3401 = vld [vmem:[%s3390 + $0x3c] sm:$0xf]
        %v3402 = vld [vmem:[%s3390 + $0x40] sm:$0xf]
        %v3403 = vld [vmem:[%s3390 + $0x48] sm:$0xf]
        %v3404 = vld [vmem:[%s3390 + $0x4c] sm:$0xf]
        %v3405 = vld [vmem:[%s3390 + $0x54] sm:$0xf]
        %v3406 = vld [vmem:[%s3390 + $0x58] sm:$0xf]
        %v3407 = vld [vmem:[%s3390 + $0x60] sm:$0xf]
        %v3408 = vld [vmem:[%s3390 + $0x64] sm:$0xf]
        %v3409 = vld [vmem:[%s3390 + $0x6c] sm:$0xf]
        %v3410 = vld [vmem:[%s3390 + $0x70] sm:$0xf]
        %v3411 = vld [vmem:[%s3390 + $0x78] sm:$0xf]
        %v3412 = vld [vmem:[%s3390 + $0x7c] sm:$0xf]
        %v3413 = vld [vmem:[%s3390 + $0x84] sm:$0xf]
        %v3414 = vld [vmem:[%s3390 + $0x88] sm:$0xf]
        %v3415 = vld [vmem:[%s3390 + $0x90] sm:$0xf]
        %v3416 = vld [vmem:[%s3390 + $0x94] sm:$0xf]
        %v3417 = vld [vmem:[%s3390 + $0x9c] sm:$0xf]
        %v3418 = vld [vmem:[%s3390 + $0xa0] sm:$0xf]
        %v3419 = vld [vmem:[%s3390 + $0xa8] sm:$0xf]
        %v3420 = vld [vmem:[%s3390 + $0xac] sm:$0xf]
        %v3421 = vld [vmem:[%s3390 + $0xb4] sm:$0xf]
        %v3422 = vld [vmem:[%s3390 + $0xb8] sm:$0xf]
        %3455 = vrot.lane.b32.xlu0 %v3391, 48
        %v3456 = vpop.permute.xlu0 %3455
        %3457 = vrot.lane.b32.xlu0 %v3392, 48
        %v3458 = vpop.permute.xlu0 %3457
        %3459 = vrot.lane.b32.xlu0 %v3393, 48
        %v3460 = vpop.permute.xlu0 %3459
        %3461 = vrot.lane.b32.xlu0 %v3394, 48
        %v3462 = vpop.permute.xlu0 %3461
        %3463 = vrot.lane.b32.xlu0 %v3395, 48
        %v3464 = vpop.permute.xlu0 %3463
        %3465 = vrot.lane.b32.xlu0 %v3396, 48
        %v3466 = vpop.permute.xlu0 %3465
        %3467 = vrot.lane.b32.xlu0 %v3397, 48
        %v3468 = vpop.permute.xlu0 %3467
        %3469 = vrot.lane.b32.xlu0 %v3398, 48
        %v3470 = vpop.permute.xlu0 %3469
        %3471 = vrot.lane.b32.xlu0 %v3399, 48
        %v3472 = vpop.permute.xlu0 %3471
        %3473 = vrot.lane.b32.xlu0 %v3400, 48
        %v3474 = vpop.permute.xlu0 %3473
        %3475 = vrot.lane.b32.xlu0 %v3401, 48
        %v3476 = vpop.permute.xlu0 %3475
        %3477 = vrot.lane.b32.xlu0 %v3402, 48
        %v3478 = vpop.permute.xlu0 %3477
        %3479 = vrot.lane.b32.xlu0 %v3403, 48
        %v3480 = vpop.permute.xlu0 %3479
        %3481 = vrot.lane.b32.xlu0 %v3404, 48
        %v3482 = vpop.permute.xlu0 %3481
        %3483 = vrot.lane.b32.xlu0 %v3405, 48
        %v3484 = vpop.permute.xlu0 %3483
        %3485 = vrot.lane.b32.xlu0 %v3406, 48
        %v3486 = vpop.permute.xlu0 %3485
        %3487 = vrot.lane.b32.xlu0 %v3407, 48
        %v3488 = vpop.permute.xlu0 %3487
        %3489 = vrot.lane.b32.xlu0 %v3408, 48
        %v3490 = vpop.permute.xlu0 %3489
        %3491 = vrot.lane.b32.xlu0 %v3409, 48
        %v3492 = vpop.permute.xlu0 %3491
        %3493 = vrot.lane.b32.xlu0 %v3410, 48
        %v3494 = vpop.permute.xlu0 %3493
        %3495 = vrot.lane.b32.xlu0 %v3411, 48
        %v3496 = vpop.permute.xlu0 %3495
        %3497 = vrot.lane.b32.xlu0 %v3412, 48
        %v3498 = vpop.permute.xlu0 %3497
        %3499 = vrot.lane.b32.xlu0 %v3413, 48
        %v3500 = vpop.permute.xlu0 %3499
        %3501 = vrot.lane.b32.xlu0 %v3414, 48
        %v3502 = vpop.permute.xlu0 %3501
        %3503 = vrot.lane.b32.xlu0 %v3415, 48
        %v3504 = vpop.permute.xlu0 %3503
        %3505 = vrot.lane.b32.xlu0 %v3416, 48
        %v3506 = vpop.permute.xlu0 %3505
        %3507 = vrot.lane.b32.xlu0 %v3417, 48
        %v3508 = vpop.permute.xlu0 %3507
        %3509 = vrot.lane.b32.xlu0 %v3418, 48
        %v3510 = vpop.permute.xlu0 %3509
        %3511 = vrot.lane.b32.xlu0 %v3419, 48
        %v3512 = vpop.permute.xlu0 %3511
        %3513 = vrot.lane.b32.xlu0 %v3420, 48
        %v3514 = vpop.permute.xlu0 %3513
        %3515 = vrot.lane.b32.xlu0 %v3421, 48
        %v3516 = vpop.permute.xlu0 %3515
        %3517 = vrot.lane.b32.xlu0 %v3422, 48
        %v3518 = vpop.permute.xlu0 %3517
        %vm3551 = vcmask 454016
        %3552 = vst.msk [vmem:[#allocation3] sm:$0xf] %vm3551, %v3456
        %3553 = vst.msk [vmem:[#allocation3 + $0x4] sm:$0xf] %vm3551, %v3458
        %3554 = vst.msk [vmem:[#allocation3 + $0x8] sm:$0xf] %vm3551, %v3460
        %3555 = vst.msk [vmem:[#allocation3 + $0xc] sm:$0xf] %vm3551, %v3462
        %3556 = vst.msk [vmem:[#allocation3 + $0x10] sm:$0xf] %vm3551, %v3464
        %3557 = vst.msk [vmem:[#allocation3 + $0x14] sm:$0xf] %vm3551, %v3466
        %3558 = vst.msk [vmem:[#allocation3 + $0x18] sm:$0xf] %vm3551, %v3468
        %3559 = vst.msk [vmem:[#allocation3 + $0x1c] sm:$0xf] %vm3551, %v3470
        %3560 = vst.msk [vmem:[#allocation3 + $0x20] sm:$0xf] %vm3551, %v3472
        %3561 = vst.msk [vmem:[#allocation3 + $0x24] sm:$0xf] %vm3551, %v3474
        %3562 = vst.msk [vmem:[#allocation3 + $0x28] sm:$0xf] %vm3551, %v3476
        %3563 = vst.msk [vmem:[#allocation3 + $0x2c] sm:$0xf] %vm3551, %v3478
        %3564 = vst.msk [vmem:[#allocation3 + $0x30] sm:$0xf] %vm3551, %v3480
        %3565 = vst.msk [vmem:[#allocation3 + $0x34] sm:$0xf] %vm3551, %v3482
        %3566 = vst.msk [vmem:[#allocation3 + $0x38] sm:$0xf] %vm3551, %v3484
        %3567 = vst.msk [vmem:[#allocation3 + $0x3c] sm:$0xf] %vm3551, %v3486
        %3568 = vst.msk [vmem:[#allocation3 + $0x40] sm:$0xf] %vm3551, %v3488
        %3569 = vst.msk [vmem:[#allocation3 + $0x44] sm:$0xf] %vm3551, %v3490
        %3570 = vst.msk [vmem:[#allocation3 + $0x48] sm:$0xf] %vm3551, %v3492
        %3571 = vst.msk [vmem:[#allocation3 + $0x4c] sm:$0xf] %vm3551, %v3494
        %3572 = vst.msk [vmem:[#allocation3 + $0x50] sm:$0xf] %vm3551, %v3496
        %3573 = vst.msk [vmem:[#allocation3 + $0x54] sm:$0xf] %vm3551, %v3498
        %3574 = vst.msk [vmem:[#allocation3 + $0x58] sm:$0xf] %vm3551, %v3500
        %3575 = vst.msk [vmem:[#allocation3 + $0x5c] sm:$0xf] %vm3551, %v3502
        %3576 = vst.msk [vmem:[#allocation3 + $0x60] sm:$0xf] %vm3551, %v3504
        %3577 = vst.msk [vmem:[#allocation3 + $0x64] sm:$0xf] %vm3551, %v3506
        %3578 = vst.msk [vmem:[#allocation3 + $0x68] sm:$0xf] %vm3551, %v3508
        %3579 = vst.msk [vmem:[#allocation3 + $0x6c] sm:$0xf] %vm3551, %v3510
        %3580 = vst.msk [vmem:[#allocation3 + $0x70] sm:$0xf] %vm3551, %v3512
        %3581 = vst.msk [vmem:[#allocation3 + $0x74] sm:$0xf] %vm3551, %v3514
        %3582 = vst.msk [vmem:[#allocation3 + $0x78] sm:$0xf] %vm3551, %v3516
        %3583 = vst.msk [vmem:[#allocation3 + $0x7c] sm:$0xf] %vm3551, %v3518
        %v3584 = vld [vmem:[%s3390] sm:$0xf]
        %v3585 = vld [vmem:[%s3390 + $0x4] sm:$0xf]
        %v3586 = vld [vmem:[%s3390 + $0x8] sm:$0x1]
        %v3587 = vld [vmem:[%s3390 + $0xc] sm:$0xf]
        %v3588 = vld [vmem:[%s3390 + $0x10] sm:$0xf]
        %v3589 = vld [vmem:[%s3390 + $0x14] sm:$0x1]
        %v3590 = vld [vmem:[%s3390 + $0x18] sm:$0xf]
        %v3591 = vld [vmem:[%s3390 + $0x1c] sm:$0xf]
        %v3592 = vld [vmem:[%s3390 + $0x20] sm:$0x1]
        %v3593 = vld [vmem:[%s3390 + $0x24] sm:$0xf]
        %v3594 = vld [vmem:[%s3390 + $0x28] sm:$0xf]
        %v3595 = vld [vmem:[%s3390 + $0x2c] sm:$0x1]
        %v3596 = vld [vmem:[%s3390 + $0x30] sm:$0xf]
        %v3597 = vld [vmem:[%s3390 + $0x34] sm:$0xf]
        %v3598 = vld [vmem:[%s3390 + $0x38] sm:$0x1]
        %v3599 = vld [vmem:[%s3390 + $0x3c] sm:$0xf]
        %v3600 = vld [vmem:[%s3390 + $0x40] sm:$0xf]
        %v3601 = vld [vmem:[%s3390 + $0x44] sm:$0x1]
        %v3602 = vld [vmem:[%s3390 + $0x48] sm:$0xf]
        %v3603 = vld [vmem:[%s3390 + $0x4c] sm:$0xf]
        %v3604 = vld [vmem:[%s3390 + $0x50] sm:$0x1]
        %v3605 = vld [vmem:[%s3390 + $0x54] sm:$0xf]
        %v3606 = vld [vmem:[%s3390 + $0x58] sm:$0xf]
        %v3607 = vld [vmem:[%s3390 + $0x5c] sm:$0x1]
        %v3608 = vld [vmem:[%s3390 + $0x60] sm:$0xf]
        %v3609 = vld [vmem:[%s3390 + $0x64] sm:$0xf]
        %v3610 = vld [vmem:[%s3390 + $0x68] sm:$0x1]
        %v3611 = vld [vmem:[%s3390 + $0x6c] sm:$0xf]
        %v3612 = vld [vmem:[%s3390 + $0x70] sm:$0xf]
        %v3613 = vld [vmem:[%s3390 + $0x74] sm:$0x1]
        %v3614 = vld [vmem:[%s3390 + $0x78] sm:$0xf]
        %v3615 = vld [vmem:[%s3390 + $0x7c] sm:$0xf]
        %v3616 = vld [vmem:[%s3390 + $0x80] sm:$0x1]
        %v3617 = vld [vmem:[%s3390 + $0x84] sm:$0xf]
        %v3618 = vld [vmem:[%s3390 + $0x88] sm:$0xf]
        %v3619 = vld [vmem:[%s3390 + $0x8c] sm:$0x1]
        %v3620 = vld [vmem:[%s3390 + $0x90] sm:$0xf]
        %v3621 = vld [vmem:[%s3390 + $0x94] sm:$0xf]
        %v3622 = vld [vmem:[%s3390 + $0x98] sm:$0x1]
        %v3623 = vld [vmem:[%s3390 + $0x9c] sm:$0xf]
        %v3624 = vld [vmem:[%s3390 + $0xa0] sm:$0xf]
        %v3625 = vld [vmem:[%s3390 + $0xa4] sm:$0x1]
        %v3626 = vld [vmem:[%s3390 + $0xa8] sm:$0xf]
        %v3627 = vld [vmem:[%s3390 + $0xac] sm:$0xf]
        %v3628 = vld [vmem:[%s3390 + $0xb0] sm:$0x1]
        %v3629 = vld [vmem:[%s3390 + $0xb4] sm:$0xf]
        %v3630 = vld [vmem:[%s3390 + $0xb8] sm:$0xf]
        %v3631 = vld [vmem:[%s3390 + $0xbc] sm:$0x1]
        %v3633 = vshrl.u32 %v3584, 16
        %v3635 = vrot.slane %v3633, 4
        %v3636 = vshll.u32 %v3584, 16
        %v3638 = vrot.slane %v3636, 5
        %v3639 = vor.u32 %v3635, %v3638
        %v3640 = vrot.slane %v3639, 4
        %v3642 = vshll.u32 %v3585, 16
        %v3644 = vrot.slane %v3642, 5
        %v3645 = vsel %vm1445, %v3640, %v3644
        %v3646 = vshrl.u32 %v3585, 16
        %v3648 = vrot.slane %v3646, 4
        %v3649 = vor.u32 %v3648, %v3644
        %v3650 = vrot.slane %v3649, 4
        %v3652 = vshll.u32 %v3586, 16
        %v3654 = vrot.slane %v3652, 5
        %v3655 = vsel %vm1445, %v3650, %v3654
        %v3657 = vshrl.u32 %v3587, 16
        %v3659 = vrot.slane %v3657, 4
        %v3660 = vshll.u32 %v3587, 16
        %v3662 = vrot.slane %v3660, 5
        %v3663 = vor.u32 %v3659, %v3662
        %v3664 = vrot.slane %v3663, 4
        %v3666 = vshll.u32 %v3588, 16
        %v3668 = vrot.slane %v3666, 5
        %v3669 = vsel %vm1445, %v3664, %v3668
        %v3670 = vshrl.u32 %v3588, 16
        %v3672 = vrot.slane %v3670, 4
        %v3673 = vor.u32 %v3672, %v3668
        %v3674 = vrot.slane %v3673, 4
        %v3676 = vshll.u32 %v3589, 16
        %v3678 = vrot.slane %v3676, 5
        %v3679 = vsel %vm1445, %v3674, %v3678
        %v3681 = vshrl.u32 %v3590, 16
        %v3683 = vrot.slane %v3681, 4
        %v3684 = vshll.u32 %v3590, 16
        %v3686 = vrot.slane %v3684, 5
        %v3687 = vor.u32 %v3683, %v3686
        %v3688 = vrot.slane %v3687, 4
        %v3690 = vshll.u32 %v3591, 16
        %v3692 = vrot.slane %v3690, 5
        %v3693 = vsel %vm1445, %v3688, %v3692
        %v3694 = vshrl.u32 %v3591, 16
        %v3696 = vrot.slane %v3694, 4
        %v3697 = vor.u32 %v3696, %v3692
        %v3698 = vrot.slane %v3697, 4
        %v3700 = vshll.u32 %v3592, 16
        %v3702 = vrot.slane %v3700, 5
        %v3703 = vsel %vm1445, %v3698, %v3702
        %v3705 = vshrl.u32 %v3593, 16
        %v3707 = vrot.slane %v3705, 4
        %v3708 = vshll.u32 %v3593, 16
        %v3710 = vrot.slane %v3708, 5
        %v3711 = vor.u32 %v3707, %v3710
        %v3712 = vrot.slane %v3711, 4
        %v3714 = vshll.u32 %v3594, 16
        %v3716 = vrot.slane %v3714, 5
        %v3717 = vsel %vm1445, %v3712, %v3716
        %v3718 = vshrl.u32 %v3594, 16
        %v3720 = vrot.slane %v3718, 4
        %v3721 = vor.u32 %v3720, %v3716
        %v3722 = vrot.slane %v3721, 4
        %v3724 = vshll.u32 %v3595, 16
        %v3726 = vrot.slane %v3724, 5
        %v3727 = vsel %vm1445, %v3722, %v3726
        %v3729 = vshrl.u32 %v3596, 16
        %v3731 = vrot.slane %v3729, 4
        %v3732 = vshll.u32 %v3596, 16
        %v3734 = vrot.slane %v3732, 5
        %v3735 = vor.u32 %v3731, %v3734
        %v3736 = vrot.slane %v3735, 4
        %v3738 = vshll.u32 %v3597, 16
        %v3740 = vrot.slane %v3738, 5
        %v3741 = vsel %vm1445, %v3736, %v3740
        %v3742 = vshrl.u32 %v3597, 16
        %v3744 = vrot.slane %v3742, 4
        %v3745 = vor.u32 %v3744, %v3740
        %v3746 = vrot.slane %v3745, 4
        %v3748 = vshll.u32 %v3598, 16
        %v3750 = vrot.slane %v3748, 5
        %v3751 = vsel %vm1445, %v3746, %v3750
        %v3753 = vshrl.u32 %v3599, 16
        %v3755 = vrot.slane %v3753, 4
        %v3756 = vshll.u32 %v3599, 16
        %v3758 = vrot.slane %v3756, 5
        %v3759 = vor.u32 %v3755, %v3758
        %v3760 = vrot.slane %v3759, 4
        %v3762 = vshll.u32 %v3600, 16
        %v3764 = vrot.slane %v3762, 5
        %v3765 = vsel %vm1445, %v3760, %v3764
        %v3766 = vshrl.u32 %v3600, 16
        %v3768 = vrot.slane %v3766, 4
        %v3769 = vor.u32 %v3768, %v3764
        %v3770 = vrot.slane %v3769, 4
        %v3772 = vshll.u32 %v3601, 16
        %v3774 = vrot.slane %v3772, 5
        %v3775 = vsel %vm1445, %v3770, %v3774
        %v3777 = vshrl.u32 %v3602, 16
        %v3779 = vrot.slane %v3777, 4
        %v3780 = vshll.u32 %v3602, 16
        %v3782 = vrot.slane %v3780, 5
        %v3783 = vor.u32 %v3779, %v3782
        %v3784 = vrot.slane %v3783, 4
        %v3786 = vshll.u32 %v3603, 16
        %v3788 = vrot.slane %v3786, 5
        %v3789 = vsel %vm1445, %v3784, %v3788
        %v3790 = vshrl.u32 %v3603, 16
        %v3792 = vrot.slane %v3790, 4
        %v3793 = vor.u32 %v3792, %v3788
        %v3794 = vrot.slane %v3793, 4
        %v3796 = vshll.u32 %v3604, 16
        %v3798 = vrot.slane %v3796, 5
        %v3799 = vsel %vm1445, %v3794, %v3798
        %v3801 = vshrl.u32 %v3605, 16
        %v3803 = vrot.slane %v3801, 4
        %v3804 = vshll.u32 %v3605, 16
        %v3806 = vrot.slane %v3804, 5
        %v3807 = vor.u32 %v3803, %v3806
        %v3808 = vrot.slane %v3807, 4
        %v3810 = vshll.u32 %v3606, 16
        %v3812 = vrot.slane %v3810, 5
        %v3813 = vsel %vm1445, %v3808, %v3812
        %v3814 = vshrl.u32 %v3606, 16
        %v3816 = vrot.slane %v3814, 4
        %v3817 = vor.u32 %v3816, %v3812
        %v3818 = vrot.slane %v3817, 4
        %v3820 = vshll.u32 %v3607, 16
        %v3822 = vrot.slane %v3820, 5
        %v3823 = vsel %vm1445, %v3818, %v3822
        %v3825 = vshrl.u32 %v3608, 16
        %v3827 = vrot.slane %v3825, 4
        %v3828 = vshll.u32 %v3608, 16
        %v3830 = vrot.slane %v3828, 5
        %v3831 = vor.u32 %v3827, %v3830
        %v3832 = vrot.slane %v3831, 4
        %v3834 = vshll.u32 %v3609, 16
        %v3836 = vrot.slane %v3834, 5
        %v3837 = vsel %vm1445, %v3832, %v3836
        %v3838 = vshrl.u32 %v3609, 16
        %v3840 = vrot.slane %v3838, 4
        %v3841 = vor.u32 %v3840, %v3836
        %v3842 = vrot.slane %v3841, 4
        %v3844 = vshll.u32 %v3610, 16
        %v3846 = vrot.slane %v3844, 5
        %v3847 = vsel %vm1445, %v3842, %v3846
        %v3849 = vshrl.u32 %v3611, 16
        %v3851 = vrot.slane %v3849, 4
        %v3852 = vshll.u32 %v3611, 16
        %v3854 = vrot.slane %v3852, 5
        %v3855 = vor.u32 %v3851, %v3854
        %v3856 = vrot.slane %v3855, 4
        %v3858 = vshll.u32 %v3612, 16
        %v3860 = vrot.slane %v3858, 5
        %v3861 = vsel %vm1445, %v3856, %v3860
        %v3862 = vshrl.u32 %v3612, 16
        %v3864 = vrot.slane %v3862, 4
        %v3865 = vor.u32 %v3864, %v3860
        %v3866 = vrot.slane %v3865, 4
        %v3868 = vshll.u32 %v3613, 16
        %v3870 = vrot.slane %v3868, 5
        %v3871 = vsel %vm1445, %v3866, %v3870
        %v3873 = vshrl.u32 %v3614, 16
        %v3875 = vrot.slane %v3873, 4
        %v3876 = vshll.u32 %v3614, 16
        %v3878 = vrot.slane %v3876, 5
        %v3879 = vor.u32 %v3875, %v3878
        %v3880 = vrot.slane %v3879, 4
        %v3882 = vshll.u32 %v3615, 16
        %v3884 = vrot.slane %v3882, 5
        %v3885 = vsel %vm1445, %v3880, %v3884
        %v3886 = vshrl.u32 %v3615, 16
        %v3888 = vrot.slane %v3886, 4
        %v3889 = vor.u32 %v3888, %v3884
        %v3890 = vrot.slane %v3889, 4
        %v3892 = vshll.u32 %v3616, 16
        %v3894 = vrot.slane %v3892, 5
        %v3895 = vsel %vm1445, %v3890, %v3894
        %v3897 = vshrl.u32 %v3617, 16
        %v3899 = vrot.slane %v3897, 4
        %v3900 = vshll.u32 %v3617, 16
        %v3902 = vrot.slane %v3900, 5
        %v3903 = vor.u32 %v3899, %v3902
        %v3904 = vrot.slane %v3903, 4
        %v3906 = vshll.u32 %v3618, 16
        %v3908 = vrot.slane %v3906, 5
        %v3909 = vsel %vm1445, %v3904, %v3908
        %v3910 = vshrl.u32 %v3618, 16
        %v3912 = vrot.slane %v3910, 4
        %v3913 = vor.u32 %v3912, %v3908
        %v3914 = vrot.slane %v3913, 4
        %v3916 = vshll.u32 %v3619, 16
        %v3918 = vrot.slane %v3916, 5
        %v3919 = vsel %vm1445, %v3914, %v3918
        %v3921 = vshrl.u32 %v3620, 16
        %v3923 = vrot.slane %v3921, 4
        %v3924 = vshll.u32 %v3620, 16
        %v3926 = vrot.slane %v3924, 5
        %v3927 = vor.u32 %v3923, %v3926
        %v3928 = vrot.slane %v3927, 4
        %v3930 = vshll.u32 %v3621, 16
        %v3932 = vrot.slane %v3930, 5
        %v3933 = vsel %vm1445, %v3928, %v3932
        %v3934 = vshrl.u32 %v3621, 16
        %v3936 = vrot.slane %v3934, 4
        %v3937 = vor.u32 %v3936, %v3932
        %v3938 = vrot.slane %v3937, 4
        %v3940 = vshll.u32 %v3622, 16
        %v3942 = vrot.slane %v3940, 5
        %v3943 = vsel %vm1445, %v3938, %v3942
        %v3945 = vshrl.u32 %v3623, 16
        %v3947 = vrot.slane %v3945, 4
        %v3948 = vshll.u32 %v3623, 16
        %v3950 = vrot.slane %v3948, 5
        %v3951 = vor.u32 %v3947, %v3950
        %v3952 = vrot.slane %v3951, 4
        %v3954 = vshll.u32 %v3624, 16
        %v3956 = vrot.slane %v3954, 5
        %v3957 = vsel %vm1445, %v3952, %v3956
        %v3958 = vshrl.u32 %v3624, 16
        %v3960 = vrot.slane %v3958, 4
        %v3961 = vor.u32 %v3960, %v3956
        %v3962 = vrot.slane %v3961, 4
        %v3964 = vshll.u32 %v3625, 16
        %v3966 = vrot.slane %v3964, 5
        %v3967 = vsel %vm1445, %v3962, %v3966
        %v3969 = vshrl.u32 %v3626, 16
        %v3971 = vrot.slane %v3969, 4
        %v3972 = vshll.u32 %v3626, 16
        %v3974 = vrot.slane %v3972, 5
        %v3975 = vor.u32 %v3971, %v3974
        %v3976 = vrot.slane %v3975, 4
        %v3978 = vshll.u32 %v3627, 16
        %v3980 = vrot.slane %v3978, 5
        %v3981 = vsel %vm1445, %v3976, %v3980
        %v3982 = vshrl.u32 %v3627, 16
        %v3984 = vrot.slane %v3982, 4
        %v3985 = vor.u32 %v3984, %v3980
        %v3986 = vrot.slane %v3985, 4
        %v3988 = vshll.u32 %v3628, 16
        %v3990 = vrot.slane %v3988, 5
        %v3991 = vsel %vm1445, %v3986, %v3990
        %v3993 = vshrl.u32 %v3629, 16
        %v3995 = vrot.slane %v3993, 4
        %v3996 = vshll.u32 %v3629, 16
        %v3998 = vrot.slane %v3996, 5
        %v3999 = vor.u32 %v3995, %v3998
        %v4000 = vrot.slane %v3999, 4
        %v4002 = vshll.u32 %v3630, 16
        %v4004 = vrot.slane %v4002, 5
        %v4005 = vsel %vm1445, %v4000, %v4004
        %v4006 = vshrl.u32 %v3630, 16
        %v4008 = vrot.slane %v4006, 4
        %v4009 = vor.u32 %v4008, %v4004
        %v4010 = vrot.slane %v4009, 4
        %v4012 = vshll.u32 %v3631, 16
        %v4014 = vrot.slane %v4012, 5
        %v4015 = vsel %vm1445, %v4010, %v4014
        %4016 = vrot.lane.b32.xlu0 %v3645, 56
        %v4017 = vpop.permute.xlu0 %4016
        %4018 = vrot.lane.b32.xlu0 %v3655, 56
        %v4019 = vpop.permute.xlu0 %4018
        %4020 = vrot.lane.b32.xlu0 %v3669, 56
        %v4021 = vpop.permute.xlu0 %4020
        %4022 = vrot.lane.b32.xlu0 %v3679, 56
        %v4023 = vpop.permute.xlu0 %4022
        %4024 = vrot.lane.b32.xlu0 %v3693, 56
        %v4025 = vpop.permute.xlu0 %4024
        %4026 = vrot.lane.b32.xlu0 %v3703, 56
        %v4027 = vpop.permute.xlu0 %4026
        %4028 = vrot.lane.b32.xlu0 %v3717, 56
        %v4029 = vpop.permute.xlu0 %4028
        %4030 = vrot.lane.b32.xlu0 %v3727, 56
        %v4031 = vpop.permute.xlu0 %4030
        %4032 = vrot.lane.b32.xlu0 %v3741, 56
        %v4033 = vpop.permute.xlu0 %4032
        %4034 = vrot.lane.b32.xlu0 %v3751, 56
        %v4035 = vpop.permute.xlu0 %4034
        %4036 = vrot.lane.b32.xlu0 %v3765, 56
        %v4037 = vpop.permute.xlu0 %4036
        %4038 = vrot.lane.b32.xlu0 %v3775, 56
        %v4039 = vpop.permute.xlu0 %4038
        %4040 = vrot.lane.b32.xlu0 %v3789, 56
        %v4041 = vpop.permute.xlu0 %4040
        %4042 = vrot.lane.b32.xlu0 %v3799, 56
        %v4043 = vpop.permute.xlu0 %4042
        %4044 = vrot.lane.b32.xlu0 %v3813, 56
        %v4045 = vpop.permute.xlu0 %4044
        %4046 = vrot.lane.b32.xlu0 %v3823, 56
        %v4047 = vpop.permute.xlu0 %4046
        %4048 = vrot.lane.b32.xlu0 %v3837, 56
        %v4049 = vpop.permute.xlu0 %4048
        %4050 = vrot.lane.b32.xlu0 %v3847, 56
        %v4051 = vpop.permute.xlu0 %4050
        %4052 = vrot.lane.b32.xlu0 %v3861, 56
        %v4053 = vpop.permute.xlu0 %4052
        %4054 = vrot.lane.b32.xlu0 %v3871, 56
        %v4055 = vpop.permute.xlu0 %4054
        %4056 = vrot.lane.b32.xlu0 %v3885, 56
        %v4057 = vpop.permute.xlu0 %4056
        %4058 = vrot.lane.b32.xlu0 %v3895, 56
        %v4059 = vpop.permute.xlu0 %4058
        %4060 = vrot.lane.b32.xlu0 %v3909, 56
        %v4061 = vpop.permute.xlu0 %4060
        %4062 = vrot.lane.b32.xlu0 %v3919, 56
        %v4063 = vpop.permute.xlu0 %4062
        %4064 = vrot.lane.b32.xlu0 %v3933, 56
        %v4065 = vpop.permute.xlu0 %4064
        %4066 = vrot.lane.b32.xlu0 %v3943, 56
        %v4067 = vpop.permute.xlu0 %4066
        %4068 = vrot.lane.b32.xlu0 %v3957, 56
        %v4069 = vpop.permute.xlu0 %4068
        %4070 = vrot.lane.b32.xlu0 %v3967, 56
        %v4071 = vpop.permute.xlu0 %4070
        %4072 = vrot.lane.b32.xlu0 %v3981, 56
        %v4073 = vpop.permute.xlu0 %4072
        %4074 = vrot.lane.b32.xlu0 %v3991, 56
        %v4075 = vpop.permute.xlu0 %4074
        %4076 = vrot.lane.b32.xlu0 %v4005, 56
        %v4077 = vpop.permute.xlu0 %4076
        %4078 = vrot.lane.b32.xlu0 %v4015, 56
        %v4079 = vpop.permute.xlu0 %4078
        %vm4112 = vcmask 519616
        %4113 = vst.msk [vmem:[#allocation3] sm:$0xf] %vm4112, %v4017
        %4114 = vst.msk [vmem:[#allocation3 + $0x4] sm:$0xf] %vm4112, %v4019
        %4115 = vst.msk [vmem:[#allocation3 + $0x8] sm:$0xf] %vm4112, %v4021
        %4116 = vst.msk [vmem:[#allocation3 + $0xc] sm:$0xf] %vm4112, %v4023
        %4117 = vst.msk [vmem:[#allocation3 + $0x10] sm:$0xf] %vm4112, %v4025
        %4118 = vst.msk [vmem:[#allocation3 + $0x14] sm:$0xf] %vm4112, %v4027
        %4119 = vst.msk [vmem:[#allocation3 + $0x18] sm:$0xf] %vm4112, %v4029
        %4120 = vst.msk [vmem:[#allocation3 + $0x1c] sm:$0xf] %vm4112, %v4031
        %4121 = vst.msk [vmem:[#allocation3 + $0x20] sm:$0xf] %vm4112, %v4033
        %4122 = vst.msk [vmem:[#allocation3 + $0x24] sm:$0xf] %vm4112, %v4035
        %4123 = vst.msk [vmem:[#allocation3 + $0x28] sm:$0xf] %vm4112, %v4037
        %4124 = vst.msk [vmem:[#allocation3 + $0x2c] sm:$0xf] %vm4112, %v4039
        %4125 = vst.msk [vmem:[#allocation3 + $0x30] sm:$0xf] %vm4112, %v4041
        %4126 = vst.msk [vmem:[#allocation3 + $0x34] sm:$0xf] %vm4112, %v4043
        %4127 = vst.msk [vmem:[#allocation3 + $0x38] sm:$0xf] %vm4112, %v4045
        %4128 = vst.msk [vmem:[#allocation3 + $0x3c] sm:$0xf] %vm4112, %v4047
        %4129 = vst.msk [vmem:[#allocation3 + $0x40] sm:$0xf] %vm4112, %v4049
        %4130 = vst.msk [vmem:[#allocation3 + $0x44] sm:$0xf] %vm4112, %v4051
        %4131 = vst.msk [vmem:[#allocation3 + $0x48] sm:$0xf] %vm4112, %v4053
        %4132 = vst.msk [vmem:[#allocation3 + $0x4c] sm:$0xf] %vm4112, %v4055
        %4133 = vst.msk [vmem:[#allocation3 + $0x50] sm:$0xf] %vm4112, %v4057
        %4134 = vst.msk [vmem:[#allocation3 + $0x54] sm:$0xf] %vm4112, %v4059
        %4135 = vst.msk [vmem:[#allocation3 + $0x58] sm:$0xf] %vm4112, %v4061
        %4136 = vst.msk [vmem:[#allocation3 + $0x5c] sm:$0xf] %vm4112, %v4063
        %4137 = vst.msk [vmem:[#allocation3 + $0x60] sm:$0xf] %vm4112, %v4065
        %4138 = vst.msk [vmem:[#allocation3 + $0x64] sm:$0xf] %vm4112, %v4067
        %4139 = vst.msk [vmem:[#allocation3 + $0x68] sm:$0xf] %vm4112, %v4069
        %4140 = vst.msk [vmem:[#allocation3 + $0x6c] sm:$0xf] %vm4112, %v4071
        %4141 = vst.msk [vmem:[#allocation3 + $0x70] sm:$0xf] %vm4112, %v4073
        %4142 = vst.msk [vmem:[#allocation3 + $0x74] sm:$0xf] %vm4112, %v4075
        %4143 = vst.msk [vmem:[#allocation3 + $0x78] sm:$0xf] %vm4112, %v4077
        %4144 = vst.msk [vmem:[#allocation3 + $0x7c] sm:$0xf] %vm4112, %v4079
        %v4145 = vld [vmem:[%s3390] sm:$0xe]
        %v4146 = vld [vmem:[%s3390 + $0x4] sm:$0xf]
        %v4147 = vld [vmem:[%s3390 + $0x8] sm:$0x1]
        %v4148 = vld [vmem:[%s3390 + $0xc] sm:$0xe]
        %v4149 = vld [vmem:[%s3390 + $0x10] sm:$0xf]
        %v4150 = vld [vmem:[%s3390 + $0x14] sm:$0x1]
        %v4151 = vld [vmem:[%s3390 + $0x18] sm:$0xe]
        %v4152 = vld [vmem:[%s3390 + $0x1c] sm:$0xf]
        %v4153 = vld [vmem:[%s3390 + $0x20] sm:$0x1]
        %v4154 = vld [vmem:[%s3390 + $0x24] sm:$0xe]
        %v4155 = vld [vmem:[%s3390 + $0x28] sm:$0xf]
        %v4156 = vld [vmem:[%s3390 + $0x2c] sm:$0x1]
        %v4157 = vld [vmem:[%s3390 + $0x30] sm:$0xe]
        %v4158 = vld [vmem:[%s3390 + $0x34] sm:$0xf]
        %v4159 = vld [vmem:[%s3390 + $0x38] sm:$0x1]
        %v4160 = vld [vmem:[%s3390 + $0x3c] sm:$0xe]
        %v4161 = vld [vmem:[%s3390 + $0x40] sm:$0xf]
        %v4162 = vld [vmem:[%s3390 + $0x44] sm:$0x1]
        %v4163 = vld [vmem:[%s3390 + $0x48] sm:$0xe]
        %v4164 = vld [vmem:[%s3390 + $0x4c] sm:$0xf]
        %v4165 = vld [vmem:[%s3390 + $0x50] sm:$0x1]
        %v4166 = vld [vmem:[%s3390 + $0x54] sm:$0xe]
        %v4167 = vld [vmem:[%s3390 + $0x58] sm:$0xf]
        %v4168 = vld [vmem:[%s3390 + $0x5c] sm:$0x1]
        %v4169 = vld [vmem:[%s3390 + $0x60] sm:$0xe]
        %v4170 = vld [vmem:[%s3390 + $0x64] sm:$0xf]
        %v4171 = vld [vmem:[%s3390 + $0x68] sm:$0x1]
        %v4172 = vld [vmem:[%s3390 + $0x6c] sm:$0xe]
        %v4173 = vld [vmem:[%s3390 + $0x70] sm:$0xf]
        %v4174 = vld [vmem:[%s3390 + $0x74] sm:$0x1]
        %v4175 = vld [vmem:[%s3390 + $0x78] sm:$0xe]
        %v4176 = vld [vmem:[%s3390 + $0x7c] sm:$0xf]
        %v4177 = vld [vmem:[%s3390 + $0x80] sm:$0x1]
        %v4178 = vld [vmem:[%s3390 + $0x84] sm:$0xe]
        %v4179 = vld [vmem:[%s3390 + $0x88] sm:$0xf]
        %v4180 = vld [vmem:[%s3390 + $0x8c] sm:$0x1]
        %v4181 = vld [vmem:[%s3390 + $0x90] sm:$0xe]
        %v4182 = vld [vmem:[%s3390 + $0x94] sm:$0xf]
        %v4183 = vld [vmem:[%s3390 + $0x98] sm:$0x1]
        %v4184 = vld [vmem:[%s3390 + $0x9c] sm:$0xe]
        %v4185 = vld [vmem:[%s3390 + $0xa0] sm:$0xf]
        %v4186 = vld [vmem:[%s3390 + $0xa4] sm:$0x1]
        %v4187 = vld [vmem:[%s3390 + $0xa8] sm:$0xe]
        %v4188 = vld [vmem:[%s3390 + $0xac] sm:$0xf]
        %v4189 = vld [vmem:[%s3390 + $0xb0] sm:$0x1]
        %v4190 = vld [vmem:[%s3390 + $0xb4] sm:$0xe]
        %v4191 = vld [vmem:[%s3390 + $0xb8] sm:$0xf]
        %v4192 = vld [vmem:[%s3390 + $0xbc] sm:$0x1]
        %v4241 = vrot.slane %v4145, 5
        %v4242 = vrot.slane %v4241, 4
        %v4243 = vrot.slane %v4146, 5
        %v4244 = vsel %vm2057, %v4242, %v4243
        %v4245 = vrot.slane %v4243, 4
        %v4246 = vrot.slane %v4147, 5
        %v4247 = vsel %vm2057, %v4245, %v4246
        %v4248 = vrot.slane %v4148, 5
        %v4249 = vrot.slane %v4248, 4
        %v4250 = vrot.slane %v4149, 5
        %v4251 = vsel %vm2057, %v4249, %v4250
        %v4252 = vrot.slane %v4250, 4
        %v4253 = vrot.slane %v4150, 5
        %v4254 = vsel %vm2057, %v4252, %v4253
        %v4255 = vrot.slane %v4151, 5
        %v4256 = vrot.slane %v4255, 4
        %v4257 = vrot.slane %v4152, 5
        %v4258 = vsel %vm2057, %v4256, %v4257
        %v4259 = vrot.slane %v4257, 4
        %v4260 = vrot.slane %v4153, 5
        %v4261 = vsel %vm2057, %v4259, %v4260
        %v4262 = vrot.slane %v4154, 5
        %v4263 = vrot.slane %v4262, 4
        %v4264 = vrot.slane %v4155, 5
        %v4265 = vsel %vm2057, %v4263, %v4264
        %v4266 = vrot.slane %v4264, 4
        %v4267 = vrot.slane %v4156, 5
        %v4268 = vsel %vm2057, %v4266, %v4267
        %v4269 = vrot.slane %v4157, 5
        %v4270 = vrot.slane %v4269, 4
        %v4271 = vrot.slane %v4158, 5
        %v4272 = vsel %vm2057, %v4270, %v4271
        %v4273 = vrot.slane %v4271, 4
        %v4274 = vrot.slane %v4159, 5
        %v4275 = vsel %vm2057, %v4273, %v4274
        %v4276 = vrot.slane %v4160, 5
        %v4277 = vrot.slane %v4276, 4
        %v4278 = vrot.slane %v4161, 5
        %v4279 = vsel %vm2057, %v4277, %v4278
        %v4280 = vrot.slane %v4278, 4
        %v4281 = vrot.slane %v4162, 5
        %v4282 = vsel %vm2057, %v4280, %v4281
        %v4283 = vrot.slane %v4163, 5
        %v4284 = vrot.slane %v4283, 4
        %v4285 = vrot.slane %v4164, 5
        %v4286 = vsel %vm2057, %v4284, %v4285
        %v4287 = vrot.slane %v4285, 4
        %v4288 = vrot.slane %v4165, 5
        %v4289 = vsel %vm2057, %v4287, %v4288
        %v4290 = vrot.slane %v4166, 5
        %v4291 = vrot.slane %v4290, 4
        %v4292 = vrot.slane %v4167, 5
        %v4293 = vsel %vm2057, %v4291, %v4292
        %v4294 = vrot.slane %v4292, 4
        %v4295 = vrot.slane %v4168, 5
        %v4296 = vsel %vm2057, %v4294, %v4295
        %v4297 = vrot.slane %v4169, 5
        %v4298 = vrot.slane %v4297, 4
        %v4299 = vrot.slane %v4170, 5
        %v4300 = vsel %vm2057, %v4298, %v4299
        %v4301 = vrot.slane %v4299, 4
        %v4302 = vrot.slane %v4171, 5
        %v4303 = vsel %vm2057, %v4301, %v4302
        %v4304 = vrot.slane %v4172, 5
        %v4305 = vrot.slane %v4304, 4
        %v4306 = vrot.slane %v4173, 5
        %v4307 = vsel %vm2057, %v4305, %v4306
        %v4308 = vrot.slane %v4306, 4
        %v4309 = vrot.slane %v4174, 5
        %v4310 = vsel %vm2057, %v4308, %v4309
        %v4311 = vrot.slane %v4175, 5
        %v4312 = vrot.slane %v4311, 4
        %v4313 = vrot.slane %v4176, 5
        %v4314 = vsel %vm2057, %v4312, %v4313
        %v4315 = vrot.slane %v4313, 4
        %v4316 = vrot.slane %v4177, 5
        %v4317 = vsel %vm2057, %v4315, %v4316
        %v4318 = vrot.slane %v4178, 5
        %v4319 = vrot.slane %v4318, 4
        %v4320 = vrot.slane %v4179, 5
        %v4321 = vsel %vm2057, %v4319, %v4320
        %v4322 = vrot.slane %v4320, 4
        %v4323 = vrot.slane %v4180, 5
        %v4324 = vsel %vm2057, %v4322, %v4323
        %v4325 = vrot.slane %v4181, 5
        %v4326 = vrot.slane %v4325, 4
        %v4327 = vrot.slane %v4182, 5
        %v4328 = vsel %vm2057, %v4326, %v4327
        %v4329 = vrot.slane %v4327, 4
        %v4330 = vrot.slane %v4183, 5
        %v4331 = vsel %vm2057, %v4329, %v4330
        %v4332 = vrot.slane %v4184, 5
        %v4333 = vrot.slane %v4332, 4
        %v4334 = vrot.slane %v4185, 5
        %v4335 = vsel %vm2057, %v4333, %v4334
        %v4336 = vrot.slane %v4334, 4
        %v4337 = vrot.slane %v4186, 5
        %v4338 = vsel %vm2057, %v4336, %v4337
        %v4339 = vrot.slane %v4187, 5
        %v4340 = vrot.slane %v4339, 4
        %v4341 = vrot.slane %v4188, 5
        %v4342 = vsel %vm2057, %v4340, %v4341
        %v4343 = vrot.slane %v4341, 4
        %v4344 = vrot.slane %v4189, 5
        %v4345 = vsel %vm2057, %v4343, %v4344
        %v4346 = vrot.slane %v4190, 5
        %v4347 = vrot.slane %v4346, 4
        %v4348 = vrot.slane %v4191, 5
        %v4349 = vsel %vm2057, %v4347, %v4348
        %v4350 = vrot.slane %v4348, 4
        %v4351 = vrot.slane %v4192, 5
        %v4352 = vsel %vm2057, %v4350, %v4351
        %4353 = vrot.lane.b32.xlu0 %v4244, 64
        %v4354 = vpop.permute.xlu0 %4353
        %4355 = vrot.lane.b32.xlu0 %v4247, 64
        %v4356 = vpop.permute.xlu0 %4355
        %4357 = vrot.lane.b32.xlu0 %v4251, 64
        %v4358 = vpop.permute.xlu0 %4357
        %4359 = vrot.lane.b32.xlu0 %v4254, 64
        %v4360 = vpop.permute.xlu0 %4359
        %4361 = vrot.lane.b32.xlu0 %v4258, 64
        %v4362 = vpop.permute.xlu0 %4361
        %4363 = vrot.lane.b32.xlu0 %v4261, 64
        %v4364 = vpop.permute.xlu0 %4363
        %4365 = vrot.lane.b32.xlu0 %v4265, 64
        %v4366 = vpop.permute.xlu0 %4365
        %4367 = vrot.lane.b32.xlu0 %v4268, 64
        %v4368 = vpop.permute.xlu0 %4367
        %4369 = vrot.lane.b32.xlu0 %v4272, 64
        %v4370 = vpop.permute.xlu0 %4369
        %4371 = vrot.lane.b32.xlu0 %v4275, 64
        %v4372 = vpop.permute.xlu0 %4371
        %4373 = vrot.lane.b32.xlu0 %v4279, 64
        %v4374 = vpop.permute.xlu0 %4373
        %4375 = vrot.lane.b32.xlu0 %v4282, 64
        %v4376 = vpop.permute.xlu0 %4375
        %4377 = vrot.lane.b32.xlu0 %v4286, 64
        %v4378 = vpop.permute.xlu0 %4377
        %4379 = vrot.lane.b32.xlu0 %v4289, 64
        %v4380 = vpop.permute.xlu0 %4379
        %4381 = vrot.lane.b32.xlu0 %v4293, 64
        %v4382 = vpop.permute.xlu0 %4381
        %4383 = vrot.lane.b32.xlu0 %v4296, 64
        %v4384 = vpop.permute.xlu0 %4383
        %4385 = vrot.lane.b32.xlu0 %v4300, 64
        %v4386 = vpop.permute.xlu0 %4385
        %4387 = vrot.lane.b32.xlu0 %v4303, 64
        %v4388 = vpop.permute.xlu0 %4387
        %4389 = vrot.lane.b32.xlu0 %v4307, 64
        %v4390 = vpop.permute.xlu0 %4389
        %4391 = vrot.lane.b32.xlu0 %v4310, 64
        %v4392 = vpop.permute.xlu0 %4391
        %4393 = vrot.lane.b32.xlu0 %v4314, 64
        %v4394 = vpop.permute.xlu0 %4393
        %4395 = vrot.lane.b32.xlu0 %v4317, 64
        %v4396 = vpop.permute.xlu0 %4395
        %4397 = vrot.lane.b32.xlu0 %v4321, 64
        %v4398 = vpop.permute.xlu0 %4397
        %4399 = vrot.lane.b32.xlu0 %v4324, 64
        %v4400 = vpop.permute.xlu0 %4399
        %4401 = vrot.lane.b32.xlu0 %v4328, 64
        %v4402 = vpop.permute.xlu0 %4401
        %4403 = vrot.lane.b32.xlu0 %v4331, 64
        %v4404 = vpop.permute.xlu0 %4403
        %4405 = vrot.lane.b32.xlu0 %v4335, 64
        %v4406 = vpop.permute.xlu0 %4405
        %4407 = vrot.lane.b32.xlu0 %v4338, 64
        %v4408 = vpop.permute.xlu0 %4407
        %4409 = vrot.lane.b32.xlu0 %v4342, 64
        %v4410 = vpop.permute.xlu0 %4409
        %4411 = vrot.lane.b32.xlu0 %v4345, 64
        %v4412 = vpop.permute.xlu0 %4411
        %4413 = vrot.lane.b32.xlu0 %v4349, 64
        %v4414 = vpop.permute.xlu0 %4413
        %4415 = vrot.lane.b32.xlu0 %v4352, 64
        %v4416 = vpop.permute.xlu0 %4415
        %vm4449 = vcmask 585216
        %4450 = vst.msk [vmem:[#allocation3] sm:$0xf] %vm4449, %v4354
        %4451 = vst.msk [vmem:[#allocation3 + $0x4] sm:$0xf] %vm4449, %v4356
        %4452 = vst.msk [vmem:[#allocation3 + $0x8] sm:$0xf] %vm4449, %v4358
        %4453 = vst.msk [vmem:[#allocation3 + $0xc] sm:$0xf] %vm4449, %v4360
        %4454 = vst.msk [vmem:[#allocation3 + $0x10] sm:$0xf] %vm4449, %v4362
        %4455 = vst.msk [vmem:[#allocation3 + $0x14] sm:$0xf] %vm4449, %v4364
        %4456 = vst.msk [vmem:[#allocation3 + $0x18] sm:$0xf] %vm4449, %v4366
        %4457 = vst.msk [vmem:[#allocation3 + $0x1c] sm:$0xf] %vm4449, %v4368
        %4458 = vst.msk [vmem:[#allocation3 + $0x20] sm:$0xf] %vm4449, %v4370
        %4459 = vst.msk [vmem:[#allocation3 + $0x24] sm:$0xf] %vm4449, %v4372
        %4460 = vst.msk [vmem:[#allocation3 + $0x28] sm:$0xf] %vm4449, %v4374
        %4461 = vst.msk [vmem:[#allocation3 + $0x2c] sm:$0xf] %vm4449, %v4376
        %4462 = vst.msk [vmem:[#allocation3 + $0x30] sm:$0xf] %vm4449, %v4378
        %4463 = vst.msk [vmem:[#allocation3 + $0x34] sm:$0xf] %vm4449, %v4380
        %4464 = vst.msk [vmem:[#allocation3 + $0x38] sm:$0xf] %vm4449, %v4382
        %4465 = vst.msk [vmem:[#allocation3 + $0x3c] sm:$0xf] %vm4449, %v4384
        %4466 = vst.msk [vmem:[#allocation3 + $0x40] sm:$0xf] %vm4449, %v4386
        %4467 = vst.msk [vmem:[#allocation3 + $0x44] sm:$0xf] %vm4449, %v4388
        %4468 = vst.msk [vmem:[#allocation3 + $0x48] sm:$0xf] %vm4449, %v4390
        %4469 = vst.msk [vmem:[#allocation3 + $0x4c] sm:$0xf] %vm4449, %v4392
        %4470 = vst.msk [vmem:[#allocation3 + $0x50] sm:$0xf] %vm4449, %v4394
        %4471 = vst.msk [vmem:[#allocation3 + $0x54] sm:$0xf] %vm4449, %v4396
        %4472 = vst.msk [vmem:[#allocation3 + $0x58] sm:$0xf] %vm4449, %v4398
        %4473 = vst.msk [vmem:[#allocation3 + $0x5c] sm:$0xf] %vm4449, %v4400
        %4474 = vst.msk [vmem:[#allocation3 + $0x60] sm:$0xf] %vm4449, %v4402
        %4475 = vst.msk [vmem:[#allocation3 + $0x64] sm:$0xf] %vm4449, %v4404
        %4476 = vst.msk [vmem:[#allocation3 + $0x68] sm:$0xf] %vm4449, %v4406
        %4477 = vst.msk [vmem:[#allocation3 + $0x6c] sm:$0xf] %vm4449, %v4408
        %4478 = vst.msk [vmem:[#allocation3 + $0x70] sm:$0xf] %vm4449, %v4410
        %4479 = vst.msk [vmem:[#allocation3 + $0x74] sm:$0xf] %vm4449, %v4412
        %4480 = vst.msk [vmem:[#allocation3 + $0x78] sm:$0xf] %vm4449, %v4414
        %4481 = vst.msk [vmem:[#allocation3 + $0x7c] sm:$0xf] %vm4449, %v4416
        %v4482 = vld [vmem:[#allocation3] sm:$0xf]
        %v4483 = vld [vmem:[#allocation3 + $0x4] sm:$0xf]
        %v4484 = vld [vmem:[#allocation3 + $0x8] sm:$0xf]
        %v4485 = vld [vmem:[#allocation3 + $0xc] sm:$0xf]
        %v4486 = vld [vmem:[#allocation3 + $0x10] sm:$0xf]
        %v4487 = vld [vmem:[#allocation3 + $0x14] sm:$0xf]
        %v4488 = vld [vmem:[#allocation3 + $0x18] sm:$0xf]
        %v4489 = vld [vmem:[#allocation3 + $0x1c] sm:$0xf]
        %v4490 = vld [vmem:[#allocation3 + $0x20] sm:$0xf]
        %v4491 = vld [vmem:[#allocation3 + $0x24] sm:$0xf]
        %v4492 = vld [vmem:[#allocation3 + $0x28] sm:$0xf]
        %v4493 = vld [vmem:[#allocation3 + $0x2c] sm:$0xf]
        %v4494 = vld [vmem:[#allocation3 + $0x30] sm:$0xf]
        %v4495 = vld [vmem:[#allocation3 + $0x34] sm:$0xf]
        %v4496 = vld [vmem:[#allocation3 + $0x38] sm:$0xf]
        %v4497 = vld [vmem:[#allocation3 + $0x3c] sm:$0xf]
        %v4498 = vld [vmem:[#allocation3 + $0x40] sm:$0xf]
        %v4499 = vld [vmem:[#allocation3 + $0x44] sm:$0xf]
        %v4500 = vld [vmem:[#allocation3 + $0x48] sm:$0xf]
        %v4501 = vld [vmem:[#allocation3 + $0x4c] sm:$0xf]
        %v4502 = vld [vmem:[#allocation3 + $0x50] sm:$0xf]
        %v4503 = vld [vmem:[#allocation3 + $0x54] sm:$0xf]
        %v4504 = vld [vmem:[#allocation3 + $0x58] sm:$0xf]
        %v4505 = vld [vmem:[#allocation3 + $0x5c] sm:$0xf]
        %v4506 = vld [vmem:[#allocation3 + $0x60] sm:$0xf]
        %v4507 = vld [vmem:[#allocation3 + $0x64] sm:$0xf]
        %v4508 = vld [vmem:[#allocation3 + $0x68] sm:$0xf]
        %v4509 = vld [vmem:[#allocation3 + $0x6c] sm:$0xf]
        %v4510 = vld [vmem:[#allocation3 + $0x70] sm:$0xf]
        %v4511 = vld [vmem:[#allocation3 + $0x74] sm:$0xf]
        %v4512 = vld [vmem:[#allocation3 + $0x78] sm:$0xf]
        %v4513 = vld [vmem:[#allocation3 + $0x7c] sm:$0xf]
        %v4514 = vld [vmem:[%s3] sm:$0xf]
        %v4515 = vld [vmem:[%s3 + $0x4] sm:$0xf]
        %v4516 = vld [vmem:[%s3 + $0x8] sm:$0xf]
        %v4517 = vld [vmem:[%s3 + $0xc] sm:$0xf]
        %v4518 = vld [vmem:[%s3 + $0x10] sm:$0xf]
        %v4519 = vld [vmem:[%s3 + $0x14] sm:$0xf]
        %v4520 = vld [vmem:[%s3 + $0x18] sm:$0xf]
        %v4521 = vld [vmem:[%s3 + $0x1c] sm:$0xf]
        %v4522 = vld [vmem:[%s3 + $0x20] sm:$0xf]
        %v4523 = vld [vmem:[%s4] sm:$0x1]
        %v4525 = vlaneseq
        %v4526 = vshrl.u32 %v4525, 7
        %v4527 = vsub.s32 0, %v4526
        %v4528 = vrot.slane %v4523, %v4527
        %v4562 = vunpack.c.l.b16 %v4482
        %v4563 = vunpack.c.l.b16 %v4483
        %v4564 = vunpack.c.l.b16 %v4484
        %v4565 = vunpack.c.l.b16 %v4485
        %v4566 = vunpack.c.l.b16 %v4486
        %v4567 = vunpack.c.l.b16 %v4487
        %v4568 = vunpack.c.l.b16 %v4488
        %v4569 = vunpack.c.l.b16 %v4489
        %v4570 = vunpack.c.l.b16 %v4490
        %v4571 = vunpack.c.l.b16 %v4491
        %v4572 = vunpack.c.l.b16 %v4492
        %v4573 = vunpack.c.l.b16 %v4493
        %v4574 = vunpack.c.l.b16 %v4494
        %v4575 = vunpack.c.l.b16 %v4495
        %v4576 = vunpack.c.l.b16 %v4496
        %v4577 = vunpack.c.l.b16 %v4497
        %v4578 = vunpack.c.l.b16 %v4498
        %v4579 = vunpack.c.l.b16 %v4499
        %v4580 = vunpack.c.l.b16 %v4500
        %v4581 = vunpack.c.l.b16 %v4501
        %v4582 = vunpack.c.l.b16 %v4502
        %v4583 = vunpack.c.l.b16 %v4503
        %v4584 = vunpack.c.l.b16 %v4504
        %v4585 = vunpack.c.l.b16 %v4505
        %v4586 = vunpack.c.l.b16 %v4506
        %v4587 = vunpack.c.l.b16 %v4507
        %v4588 = vunpack.c.l.b16 %v4508
        %v4589 = vunpack.c.l.b16 %v4509
        %v4590 = vunpack.c.l.b16 %v4510
        %v4591 = vunpack.c.l.b16 %v4511
        %v4592 = vunpack.c.l.b16 %v4512
        %v4593 = vunpack.c.l.b16 %v4513
        %v4594 = vpack.c.b16 %v4563, %v4562
        %v4595 = vpack.c.b16 %v4565, %v4564
        %v4596 = vpack.c.b16 %v4567, %v4566
        %v4597 = vpack.c.b16 %v4569, %v4568
        %v4598 = vpack.c.b16 %v4571, %v4570
        %v4599 = vpack.c.b16 %v4573, %v4572
        %v4600 = vpack.c.b16 %v4575, %v4574
        %v4601 = vpack.c.b16 %v4577, %v4576
        %v4602 = vpack.c.b16 %v4579, %v4578
        %v4603 = vpack.c.b16 %v4581, %v4580
        %v4604 = vpack.c.b16 %v4583, %v4582
        %v4605 = vpack.c.b16 %v4585, %v4584
        %v4606 = vpack.c.b16 %v4587, %v4586
        %v4607 = vpack.c.b16 %v4589, %v4588
        %v4608 = vpack.c.b16 %v4591, %v4590
        %v4609 = vpack.c.b16 %v4593, %v4592
        %v4619 = vunpack.c.l.b16 %v4514
        %v4620 = vunpack.c.l.b16 %v4515
        %v4621 = vunpack.c.l.b16 %v4516
        %v4622 = vunpack.c.l.b16 %v4517
        %v4623 = vunpack.c.l.b16 %v4518
        %v4624 = vunpack.c.l.b16 %v4519
        %v4625 = vunpack.c.l.b16 %v4520
        %v4626 = vunpack.c.l.b16 %v4521
        %v4627 = vunpack.c.l.b16 %v4522
        %v4628 = vpack.c.b16 %v4620, %v4619
        %v4629 = vpack.c.b16 %v4622, %v4621
        %v4630 = vpack.c.b16 %v4624, %v4623
        %v4631 = vpack.c.b16 %v4626, %v4625
        %v4632 = vpack.c.b16 %v4627, %v4627
        %vm4637 = vcmask 588800
        %v4639 = vsel %vm4637, %v4594, 0
        %v4642 = vsel %vm4637, %v4595, 0
        %v4645 = vsel %vm4637, %v4596, 0
        %v4648 = vsel %vm4637, %v4597, 0
        %v4651 = vsel %vm4637, %v4598, 0
        %v4654 = vsel %vm4637, %v4599, 0
        %v4657 = vsel %vm4637, %v4600, 0
        %v4660 = vsel %vm4637, %v4601, 0
        %v4663 = vsel %vm4637, %v4602, 0
        %v4666 = vsel %vm4637, %v4603, 0
        %v4669 = vsel %vm4637, %v4604, 0
        %v4672 = vsel %vm4637, %v4605, 0
        %v4675 = vsel %vm4637, %v4606, 0
        %v4678 = vsel %vm4637, %v4607, 0
        %v4681 = vsel %vm4637, %v4608, 0
        %v4684 = vsel %vm4637, %v4609, 0
        %vm4686 = vcmask 1043456
        %v4688 = vsel %vm4686, %v4632, 0
        %4690 = vmatprep.subr.bf16.mxu0 0
        %4691 = vmatpush1.bf16.msra.mxu0 0
        %4692 = vmatprep.subr.bf16.mxu0 0
        %4693 = vmatpush1.bf16.msra.mxu0 0
        %4694 = vmatprep.subr.bf16.mxu0 0
        %4695 = vmatpush1.bf16.msra.mxu0 0
        %4696 = vmatprep.subr.bf16.mxu0 0
        %4697 = vmatpush1.bf16.msra.mxu0 %v4688
        %4698 = vmatprep.subr.bf16.mxu0 0
        %4699 = vmatpush1.bf16.msra.mxu0 %v4631
        %4700 = vmatprep.subr.bf16.mxu0 0
        %4701 = vmatpush1.bf16.msra.mxu0 %v4630
        %4702 = vmatprep.subr.bf16.mxu0 0
        %4703 = vmatpush1.bf16.msra.mxu0 %v4629
        %4704 = vmatprep.subr.bf16.mxu0 0
        %4705 = vmatpush1.bf16.msra.mxu0 %v4628
        %4706 = vmatprep.subr.bf16.mxu0 0
        %4707 = vmatpush2.bf16.msra.mxu0 0
        %4708 = vmatprep.subr.bf16.mxu0 0
        %4709 = vmatpush2.bf16.msra.mxu0 0
        %4710 = vmatprep.subr.bf16.mxu0 0
        %4711 = vmatpush2.bf16.msra.mxu0 0
        %4712 = vmatprep.subr.bf16.mxu0 0
        %4713 = vmatpush2.bf16.msra.mxu0 0
        %4714 = vmatprep.subr.bf16.mxu0 0
        %4715 = vmatpush2.bf16.msra.mxu0 0
        %4716 = vmatprep.subr.bf16.mxu0 0
        %4717 = vmatpush2.bf16.msra.mxu0 0
        %4718 = vmatprep.subr.bf16.mxu0 0
        %4719 = vmatpush2.bf16.msra.mxu0 0
        %4720 = vmatprep.subr.bf16.mxu0 0
        %4721 = vmatpush2.bf16.msra.mxu0 0
        %4722 = vmatprep.mubr.bf16.mxu0 0
        %4723 = vmatmul.mubr.bf16.gmra.mxu0 %v4639
        %v4724 = vpop.f32.mrf.mxu0
        %v4725 = vadd.f32 %v4528, %v4724
        %v4726 = vpop.f32.mrf.mxu0
        %v4727 = vpop.f32.mrf.mxu0
        %v4728 = vadd.f32 %v4528, %v4727
        %v4729 = vpop.f32.mrf.mxu0
        %4730 = vmatprep.mubr.bf16.mxu0 0
        %4731 = vmatmul.mubr.bf16.gmra.mxu0 %v4642
        %v4732 = vpop.f32.mrf.mxu0
        %v4733 = vadd.f32 %v4528, %v4732
        %v4734 = vpop.f32.mrf.mxu0
        %v4735 = vpop.f32.mrf.mxu0
        %v4736 = vadd.f32 %v4528, %v4735
        %v4737 = vpop.f32.mrf.mxu0
        %4738 = vmatprep.mubr.bf16.mxu0 0
        %4739 = vmatmul.mubr.bf16.gmra.mxu0 %v4645
        %v4740 = vpop.f32.mrf.mxu0
        %v4741 = vadd.f32 %v4528, %v4740
        %v4742 = vpop.f32.mrf.mxu0
        %v4743 = vpop.f32.mrf.mxu0
        %v4744 = vadd.f32 %v4528, %v4743
        %v4745 = vpop.f32.mrf.mxu0
        %4746 = vmatprep.mubr.bf16.mxu0 0
        %4747 = vmatmul.mubr.bf16.gmra.mxu0 %v4648
        %v4748 = vpop.f32.mrf.mxu0
        %v4749 = vadd.f32 %v4528, %v4748
        %v4750 = vpop.f32.mrf.mxu0
        %v4751 = vpop.f32.mrf.mxu0
        %v4752 = vadd.f32 %v4528, %v4751
        %v4753 = vpop.f32.mrf.mxu0
        %4754 = vmatprep.mubr.bf16.mxu0 0
        %4755 = vmatmul.mubr.bf16.gmra.mxu0 %v4651
        %v4756 = vpop.f32.mrf.mxu0
        %v4757 = vadd.f32 %v4528, %v4756
        %v4758 = vpop.f32.mrf.mxu0
        %v4759 = vpop.f32.mrf.mxu0
        %v4760 = vadd.f32 %v4528, %v4759
        %v4761 = vpop.f32.mrf.mxu0
        %4762 = vmatprep.mubr.bf16.mxu0 0
        %4763 = vmatmul.mubr.bf16.gmra.mxu0 %v4654
        %v4764 = vpop.f32.mrf.mxu0
        %v4765 = vadd.f32 %v4528, %v4764
        %v4766 = vpop.f32.mrf.mxu0
        %v4767 = vpop.f32.mrf.mxu0
        %v4768 = vadd.f32 %v4528, %v4767
        %v4769 = vpop.f32.mrf.mxu0
        %4770 = vmatprep.mubr.bf16.mxu0 0
        %4771 = vmatmul.mubr.bf16.gmra.mxu0 %v4657
        %v4772 = vpop.f32.mrf.mxu0
        %v4773 = vadd.f32 %v4528, %v4772
        %v4774 = vpop.f32.mrf.mxu0
        %v4775 = vpop.f32.mrf.mxu0
        %v4776 = vadd.f32 %v4528, %v4775
        %v4777 = vpop.f32.mrf.mxu0
        %4778 = vmatprep.mubr.bf16.mxu0 0
        %4779 = vmatmul.mubr.bf16.gmra.mxu0 %v4660
        %v4780 = vpop.f32.mrf.mxu0
        %v4781 = vadd.f32 %v4528, %v4780
        %v4782 = vpop.f32.mrf.mxu0
        %v4783 = vpop.f32.mrf.mxu0
        %v4784 = vadd.f32 %v4528, %v4783
        %v4785 = vpop.f32.mrf.mxu0
        %4786 = vmatprep.mubr.bf16.mxu0 0
        %4787 = vmatmul.mubr.bf16.gmra.mxu0 %v4663
        %v4788 = vpop.f32.mrf.mxu0
        %v4789 = vadd.f32 %v4528, %v4788
        %v4790 = vpop.f32.mrf.mxu0
        %v4791 = vpop.f32.mrf.mxu0
        %v4792 = vadd.f32 %v4528, %v4791
        %v4793 = vpop.f32.mrf.mxu0
        %4794 = vmatprep.mubr.bf16.mxu0 0
        %4795 = vmatmul.mubr.bf16.gmra.mxu0 %v4666
        %v4796 = vpop.f32.mrf.mxu0
        %v4797 = vadd.f32 %v4528, %v4796
        %v4798 = vpop.f32.mrf.mxu0
        %v4799 = vpop.f32.mrf.mxu0
        %v4800 = vadd.f32 %v4528, %v4799
        %v4801 = vpop.f32.mrf.mxu0
        %4802 = vmatprep.mubr.bf16.mxu0 0
        %4803 = vmatmul.mubr.bf16.gmra.mxu0 %v4669
        %v4804 = vpop.f32.mrf.mxu0
        %v4805 = vadd.f32 %v4528, %v4804
        %v4806 = vpop.f32.mrf.mxu0
        %v4807 = vpop.f32.mrf.mxu0
        %v4808 = vadd.f32 %v4528, %v4807
        %v4809 = vpop.f32.mrf.mxu0
        %4810 = vmatprep.mubr.bf16.mxu0 0
        %4811 = vmatmul.mubr.bf16.gmra.mxu0 %v4672
        %v4812 = vpop.f32.mrf.mxu0
        %v4813 = vadd.f32 %v4528, %v4812
        %v4814 = vpop.f32.mrf.mxu0
        %v4815 = vpop.f32.mrf.mxu0
        %v4816 = vadd.f32 %v4528, %v4815
        %v4817 = vpop.f32.mrf.mxu0
        %4818 = vmatprep.mubr.bf16.mxu0 0
        %4819 = vmatmul.mubr.bf16.gmra.mxu0 %v4675
        %v4820 = vpop.f32.mrf.mxu0
        %v4821 = vadd.f32 %v4528, %v4820
        %v4822 = vpop.f32.mrf.mxu0
        %v4823 = vpop.f32.mrf.mxu0
        %v4824 = vadd.f32 %v4528, %v4823
        %v4825 = vpop.f32.mrf.mxu0
        %4826 = vmatprep.mubr.bf16.mxu0 0
        %4827 = vmatmul.mubr.bf16.gmra.mxu0 %v4678
        %v4828 = vpop.f32.mrf.mxu0
        %v4829 = vadd.f32 %v4528, %v4828
        %v4830 = vpop.f32.mrf.mxu0
        %v4831 = vpop.f32.mrf.mxu0
        %v4832 = vadd.f32 %v4528, %v4831
        %v4833 = vpop.f32.mrf.mxu0
        %4834 = vmatprep.mubr.bf16.mxu0 0
        %4835 = vmatmul.mubr.bf16.gmra.mxu0 %v4681
        %v4836 = vpop.f32.mrf.mxu0
        %v4837 = vadd.f32 %v4528, %v4836
        %v4838 = vpop.f32.mrf.mxu0
        %v4839 = vpop.f32.mrf.mxu0
        %v4840 = vadd.f32 %v4528, %v4839
        %v4841 = vpop.f32.mrf.mxu0
        %4842 = vmatprep.mubr.bf16.mxu0 0
        %4843 = vmatmul.mubr.bf16.gmra.mxu0 %v4684
        %v4844 = vpop.f32.mrf.mxu0
        %v4845 = vadd.f32 %v4528, %v4844
        %v4846 = vpop.f32.mrf.mxu0
        %v4847 = vpop.f32.mrf.mxu0
        %v4848 = vadd.f32 %v4528, %v4847
        %v4849 = vpop.f32.mrf.mxu0
        %4850 = vdwg.mxu0
        %v4851 = vmul.f32 %v4725, 0.2
        %v4852 = vmul.f32 %v4728, 0.2
        %v4853 = vmul.f32 %v4733, 0.2
        %v4854 = vmul.f32 %v4736, 0.2
        %v4855 = vmul.f32 %v4741, 0.2
        %v4856 = vmul.f32 %v4744, 0.2
        %v4857 = vmul.f32 %v4749, 0.2
        %v4858 = vmul.f32 %v4752, 0.2
        %v4859 = vmul.f32 %v4757, 0.2
        %v4860 = vmul.f32 %v4760, 0.2
        %v4861 = vmul.f32 %v4765, 0.2
        %v4862 = vmul.f32 %v4768, 0.2
        %v4863 = vmul.f32 %v4773, 0.2
        %v4864 = vmul.f32 %v4776, 0.2
        %v4865 = vmul.f32 %v4781, 0.2
        %v4866 = vmul.f32 %v4784, 0.2
        %v4867 = vmul.f32 %v4789, 0.2
        %v4868 = vmul.f32 %v4792, 0.2
        %v4869 = vmul.f32 %v4797, 0.2
        %v4870 = vmul.f32 %v4800, 0.2
        %v4871 = vmul.f32 %v4805, 0.2
        %v4872 = vmul.f32 %v4808, 0.2
        %v4873 = vmul.f32 %v4813, 0.2
        %v4874 = vmul.f32 %v4816, 0.2
        %v4875 = vmul.f32 %v4821, 0.2
        %v4876 = vmul.f32 %v4824, 0.2
        %v4877 = vmul.f32 %v4829, 0.2
        %v4878 = vmul.f32 %v4832, 0.2
        %v4879 = vmul.f32 %v4837, 0.2
        %v4880 = vmul.f32 %v4840, 0.2
        %v4881 = vmul.f32 %v4845, 0.2
        %v4882 = vmul.f32 %v4848, 0.2
        %v4883 = vmax.f32 %v4725, %v4851
        %v4884 = vmax.f32 %v4728, %v4852
        %v4885 = vmax.f32 %v4733, %v4853
        %v4886 = vmax.f32 %v4736, %v4854
        %v4887 = vmax.f32 %v4741, %v4855
        %v4888 = vmax.f32 %v4744, %v4856
        %v4889 = vmax.f32 %v4749, %v4857
        %v4890 = vmax.f32 %v4752, %v4858
        %v4891 = vmax.f32 %v4757, %v4859
        %v4892 = vmax.f32 %v4760, %v4860
        %v4893 = vmax.f32 %v4765, %v4861
        %v4894 = vmax.f32 %v4768, %v4862
        %v4895 = vmax.f32 %v4773, %v4863
        %v4896 = vmax.f32 %v4776, %v4864
        %v4897 = vmax.f32 %v4781, %v4865
        %v4898 = vmax.f32 %v4784, %v4866
        %v4899 = vmax.f32 %v4789, %v4867
        %v4900 = vmax.f32 %v4792, %v4868
        %v4901 = vmax.f32 %v4797, %v4869
        %v4902 = vmax.f32 %v4800, %v4870
        %v4903 = vmax.f32 %v4805, %v4871
        %v4904 = vmax.f32 %v4808, %v4872
        %v4905 = vmax.f32 %v4813, %v4873
        %v4906 = vmax.f32 %v4816, %v4874
        %v4907 = vmax.f32 %v4821, %v4875
        %v4908 = vmax.f32 %v4824, %v4876
        %v4909 = vmax.f32 %v4829, %v4877
        %v4910 = vmax.f32 %v4832, %v4878
        %v4911 = vmax.f32 %v4837, %v4879
        %v4912 = vmax.f32 %v4840, %v4880
        %v4913 = vmax.f32 %v4845, %v4881
        %v4914 = vmax.f32 %v4848, %v4882
        %v4915 = vpack.c.bf16 %v4884, %v4883
        %v4916 = vpack.c.bf16 %v4886, %v4885
        %v4917 = vpack.c.bf16 %v4888, %v4887
        %v4918 = vpack.c.bf16 %v4890, %v4889
        %v4919 = vpack.c.bf16 %v4892, %v4891
        %v4920 = vpack.c.bf16 %v4894, %v4893
        %v4921 = vpack.c.bf16 %v4896, %v4895
        %v4922 = vpack.c.bf16 %v4898, %v4897
        %v4923 = vpack.c.bf16 %v4900, %v4899
        %v4924 = vpack.c.bf16 %v4902, %v4901
        %v4925 = vpack.c.bf16 %v4904, %v4903
        %v4926 = vpack.c.bf16 %v4906, %v4905
        %v4927 = vpack.c.bf16 %v4908, %v4907
        %v4928 = vpack.c.bf16 %v4910, %v4909
        %v4929 = vpack.c.bf16 %v4912, %v4911
        %v4930 = vpack.c.bf16 %v4914, %v4913
        %v4931 = vld [vmem:[%s5] sm:$0xf]
        %v4932 = vld [vmem:[%s6] sm:$0x1]
        %v4934 = vlaneseq
        %v4935 = vshrl.u32 %v4934, 7
        %v4936 = vsub.s32 0, %v4935
        %v4937 = vrot.slane %v4932, %v4936
        %vm4939 = vcmask 64512
        %v4941 = vsel %vm4939, %v4915, 0
        %v4944 = vsel %vm4939, %v4916, 0
        %v4947 = vsel %vm4939, %v4917, 0
        %v4950 = vsel %vm4939, %v4918, 0
        %v4953 = vsel %vm4939, %v4919, 0
        %v4956 = vsel %vm4939, %v4920, 0
        %v4959 = vsel %vm4939, %v4921, 0
        %v4962 = vsel %vm4939, %v4922, 0
        %v4965 = vsel %vm4939, %v4923, 0
        %v4968 = vsel %vm4939, %v4924, 0
        %v4971 = vsel %vm4939, %v4925, 0
        %v4974 = vsel %vm4939, %v4926, 0
        %v4977 = vsel %vm4939, %v4927, 0
        %v4980 = vsel %vm4939, %v4928, 0
        %v4983 = vsel %vm4939, %v4929, 0
        %v4986 = vsel %vm4939, %v4930, 0
        %v4989 = vsel %vm4686, %v4931, 0
        %4991 = vmatprep.subr.bf16.mxu0 0
        %4992 = vmatpush1.bf16.msra.mxu0 0
        %4993 = vmatprep.subr.bf16.mxu0 0
        %4994 = vmatpush1.bf16.msra.mxu0 0
        %4995 = vmatprep.subr.bf16.mxu0 0
        %4996 = vmatpush1.bf16.msra.mxu0 0
        %4997 = vmatprep.subr.bf16.mxu0 0
        %4998 = vmatpush1.bf16.msra.mxu0 0
        %4999 = vmatprep.subr.bf16.mxu0 0
        %5000 = vmatpush1.bf16.msra.mxu0 0
        %5001 = vmatprep.subr.bf16.mxu0 0
        %5002 = vmatpush1.bf16.msra.mxu0 0
        %5003 = vmatprep.subr.bf16.mxu0 0
        %5004 = vmatpush1.bf16.msra.mxu0 0
        %5005 = vmatprep.subr.bf16.mxu0 0
        %5006 = vmatpush1.bf16.msra.mxu0 %v4989
        %5007 = vmatprep.subr.bf16.mxu0 0
        %5008 = vmatpush2.bf16.msra.mxu0 0
        %5009 = vmatprep.subr.bf16.mxu0 0
        %5010 = vmatpush2.bf16.msra.mxu0 0
        %5011 = vmatprep.subr.bf16.mxu0 0
        %5012 = vmatpush2.bf16.msra.mxu0 0
        %5013 = vmatprep.subr.bf16.mxu0 0
        %5014 = vmatpush2.bf16.msra.mxu0 0
        %5015 = vmatprep.subr.bf16.mxu0 0
        %5016 = vmatpush2.bf16.msra.mxu0 0
        %5017 = vmatprep.subr.bf16.mxu0 0
        %5018 = vmatpush2.bf16.msra.mxu0 0
        %5019 = vmatprep.subr.bf16.mxu0 0
        %5020 = vmatpush2.bf16.msra.mxu0 0
        %5021 = vmatprep.subr.bf16.mxu0 0
        %5022 = vmatpush2.bf16.msra.mxu0 0
        %5023 = vmatprep.mubr.bf16.mxu0 0
        %5024 = vmatmul.mubr.bf16.gmra.mxu0 %v4941
        %v5025 = vpop.f32.mrf.mxu0
        %v5026 = vadd.f32 %v4937, %v5025
        %v5027 = vpop.f32.mrf.mxu0
        %v5028 = vpop.f32.mrf.mxu0
        %v5029 = vadd.f32 %v4937, %v5028
        %v5030 = vpop.f32.mrf.mxu0
        %5031 = vmatprep.mubr.bf16.mxu0 0
        %5032 = vmatmul.mubr.bf16.gmra.mxu0 %v4944
        %v5033 = vpop.f32.mrf.mxu0
        %v5034 = vadd.f32 %v4937, %v5033
        %v5035 = vpop.f32.mrf.mxu0
        %v5036 = vpop.f32.mrf.mxu0
        %v5037 = vadd.f32 %v4937, %v5036
        %v5038 = vpop.f32.mrf.mxu0
        %5039 = vmatprep.mubr.bf16.mxu0 0
        %5040 = vmatmul.mubr.bf16.gmra.mxu0 %v4947
        %v5041 = vpop.f32.mrf.mxu0
        %v5042 = vadd.f32 %v4937, %v5041
        %v5043 = vpop.f32.mrf.mxu0
        %v5044 = vpop.f32.mrf.mxu0
        %v5045 = vadd.f32 %v4937, %v5044
        %v5046 = vpop.f32.mrf.mxu0
        %5047 = vmatprep.mubr.bf16.mxu0 0
        %5048 = vmatmul.mubr.bf16.gmra.mxu0 %v4950
        %v5049 = vpop.f32.mrf.mxu0
        %v5050 = vadd.f32 %v4937, %v5049
        %v5051 = vpop.f32.mrf.mxu0
        %v5052 = vpop.f32.mrf.mxu0
        %v5053 = vadd.f32 %v4937, %v5052
        %v5054 = vpop.f32.mrf.mxu0
        %5055 = vmatprep.mubr.bf16.mxu0 0
        %5056 = vmatmul.mubr.bf16.gmra.mxu0 %v4953
        %v5057 = vpop.f32.mrf.mxu0
        %v5058 = vadd.f32 %v4937, %v5057
        %v5059 = vpop.f32.mrf.mxu0
        %v5060 = vpop.f32.mrf.mxu0
        %v5061 = vadd.f32 %v4937, %v5060
        %v5062 = vpop.f32.mrf.mxu0
        %5063 = vmatprep.mubr.bf16.mxu0 0
        %5064 = vmatmul.mubr.bf16.gmra.mxu0 %v4956
        %v5065 = vpop.f32.mrf.mxu0
        %v5066 = vadd.f32 %v4937, %v5065
        %v5067 = vpop.f32.mrf.mxu0
        %v5068 = vpop.f32.mrf.mxu0
        %v5069 = vadd.f32 %v4937, %v5068
        %v5070 = vpop.f32.mrf.mxu0
        %5071 = vmatprep.mubr.bf16.mxu0 0
        %5072 = vmatmul.mubr.bf16.gmra.mxu0 %v4959
        %v5073 = vpop.f32.mrf.mxu0
        %v5074 = vadd.f32 %v4937, %v5073
        %v5075 = vpop.f32.mrf.mxu0
        %v5076 = vpop.f32.mrf.mxu0
        %v5077 = vadd.f32 %v4937, %v5076
        %v5078 = vpop.f32.mrf.mxu0
        %5079 = vmatprep.mubr.bf16.mxu0 0
        %5080 = vmatmul.mubr.bf16.gmra.mxu0 %v4962
        %v5081 = vpop.f32.mrf.mxu0
        %v5082 = vadd.f32 %v4937, %v5081
        %v5083 = vpop.f32.mrf.mxu0
        %v5084 = vpop.f32.mrf.mxu0
        %v5085 = vadd.f32 %v4937, %v5084
        %v5086 = vpop.f32.mrf.mxu0
        %5087 = vmatprep.mubr.bf16.mxu0 0
        %5088 = vmatmul.mubr.bf16.gmra.mxu0 %v4965
        %v5089 = vpop.f32.mrf.mxu0
        %v5090 = vadd.f32 %v4937, %v5089
        %v5091 = vpop.f32.mrf.mxu0
        %v5092 = vpop.f32.mrf.mxu0
        %v5093 = vadd.f32 %v4937, %v5092
        %v5094 = vpop.f32.mrf.mxu0
        %5095 = vmatprep.mubr.bf16.mxu0 0
        %5096 = vmatmul.mubr.bf16.gmra.mxu0 %v4968
        %v5097 = vpop.f32.mrf.mxu0
        %v5098 = vadd.f32 %v4937, %v5097
        %v5099 = vpop.f32.mrf.mxu0
        %v5100 = vpop.f32.mrf.mxu0
        %v5101 = vadd.f32 %v4937, %v5100
        %v5102 = vpop.f32.mrf.mxu0
        %5103 = vmatprep.mubr.bf16.mxu0 0
        %5104 = vmatmul.mubr.bf16.gmra.mxu0 %v4971
        %v5105 = vpop.f32.mrf.mxu0
        %v5106 = vadd.f32 %v4937, %v5105
        %v5107 = vpop.f32.mrf.mxu0
        %v5108 = vpop.f32.mrf.mxu0
        %v5109 = vadd.f32 %v4937, %v5108
        %v5110 = vpop.f32.mrf.mxu0
        %5111 = vmatprep.mubr.bf16.mxu0 0
        %5112 = vmatmul.mubr.bf16.gmra.mxu0 %v4974
        %v5113 = vpop.f32.mrf.mxu0
        %v5114 = vadd.f32 %v4937, %v5113
        %v5115 = vpop.f32.mrf.mxu0
        %v5116 = vpop.f32.mrf.mxu0
        %v5117 = vadd.f32 %v4937, %v5116
        %v5118 = vpop.f32.mrf.mxu0
        %5119 = vmatprep.mubr.bf16.mxu0 0
        %5120 = vmatmul.mubr.bf16.gmra.mxu0 %v4977
        %v5121 = vpop.f32.mrf.mxu0
        %v5122 = vadd.f32 %v4937, %v5121
        %v5123 = vpop.f32.mrf.mxu0
        %v5124 = vpop.f32.mrf.mxu0
        %v5125 = vadd.f32 %v4937, %v5124
        %v5126 = vpop.f32.mrf.mxu0
        %5127 = vmatprep.mubr.bf16.mxu0 0
        %5128 = vmatmul.mubr.bf16.gmra.mxu0 %v4980
        %v5129 = vpop.f32.mrf.mxu0
        %v5130 = vadd.f32 %v4937, %v5129
        %v5131 = vpop.f32.mrf.mxu0
        %v5132 = vpop.f32.mrf.mxu0
        %v5133 = vadd.f32 %v4937, %v5132
        %v5134 = vpop.f32.mrf.mxu0
        %5135 = vmatprep.mubr.bf16.mxu0 0
        %5136 = vmatmul.mubr.bf16.gmra.mxu0 %v4983
        %v5137 = vpop.f32.mrf.mxu0
        %v5138 = vadd.f32 %v4937, %v5137
        %v5139 = vpop.f32.mrf.mxu0
        %v5140 = vpop.f32.mrf.mxu0
        %v5141 = vadd.f32 %v4937, %v5140
        %v5142 = vpop.f32.mrf.mxu0
        %5143 = vmatprep.mubr.bf16.mxu0 0
        %5144 = vmatmul.mubr.bf16.gmra.mxu0 %v4986
        %v5145 = vpop.f32.mrf.mxu0
        %v5146 = vadd.f32 %v4937, %v5145
        %v5147 = vpop.f32.mrf.mxu0
        %v5148 = vpop.f32.mrf.mxu0
        %v5149 = vadd.f32 %v4937, %v5148
        %v5150 = vpop.f32.mrf.mxu0
        %5151 = vdwg.mxu0
        %5184 = vrot.lane.b32.xlu0 %v486, 120
        %v5185 = vpop.permute.xlu0 %5184
        %5186 = vrot.lane.b32.xlu0 %v489, 120
        %v5187 = vpop.permute.xlu0 %5186
        %5188 = vrot.lane.b32.xlu0 %v494, 120
        %v5189 = vpop.permute.xlu0 %5188
        %5190 = vrot.lane.b32.xlu0 %v497, 120
        %v5191 = vpop.permute.xlu0 %5190
        %5192 = vrot.lane.b32.xlu0 %v502, 120
        %v5193 = vpop.permute.xlu0 %5192
        %5194 = vrot.lane.b32.xlu0 %v505, 120
        %v5195 = vpop.permute.xlu0 %5194
        %5196 = vrot.lane.b32.xlu0 %v510, 120
        %v5197 = vpop.permute.xlu0 %5196
        %5198 = vrot.lane.b32.xlu0 %v513, 120
        %v5199 = vpop.permute.xlu0 %5198
        %5200 = vrot.lane.b32.xlu0 %v518, 120
        %v5201 = vpop.permute.xlu0 %5200
        %5202 = vrot.lane.b32.xlu0 %v521, 120
        %v5203 = vpop.permute.xlu0 %5202
        %5204 = vrot.lane.b32.xlu0 %v526, 120
        %v5205 = vpop.permute.xlu0 %5204
        %5206 = vrot.lane.b32.xlu0 %v529, 120
        %v5207 = vpop.permute.xlu0 %5206
        %5208 = vrot.lane.b32.xlu0 %v534, 120
        %v5209 = vpop.permute.xlu0 %5208
        %5210 = vrot.lane.b32.xlu0 %v537, 120
        %v5211 = vpop.permute.xlu0 %5210
        %5212 = vrot.lane.b32.xlu0 %v542, 120
        %v5213 = vpop.permute.xlu0 %5212
        %5214 = vrot.lane.b32.xlu0 %v545, 120
        %v5215 = vpop.permute.xlu0 %5214
        %5216 = vrot.lane.b32.xlu0 %v550, 120
        %v5217 = vpop.permute.xlu0 %5216
        %5218 = vrot.lane.b32.xlu0 %v553, 120
        %v5219 = vpop.permute.xlu0 %5218
        %5220 = vrot.lane.b32.xlu0 %v558, 120
        %v5221 = vpop.permute.xlu0 %5220
        %5222 = vrot.lane.b32.xlu0 %v561, 120
        %v5223 = vpop.permute.xlu0 %5222
        %5224 = vrot.lane.b32.xlu0 %v566, 120
        %v5225 = vpop.permute.xlu0 %5224
        %5226 = vrot.lane.b32.xlu0 %v569, 120
        %v5227 = vpop.permute.xlu0 %5226
        %5228 = vrot.lane.b32.xlu0 %v574, 120
        %v5229 = vpop.permute.xlu0 %5228
        %5230 = vrot.lane.b32.xlu0 %v577, 120
        %v5231 = vpop.permute.xlu0 %5230
        %5232 = vrot.lane.b32.xlu0 %v582, 120
        %v5233 = vpop.permute.xlu0 %5232
        %5234 = vrot.lane.b32.xlu0 %v585, 120
        %v5235 = vpop.permute.xlu0 %5234
        %5236 = vrot.lane.b32.xlu0 %v590, 120
        %v5237 = vpop.permute.xlu0 %5236
        %5238 = vrot.lane.b32.xlu0 %v593, 120
        %v5239 = vpop.permute.xlu0 %5238
        %5240 = vrot.lane.b32.xlu0 %v598, 120
        %v5241 = vpop.permute.xlu0 %5240
        %5242 = vrot.lane.b32.xlu0 %v601, 120
        %v5243 = vpop.permute.xlu0 %5242
        %5244 = vrot.lane.b32.xlu0 %v606, 120
        %v5245 = vpop.permute.xlu0 %5244
        %5246 = vrot.lane.b32.xlu0 %v609, 120
        %v5247 = vpop.permute.xlu0 %5246
        %v5280 = vadd.f32 %v5026, %v5185
        %v5281 = vadd.f32 %v5029, %v5187
        %v5282 = vadd.f32 %v5034, %v5189
        %v5283 = vadd.f32 %v5037, %v5191
        %v5284 = vadd.f32 %v5042, %v5193
        %v5285 = vadd.f32 %v5045, %v5195
        %v5286 = vadd.f32 %v5050, %v5197
        %v5287 = vadd.f32 %v5053, %v5199
        %v5288 = vadd.f32 %v5058, %v5201
        %v5289 = vadd.f32 %v5061, %v5203
        %v5290 = vadd.f32 %v5066, %v5205
        %v5291 = vadd.f32 %v5069, %v5207
        %v5292 = vadd.f32 %v5074, %v5209
        %v5293 = vadd.f32 %v5077, %v5211
        %v5294 = vadd.f32 %v5082, %v5213
        %v5295 = vadd.f32 %v5085, %v5215
        %v5296 = vadd.f32 %v5090, %v5217
        %v5297 = vadd.f32 %v5093, %v5219
        %v5298 = vadd.f32 %v5098, %v5221
        %v5299 = vadd.f32 %v5101, %v5223
        %v5300 = vadd.f32 %v5106, %v5225
        %v5301 = vadd.f32 %v5109, %v5227
        %v5302 = vadd.f32 %v5114, %v5229
        %v5303 = vadd.f32 %v5117, %v5231
        %v5304 = vadd.f32 %v5122, %v5233
        %v5305 = vadd.f32 %v5125, %v5235
        %v5306 = vadd.f32 %v5130, %v5237
        %v5307 = vadd.f32 %v5133, %v5239
        %v5308 = vadd.f32 %v5138, %v5241
        %v5309 = vadd.f32 %v5141, %v5243
        %v5310 = vadd.f32 %v5146, %v5245
        %v5311 = vadd.f32 %v5149, %v5247
        %v5312 = vmul.f32 %v5280, 0.2
        %v5313 = vmul.f32 %v5281, 0.2
        %v5314 = vmul.f32 %v5282, 0.2
        %v5315 = vmul.f32 %v5283, 0.2
        %v5316 = vmul.f32 %v5284, 0.2
        %v5317 = vmul.f32 %v5285, 0.2
        %v5318 = vmul.f32 %v5286, 0.2
        %v5319 = vmul.f32 %v5287, 0.2
        %v5320 = vmul.f32 %v5288, 0.2
        %v5321 = vmul.f32 %v5289, 0.2
        %v5322 = vmul.f32 %v5290, 0.2
        %v5323 = vmul.f32 %v5291, 0.2
        %v5324 = vmul.f32 %v5292, 0.2
        %v5325 = vmul.f32 %v5293, 0.2
        %v5326 = vmul.f32 %v5294, 0.2
        %v5327 = vmul.f32 %v5295, 0.2
        %v5328 = vmul.f32 %v5296, 0.2
        %v5329 = vmul.f32 %v5297, 0.2
        %v5330 = vmul.f32 %v5298, 0.2
        %v5331 = vmul.f32 %v5299, 0.2
        %v5332 = vmul.f32 %v5300, 0.2
        %v5333 = vmul.f32 %v5301, 0.2
        %v5334 = vmul.f32 %v5302, 0.2
        %v5335 = vmul.f32 %v5303, 0.2
        %v5336 = vmul.f32 %v5304, 0.2
        %v5337 = vmul.f32 %v5305, 0.2
        %v5338 = vmul.f32 %v5306, 0.2
        %v5339 = vmul.f32 %v5307, 0.2
        %v5340 = vmul.f32 %v5308, 0.2
        %v5341 = vmul.f32 %v5309, 0.2
        %v5342 = vmul.f32 %v5310, 0.2
        %v5343 = vmul.f32 %v5311, 0.2
        %v5344 = vmax.f32 %v5280, %v5312
        %v5345 = vmax.f32 %v5281, %v5313
        %v5346 = vmax.f32 %v5282, %v5314
        %v5347 = vmax.f32 %v5283, %v5315
        %v5348 = vmax.f32 %v5284, %v5316
        %v5349 = vmax.f32 %v5285, %v5317
        %v5350 = vmax.f32 %v5286, %v5318
        %v5351 = vmax.f32 %v5287, %v5319
        %v5352 = vmax.f32 %v5288, %v5320
        %v5353 = vmax.f32 %v5289, %v5321
        %v5354 = vmax.f32 %v5290, %v5322
        %v5355 = vmax.f32 %v5291, %v5323
        %v5356 = vmax.f32 %v5292, %v5324
        %v5357 = vmax.f32 %v5293, %v5325
        %v5358 = vmax.f32 %v5294, %v5326
        %v5359 = vmax.f32 %v5295, %v5327
        %v5360 = vmax.f32 %v5296, %v5328
        %v5361 = vmax.f32 %v5297, %v5329
        %v5362 = vmax.f32 %v5298, %v5330
        %v5363 = vmax.f32 %v5299, %v5331
        %v5364 = vmax.f32 %v5300, %v5332
        %v5365 = vmax.f32 %v5301, %v5333
        %v5366 = vmax.f32 %v5302, %v5334
        %v5367 = vmax.f32 %v5303, %v5335
        %v5368 = vmax.f32 %v5304, %v5336
        %v5369 = vmax.f32 %v5305, %v5337
        %v5370 = vmax.f32 %v5306, %v5338
        %v5371 = vmax.f32 %v5307, %v5339
        %v5372 = vmax.f32 %v5308, %v5340
        %v5373 = vmax.f32 %v5309, %v5341
        %v5374 = vmax.f32 %v5310, %v5342
        %v5375 = vmax.f32 %v5311, %v5343
        %5376 = vst.msk [vmem:[#allocation4] sm:$0xff] %vm4939, -inf
        %5377 = vst.msk [vmem:[#allocation4 + $0x8] sm:$0xff] %vm4939, -inf
        %vm5378 = vcmask 58368
        %5379 = vst.msk [vmem:[#allocation4 + $0x10] sm:$0x3] %vm5378, -inf
        %s5380 = scalar_lea.vmem [#allocation4], 408
        %5381 = vst.msk [vmem:[%s5380] sm:$0xff] %vm4939, -inf
        %5382 = vst.msk [vmem:[%s5380 + $0x8] sm:$0xff] %vm4939, -inf
        %5383 = vst.msk [vmem:[%s5380 + $0x10] sm:$0x3] %vm5378, -inf
        %5384 = vst.msk [vmem:[#allocation4] sm:$0x1] %vm679, -inf
        %5385 = vst.msk [vmem:[#allocation4 + $0x18] sm:$0x1] %vm679, -inf
        %5386 = vst.msk [vmem:[#allocation4 + $0x30] sm:$0x1] %vm679, -inf
        %5387 = vst.msk [vmem:[#allocation4 + $0x48] sm:$0x1] %vm679, -inf
        %5388 = vst.msk [vmem:[#allocation4 + $0x60] sm:$0x1] %vm679, -inf
        %5389 = vst.msk [vmem:[#allocation4 + $0x78] sm:$0x1] %vm679, -inf
        %5390 = vst.msk [vmem:[#allocation4 + $0x90] sm:$0x1] %vm679, -inf
        %5391 = vst.msk [vmem:[#allocation4 + $0xa8] sm:$0x1] %vm679, -inf
        %5392 = vst.msk [vmem:[#allocation4 + $0xc0] sm:$0x1] %vm679, -inf
        %5393 = vst.msk [vmem:[#allocation4 + $0xd8] sm:$0x1] %vm679, -inf
        %5394 = vst.msk [vmem:[#allocation4 + $0xf0] sm:$0x1] %vm679, -inf
        %5395 = vst.msk [vmem:[#allocation4 + $0x108] sm:$0x1] %vm679, -inf
        %5396 = vst.msk [vmem:[#allocation4 + $0x120] sm:$0x1] %vm679, -inf
        %5397 = vst.msk [vmem:[#allocation4 + $0x138] sm:$0x1] %vm679, -inf
        %5398 = vst.msk [vmem:[#allocation4 + $0x150] sm:$0x1] %vm679, -inf
        %5399 = vst.msk [vmem:[#allocation4 + $0x168] sm:$0x1] %vm679, -inf
        %5400 = vst.msk [vmem:[#allocation4 + $0x180] sm:$0x1] %vm679, -inf
        %5401 = vst.msk [vmem:[#allocation4 + $0x198] sm:$0x1] %vm679, -inf
        %5402 = vst.msk [vmem:[#allocation4 + $0x11] sm:$0x1] %vm679, -inf
        %5403 = vst.msk [vmem:[#allocation4 + $0x29] sm:$0x1] %vm679, -inf
        %5404 = vst.msk [vmem:[#allocation4 + $0x41] sm:$0x1] %vm679, -inf
        %5405 = vst.msk [vmem:[#allocation4 + $0x59] sm:$0x1] %vm679, -inf
        %5406 = vst.msk [vmem:[#allocation4 + $0x71] sm:$0x1] %vm679, -inf
        %5407 = vst.msk [vmem:[#allocation4 + $0x89] sm:$0x1] %vm679, -inf
        %5408 = vst.msk [vmem:[#allocation4 + $0xa1] sm:$0x1] %vm679, -inf
        %5409 = vst.msk [vmem:[#allocation4 + $0xb9] sm:$0x1] %vm679, -inf
        %5410 = vst.msk [vmem:[#allocation4 + $0xd1] sm:$0x1] %vm679, -inf
        %5411 = vst.msk [vmem:[#allocation4 + $0xe9] sm:$0x1] %vm679, -inf
        %5412 = vst.msk [vmem:[#allocation4 + $0x101] sm:$0x1] %vm679, -inf
        %5413 = vst.msk [vmem:[#allocation4 + $0x119] sm:$0x1] %vm679, -inf
        %5414 = vst.msk [vmem:[#allocation4 + $0x131] sm:$0x1] %vm679, -inf
        %5415 = vst.msk [vmem:[#allocation4 + $0x149] sm:$0x1] %vm679, -inf
        %5416 = vst.msk [vmem:[#allocation4 + $0x161] sm:$0x1] %vm679, -inf
        %5417 = vst.msk [vmem:[#allocation4 + $0x179] sm:$0x1] %vm679, -inf
        %5418 = vst.msk [vmem:[#allocation4 + $0x191] sm:$0x1] %vm679, -inf
        %5419 = vst.msk [vmem:[#allocation4 + $0x1a9] sm:$0x1] %vm679, -inf
        %s5420 = scalar_lea.vmem [#allocation4], 24
        %5421 = vst.msk [vmem:[%s5420 + $0x1] sm:$0xff] %vm4939, %v5344
        %5422 = vst.msk [vmem:[%s5420 + $0x9] sm:$0xff] %vm4939, %v5345
        %5423 = vst.msk [vmem:[%s5420 + $0x19] sm:$0xff] %vm4939, %v5346
        %5424 = vst.msk [vmem:[%s5420 + $0x21] sm:$0xff] %vm4939, %v5347
        %5425 = vst.msk [vmem:[%s5420 + $0x31] sm:$0xff] %vm4939, %v5348
        %5426 = vst.msk [vmem:[%s5420 + $0x39] sm:$0xff] %vm4939, %v5349
        %5427 = vst.msk [vmem:[%s5420 + $0x49] sm:$0xff] %vm4939, %v5350
        %5428 = vst.msk [vmem:[%s5420 + $0x51] sm:$0xff] %vm4939, %v5351
        %5429 = vst.msk [vmem:[%s5420 + $0x61] sm:$0xff] %vm4939, %v5352
        %5430 = vst.msk [vmem:[%s5420 + $0x69] sm:$0xff] %vm4939, %v5353
        %5431 = vst.msk [vmem:[%s5420 + $0x79] sm:$0xff] %vm4939, %v5354
        %5432 = vst.msk [vmem:[%s5420 + $0x81] sm:$0xff] %vm4939, %v5355
        %5433 = vst.msk [vmem:[%s5420 + $0x91] sm:$0xff] %vm4939, %v5356
        %5434 = vst.msk [vmem:[%s5420 + $0x99] sm:$0xff] %vm4939, %v5357
        %5435 = vst.msk [vmem:[%s5420 + $0xa9] sm:$0xff] %vm4939, %v5358
        %5436 = vst.msk [vmem:[%s5420 + $0xb1] sm:$0xff] %vm4939, %v5359
        %5437 = vst.msk [vmem:[%s5420 + $0xc1] sm:$0xff] %vm4939, %v5360
        %5438 = vst.msk [vmem:[%s5420 + $0xc9] sm:$0xff] %vm4939, %v5361
        %5439 = vst.msk [vmem:[%s5420 + $0xd9] sm:$0xff] %vm4939, %v5362
        %5440 = vst.msk [vmem:[%s5420 + $0xe1] sm:$0xff] %vm4939, %v5363
        %5441 = vst.msk [vmem:[%s5420 + $0xf1] sm:$0xff] %vm4939, %v5364
        %5442 = vst.msk [vmem:[%s5420 + $0xf9] sm:$0xff] %vm4939, %v5365
        %5443 = vst.msk [vmem:[%s5420 + $0x109] sm:$0xff] %vm4939, %v5366
        %5444 = vst.msk [vmem:[%s5420 + $0x111] sm:$0xff] %vm4939, %v5367
        %5445 = vst.msk [vmem:[%s5420 + $0x121] sm:$0xff] %vm4939, %v5368
        %5446 = vst.msk [vmem:[%s5420 + $0x129] sm:$0xff] %vm4939, %v5369
        %5447 = vst.msk [vmem:[%s5420 + $0x139] sm:$0xff] %vm4939, %v5370
        %5448 = vst.msk [vmem:[%s5420 + $0x141] sm:$0xff] %vm4939, %v5371
        %5449 = vst.msk [vmem:[%s5420 + $0x151] sm:$0xff] %vm4939, %v5372
        %5450 = vst.msk [vmem:[%s5420 + $0x159] sm:$0xff] %vm4939, %v5373
        %5451 = vst.msk [vmem:[%s5420 + $0x169] sm:$0xff] %vm4939, %v5374
        %5452 = vst.msk [vmem:[%s5420 + $0x171] sm:$0xff] %vm4939, %v5375
        %v5453 = vld [vmem:[#allocation4] sm:$0xff]
        %v5454 = vld [vmem:[#allocation4 + $0x8] sm:$0xff]
        %v5455 = vld [vmem:[#allocation4 + $0x10] sm:$0x3]
        %v5456 = vld [vmem:[#allocation4 + $0x18] sm:$0xff]
        %v5457 = vld [vmem:[#allocation4 + $0x20] sm:$0xff]
        %v5458 = vld [vmem:[#allocation4 + $0x28] sm:$0x3]
        %v5459 = vld [vmem:[#allocation4 + $0x30] sm:$0xff]
        %v5460 = vld [vmem:[#allocation4 + $0x38] sm:$0xff]
        %v5461 = vld [vmem:[#allocation4 + $0x40] sm:$0x3]
        %v5462 = vld [vmem:[#allocation4 + $0x48] sm:$0xff]
        %v5463 = vld [vmem:[#allocation4 + $0x50] sm:$0xff]
        %v5464 = vld [vmem:[#allocation4 + $0x58] sm:$0x3]
        %v5465 = vld [vmem:[#allocation4 + $0x60] sm:$0xff]
        %v5466 = vld [vmem:[#allocation4 + $0x68] sm:$0xff]
        %v5467 = vld [vmem:[#allocation4 + $0x70] sm:$0x3]
        %v5468 = vld [vmem:[#allocation4 + $0x78] sm:$0xff]
        %v5469 = vld [vmem:[#allocation4 + $0x80] sm:$0xff]
        %v5470 = vld [vmem:[#allocation4 + $0x88] sm:$0x3]
        %v5471 = vld [vmem:[#allocation4 + $0x90] sm:$0xff]
        %v5472 = vld [vmem:[#allocation4 + $0x98] sm:$0xff]
        %v5473 = vld [vmem:[#allocation4 + $0xa0] sm:$0x3]
        %v5474 = vld [vmem:[#allocation4 + $0xa8] sm:$0xff]
        %v5475 = vld [vmem:[#allocation4 + $0xb0] sm:$0xff]
        %v5476 = vld [vmem:[#allocation4 + $0xb8] sm:$0x3]
        %v5477 = vld [vmem:[#allocation4 + $0xc0] sm:$0xff]
        %v5478 = vld [vmem:[#allocation4 + $0xc8] sm:$0xff]
        %v5479 = vld [vmem:[#allocation4 + $0xd0] sm:$0x3]
        %v5480 = vld [vmem:[#allocation4 + $0xd8] sm:$0xff]
        %v5481 = vld [vmem:[#allocation4 + $0xe0] sm:$0xff]
        %v5482 = vld [vmem:[#allocation4 + $0xe8] sm:$0x3]
        %v5483 = vld [vmem:[#allocation4 + $0xf0] sm:$0xff]
        %v5484 = vld [vmem:[#allocation4 + $0xf8] sm:$0xff]
        %v5485 = vld [vmem:[#allocation4 + $0x100] sm:$0x3]
        %v5486 = vld [vmem:[#allocation4 + $0x108] sm:$0xff]
        %v5487 = vld [vmem:[#allocation4 + $0x110] sm:$0xff]
        %v5488 = vld [vmem:[#allocation4 + $0x118] sm:$0x3]
        %v5489 = vld [vmem:[#allocation4 + $0x120] sm:$0xff]
        %v5490 = vld [vmem:[#allocation4 + $0x128] sm:$0xff]
        %v5491 = vld [vmem:[#allocation4 + $0x130] sm:$0x3]
        %v5492 = vld [vmem:[#allocation4 + $0x138] sm:$0xff]
        %v5493 = vld [vmem:[#allocation4 + $0x140] sm:$0xff]
        %v5494 = vld [vmem:[#allocation4 + $0x148] sm:$0x3]
        %v5495 = vld [vmem:[#allocation4 + $0x150] sm:$0xff]
        %v5496 = vld [vmem:[#allocation4 + $0x158] sm:$0xff]
        %v5497 = vld [vmem:[#allocation4 + $0x160] sm:$0x3]
        %v5498 = vld [vmem:[#allocation4 + $0x168] sm:$0xff]
        %v5499 = vld [vmem:[#allocation4 + $0x170] sm:$0xff]
        %v5500 = vld [vmem:[#allocation4 + $0x178] sm:$0x3]
        %v5501 = vld [vmem:[#allocation4 + $0x180] sm:$0xff]
        %v5502 = vld [vmem:[#allocation4 + $0x188] sm:$0xff]
        %v5503 = vld [vmem:[#allocation4 + $0x190] sm:$0x3]
        %v5504 = vmax.f32 %v5453, %v5456
        %v5505 = vmax.f32 %v5454, %v5457
        %v5506 = vmax.f32 %v5455, %v5458
        %v5507 = vmax.f32 %v5459, %v5462
        %v5508 = vmax.f32 %v5460, %v5463
        %v5509 = vmax.f32 %v5461, %v5464
        %v5510 = vmax.f32 %v5465, %v5468
        %v5511 = vmax.f32 %v5466, %v5469
        %v5512 = vmax.f32 %v5467, %v5470
        %v5513 = vmax.f32 %v5471, %v5474
        %v5514 = vmax.f32 %v5472, %v5475
        %v5515 = vmax.f32 %v5473, %v5476
        %v5516 = vmax.f32 %v5477, %v5480
        %v5517 = vmax.f32 %v5478, %v5481
        %v5518 = vmax.f32 %v5479, %v5482
        %v5519 = vmax.f32 %v5483, %v5486
        %v5520 = vmax.f32 %v5484, %v5487
        %v5521 = vmax.f32 %v5485, %v5488
        %v5522 = vmax.f32 %v5489, %v5492
        %v5523 = vmax.f32 %v5490, %v5493
        %v5524 = vmax.f32 %v5491, %v5494
        %v5525 = vmax.f32 %v5495, %v5498
        %v5526 = vmax.f32 %v5496, %v5499
        %v5527 = vmax.f32 %v5497, %v5500
        %v5528 = vmax.f32 %v5504, %v5459
        %v5529 = vmax.f32 %v5505, %v5460
        %v5530 = vmax.f32 %v5506, %v5461
        %v5531 = vmax.f32 %v5507, %v5465
        %v5532 = vmax.f32 %v5508, %v5466
        %v5533 = vmax.f32 %v5509, %v5467
        %v5534 = vmax.f32 %v5510, %v5471
        %v5535 = vmax.f32 %v5511, %v5472
        %v5536 = vmax.f32 %v5512, %v5473
        %v5537 = vmax.f32 %v5513, %v5477
        %v5538 = vmax.f32 %v5514, %v5478
        %v5539 = vmax.f32 %v5515, %v5479
        %v5540 = vmax.f32 %v5516, %v5483
        %v5541 = vmax.f32 %v5517, %v5484
        %v5542 = vmax.f32 %v5518, %v5485
        %v5543 = vmax.f32 %v5519, %v5489
        %v5544 = vmax.f32 %v5520, %v5490
        %v5545 = vmax.f32 %v5521, %v5491
        %v5546 = vmax.f32 %v5522, %v5495
        %v5547 = vmax.f32 %v5523, %v5496
        %v5548 = vmax.f32 %v5524, %v5497
        %v5549 = vmax.f32 %v5525, %v5501
        %v5550 = vmax.f32 %v5526, %v5502
        %v5551 = vmax.f32 %v5527, %v5503
        %v5568 = vcombine.high %v5528, %v5528
        %v5570 = vunpack.c.l.s4 1983009808
        %v5571 = vunpack.c.0.s8 %v5570
        %v5572 = vlaneseq
        %v5573 = vshrl.u32 %v5572, 7
        %v5574 = vsub.s32 %v5571, %v5573
        %v5575 = vrot.slane %v5528, %v5574
        %v5577 = vunpack.c.l.s4 1983009808
        %v5578 = vunpack.c.0.s8 %v5577
        %v5579 = vlaneseq
        %v5580 = vshrl.u32 %v5579, 7
        %v5581 = vsub.s32 %v5578, %v5580
        %v5582 = vrot.slane %v5568, %v5581
        %v5583 = vcombine.high %v5575, %v5575
        %v5584 = vcombine.high %v5582, %v5582
        %v5585 = vcombine.high %v5529, %v5529
        %v5587 = vunpack.c.l.s4 1983009808
        %v5588 = vunpack.c.0.s8 %v5587
        %v5589 = vlaneseq
        %v5590 = vshrl.u32 %v5589, 7
        %v5591 = vsub.s32 %v5588, %v5590
        %v5592 = vrot.slane %v5529, %v5591
        %v5594 = vunpack.c.l.s4 1983009808
        %v5595 = vunpack.c.0.s8 %v5594
        %v5596 = vlaneseq
        %v5597 = vshrl.u32 %v5596, 7
        %v5598 = vsub.s32 %v5595, %v5597
        %v5599 = vrot.slane %v5585, %v5598
        %v5600 = vcombine.high %v5592, %v5592
        %v5601 = vcombine.high %v5599, %v5599
        %v5602 = vcombine.high %v5531, %v5531
        %v5604 = vunpack.c.l.s4 1983009808
        %v5605 = vunpack.c.0.s8 %v5604
        %v5606 = vlaneseq
        %v5607 = vshrl.u32 %v5606, 7
        %v5608 = vsub.s32 %v5605, %v5607
        %v5609 = vrot.slane %v5531, %v5608
        %v5611 = vunpack.c.l.s4 1983009808
        %v5612 = vunpack.c.0.s8 %v5611
        %v5613 = vlaneseq
        %v5614 = vshrl.u32 %v5613, 7
        %v5615 = vsub.s32 %v5612, %v5614
        %v5616 = vrot.slane %v5602, %v5615
        %v5617 = vcombine.high %v5609, %v5609
        %v5618 = vcombine.high %v5616, %v5616
        %v5619 = vcombine.high %v5532, %v5532
        %v5621 = vunpack.c.l.s4 1983009808
        %v5622 = vunpack.c.0.s8 %v5621
        %v5623 = vlaneseq
        %v5624 = vshrl.u32 %v5623, 7
        %v5625 = vsub.s32 %v5622, %v5624
        %v5626 = vrot.slane %v5532, %v5625
        %v5628 = vunpack.c.l.s4 1983009808
        %v5629 = vunpack.c.0.s8 %v5628
        %v5630 = vlaneseq
        %v5631 = vshrl.u32 %v5630, 7
        %v5632 = vsub.s32 %v5629, %v5631
        %v5633 = vrot.slane %v5619, %v5632
        %v5634 = vcombine.high %v5626, %v5626
        %v5635 = vcombine.high %v5633, %v5633
        %v5636 = vcombine.high %v5534, %v5534
        %v5638 = vunpack.c.l.s4 1983009808
        %v5639 = vunpack.c.0.s8 %v5638
        %v5640 = vlaneseq
        %v5641 = vshrl.u32 %v5640, 7
        %v5642 = vsub.s32 %v5639, %v5641
        %v5643 = vrot.slane %v5534, %v5642
        %v5645 = vunpack.c.l.s4 1983009808
        %v5646 = vunpack.c.0.s8 %v5645
        %v5647 = vlaneseq
        %v5648 = vshrl.u32 %v5647, 7
        %v5649 = vsub.s32 %v5646, %v5648
        %v5650 = vrot.slane %v5636, %v5649
        %v5651 = vcombine.high %v5643, %v5643
        %v5652 = vcombine.high %v5650, %v5650
        %v5653 = vcombine.high %v5535, %v5535
        %v5655 = vunpack.c.l.s4 1983009808
        %v5656 = vunpack.c.0.s8 %v5655
        %v5657 = vlaneseq
        %v5658 = vshrl.u32 %v5657, 7
        %v5659 = vsub.s32 %v5656, %v5658
        %v5660 = vrot.slane %v5535, %v5659
        %v5662 = vunpack.c.l.s4 1983009808
        %v5663 = vunpack.c.0.s8 %v5662
        %v5664 = vlaneseq
        %v5665 = vshrl.u32 %v5664, 7
        %v5666 = vsub.s32 %v5663, %v5665
        %v5667 = vrot.slane %v5653, %v5666
        %v5668 = vcombine.high %v5660, %v5660
        %v5669 = vcombine.high %v5667, %v5667
        %v5670 = vcombine.high %v5537, %v5537
        %v5672 = vunpack.c.l.s4 1983009808
        %v5673 = vunpack.c.0.s8 %v5672
        %v5674 = vlaneseq
        %v5675 = vshrl.u32 %v5674, 7
        %v5676 = vsub.s32 %v5673, %v5675
        %v5677 = vrot.slane %v5537, %v5676
        %v5679 = vunpack.c.l.s4 1983009808
        %v5680 = vunpack.c.0.s8 %v5679
        %v5681 = vlaneseq
        %v5682 = vshrl.u32 %v5681, 7
        %v5683 = vsub.s32 %v5680, %v5682
        %v5684 = vrot.slane %v5670, %v5683
        %v5685 = vcombine.high %v5677, %v5677
        %v5686 = vcombine.high %v5684, %v5684
        %v5687 = vcombine.high %v5538, %v5538
        %v5689 = vunpack.c.l.s4 1983009808
        %v5690 = vunpack.c.0.s8 %v5689
        %v5691 = vlaneseq
        %v5692 = vshrl.u32 %v5691, 7
        %v5693 = vsub.s32 %v5690, %v5692
        %v5694 = vrot.slane %v5538, %v5693
        %v5696 = vunpack.c.l.s4 1983009808
        %v5697 = vunpack.c.0.s8 %v5696
        %v5698 = vlaneseq
        %v5699 = vshrl.u32 %v5698, 7
        %v5700 = vsub.s32 %v5697, %v5699
        %v5701 = vrot.slane %v5687, %v5700
        %v5702 = vcombine.high %v5694, %v5694
        %v5703 = vcombine.high %v5701, %v5701
        %v5704 = vcombine.high %v5540, %v5540
        %v5706 = vunpack.c.l.s4 1983009808
        %v5707 = vunpack.c.0.s8 %v5706
        %v5708 = vlaneseq
        %v5709 = vshrl.u32 %v5708, 7
        %v5710 = vsub.s32 %v5707, %v5709
        %v5711 = vrot.slane %v5540, %v5710
        %v5713 = vunpack.c.l.s4 1983009808
        %v5714 = vunpack.c.0.s8 %v5713
        %v5715 = vlaneseq
        %v5716 = vshrl.u32 %v5715, 7
        %v5717 = vsub.s32 %v5714, %v5716
        %v5718 = vrot.slane %v5704, %v5717
        %v5719 = vcombine.high %v5711, %v5711
        %v5720 = vcombine.high %v5718, %v5718
        %v5721 = vcombine.high %v5541, %v5541
        %v5723 = vunpack.c.l.s4 1983009808
        %v5724 = vunpack.c.0.s8 %v5723
        %v5725 = vlaneseq
        %v5726 = vshrl.u32 %v5725, 7
        %v5727 = vsub.s32 %v5724, %v5726
        %v5728 = vrot.slane %v5541, %v5727
        %v5730 = vunpack.c.l.s4 1983009808
        %v5731 = vunpack.c.0.s8 %v5730
        %v5732 = vlaneseq
        %v5733 = vshrl.u32 %v5732, 7
        %v5734 = vsub.s32 %v5731, %v5733
        %v5735 = vrot.slane %v5721, %v5734
        %v5736 = vcombine.high %v5728, %v5728
        %v5737 = vcombine.high %v5735, %v5735
        %v5738 = vcombine.high %v5543, %v5543
        %v5740 = vunpack.c.l.s4 1983009808
        %v5741 = vunpack.c.0.s8 %v5740
        %v5742 = vlaneseq
        %v5743 = vshrl.u32 %v5742, 7
        %v5744 = vsub.s32 %v5741, %v5743
        %v5745 = vrot.slane %v5543, %v5744
        %v5747 = vunpack.c.l.s4 1983009808
        %v5748 = vunpack.c.0.s8 %v5747
        %v5749 = vlaneseq
        %v5750 = vshrl.u32 %v5749, 7
        %v5751 = vsub.s32 %v5748, %v5750
        %v5752 = vrot.slane %v5738, %v5751
        %v5753 = vcombine.high %v5745, %v5745
        %v5754 = vcombine.high %v5752, %v5752
        %v5755 = vcombine.high %v5544, %v5544
        %v5757 = vunpack.c.l.s4 1983009808
        %v5758 = vunpack.c.0.s8 %v5757
        %v5759 = vlaneseq
        %v5760 = vshrl.u32 %v5759, 7
        %v5761 = vsub.s32 %v5758, %v5760
        %v5762 = vrot.slane %v5544, %v5761
        %v5764 = vunpack.c.l.s4 1983009808
        %v5765 = vunpack.c.0.s8 %v5764
        %v5766 = vlaneseq
        %v5767 = vshrl.u32 %v5766, 7
        %v5768 = vsub.s32 %v5765, %v5767
        %v5769 = vrot.slane %v5755, %v5768
        %v5770 = vcombine.high %v5762, %v5762
        %v5771 = vcombine.high %v5769, %v5769
        %v5772 = vcombine.high %v5546, %v5546
        %v5774 = vunpack.c.l.s4 1983009808
        %v5775 = vunpack.c.0.s8 %v5774
        %v5776 = vlaneseq
        %v5777 = vshrl.u32 %v5776, 7
        %v5778 = vsub.s32 %v5775, %v5777
        %v5779 = vrot.slane %v5546, %v5778
        %v5781 = vunpack.c.l.s4 1983009808
        %v5782 = vunpack.c.0.s8 %v5781
        %v5783 = vlaneseq
        %v5784 = vshrl.u32 %v5783, 7
        %v5785 = vsub.s32 %v5782, %v5784
        %v5786 = vrot.slane %v5772, %v5785
        %v5787 = vcombine.high %v5779, %v5779
        %v5788 = vcombine.high %v5786, %v5786
        %v5789 = vcombine.high %v5547, %v5547
        %v5791 = vunpack.c.l.s4 1983009808
        %v5792 = vunpack.c.0.s8 %v5791
        %v5793 = vlaneseq
        %v5794 = vshrl.u32 %v5793, 7
        %v5795 = vsub.s32 %v5792, %v5794
        %v5796 = vrot.slane %v5547, %v5795
        %v5798 = vunpack.c.l.s4 1983009808
        %v5799 = vunpack.c.0.s8 %v5798
        %v5800 = vlaneseq
        %v5801 = vshrl.u32 %v5800, 7
        %v5802 = vsub.s32 %v5799, %v5801
        %v5803 = vrot.slane %v5789, %v5802
        %v5804 = vcombine.high %v5796, %v5796
        %v5805 = vcombine.high %v5803, %v5803
        %v5806 = vcombine.high %v5549, %v5549
        %v5808 = vunpack.c.l.s4 1983009808
        %v5809 = vunpack.c.0.s8 %v5808
        %v5810 = vlaneseq
        %v5811 = vshrl.u32 %v5810, 7
        %v5812 = vsub.s32 %v5809, %v5811
        %v5813 = vrot.slane %v5549, %v5812
        %v5815 = vunpack.c.l.s4 1983009808
        %v5816 = vunpack.c.0.s8 %v5815
        %v5817 = vlaneseq
        %v5818 = vshrl.u32 %v5817, 7
        %v5819 = vsub.s32 %v5816, %v5818
        %v5820 = vrot.slane %v5806, %v5819
        %v5821 = vcombine.high %v5813, %v5813
        %v5822 = vcombine.high %v5820, %v5820
        %v5823 = vcombine.high %v5550, %v5550
        %v5825 = vunpack.c.l.s4 1983009808
        %v5826 = vunpack.c.0.s8 %v5825
        %v5827 = vlaneseq
        %v5828 = vshrl.u32 %v5827, 7
        %v5829 = vsub.s32 %v5826, %v5828
        %v5830 = vrot.slane %v5550, %v5829
        %v5832 = vunpack.c.l.s4 1983009808
        %v5833 = vunpack.c.0.s8 %v5832
        %v5834 = vlaneseq
        %v5835 = vshrl.u32 %v5834, 7
        %v5836 = vsub.s32 %v5833, %v5835
        %v5837 = vrot.slane %v5823, %v5836
        %v5838 = vcombine.high %v5830, %v5830
        %v5839 = vcombine.high %v5837, %v5837
        %v5913 = vunpack.c.l.s4 1983009808
        %v5914 = vunpack.c.0.s8 %v5913
        %v5915 = vlaneseq
        %v5916 = vshrl.u32 %v5915, 7
        %v5917 = vsub.s32 %v5914, %v5916
        %v5918 = vrot.slane %v5530, %v5917
        %v5920 = vunpack.c.l.s4 1983009808
        %v5921 = vunpack.c.0.s8 %v5920
        %v5922 = vlaneseq
        %v5923 = vshrl.u32 %v5922, 7
        %v5924 = vsub.s32 %v5921, %v5923
        %v5925 = vrot.slane %v5533, %v5924
        %v5927 = vunpack.c.l.s4 1983009808
        %v5928 = vunpack.c.0.s8 %v5927
        %v5929 = vlaneseq
        %v5930 = vshrl.u32 %v5929, 7
        %v5931 = vsub.s32 %v5928, %v5930
        %v5932 = vrot.slane %v5536, %v5931
        %v5934 = vunpack.c.l.s4 1983009808
        %v5935 = vunpack.c.0.s8 %v5934
        %v5936 = vlaneseq
        %v5937 = vshrl.u32 %v5936, 7
        %v5938 = vsub.s32 %v5935, %v5937
        %v5939 = vrot.slane %v5539, %v5938
        %v5941 = vunpack.c.l.s4 1983009808
        %v5942 = vunpack.c.0.s8 %v5941
        %v5943 = vlaneseq
        %v5944 = vshrl.u32 %v5943, 7
        %v5945 = vsub.s32 %v5942, %v5944
        %v5946 = vrot.slane %v5542, %v5945
        %v5948 = vunpack.c.l.s4 1983009808
        %v5949 = vunpack.c.0.s8 %v5948
        %v5950 = vlaneseq
        %v5951 = vshrl.u32 %v5950, 7
        %v5952 = vsub.s32 %v5949, %v5951
        %v5953 = vrot.slane %v5545, %v5952
        %v5955 = vunpack.c.l.s4 1983009808
        %v5956 = vunpack.c.0.s8 %v5955
        %v5957 = vlaneseq
        %v5958 = vshrl.u32 %v5957, 7
        %v5959 = vsub.s32 %v5956, %v5958
        %v5960 = vrot.slane %v5548, %v5959
        %v5962 = vunpack.c.l.s4 1983009808
        %v5963 = vunpack.c.0.s8 %v5962
        %v5964 = vlaneseq
        %v5965 = vshrl.u32 %v5964, 7
        %v5966 = vsub.s32 %v5963, %v5965
        %v5967 = vrot.slane %v5551, %v5966
        %v5976 = vrot.slane %v5575, 7
        %v5977 = vrot.slane %v5976, 2
        %v5978 = vrot.slane %v5583, 7
        %v5979 = vrot.slane %v5978, 2
        %v5980 = vrot.slane %v5582, 7
        %v5981 = vrot.slane %v5980, 2
        %v5982 = vrot.slane %v5584, 7
        %v5983 = vrot.slane %v5982, 2
        %v5984 = vrot.slane %v5592, 7
        %v5985 = vrot.slane %v5984, 2
        %v5986 = vrot.slane %v5600, 7
        %v5987 = vrot.slane %v5986, 2
        %v5988 = vrot.slane %v5599, 7
        %v5989 = vrot.slane %v5988, 2
        %v5990 = vrot.slane %v5601, 7
        %v5991 = vrot.slane %v5990, 2
        %v5992 = vrot.slane %v5609, 7
        %v5993 = vrot.slane %v5992, 2
        %v5994 = vrot.slane %v5617, 7
        %v5995 = vrot.slane %v5994, 2
        %v5996 = vrot.slane %v5616, 7
        %v5997 = vrot.slane %v5996, 2
        %v5998 = vrot.slane %v5618, 7
        %v5999 = vrot.slane %v5998, 2
        %v6000 = vrot.slane %v5626, 7
        %v6001 = vrot.slane %v6000, 2
        %v6002 = vrot.slane %v5634, 7
        %v6003 = vrot.slane %v6002, 2
        %v6004 = vrot.slane %v5633, 7
        %v6005 = vrot.slane %v6004, 2
        %v6006 = vrot.slane %v5635, 7
        %v6007 = vrot.slane %v6006, 2
        %v6008 = vrot.slane %v5643, 7
        %v6009 = vrot.slane %v6008, 2
        %v6010 = vrot.slane %v5651, 7
        %v6011 = vrot.slane %v6010, 2
        %v6012 = vrot.slane %v5650, 7
        %v6013 = vrot.slane %v6012, 2
        %v6014 = vrot.slane %v5652, 7
        %v6015 = vrot.slane %v6014, 2
        %v6016 = vrot.slane %v5660, 7
        %v6017 = vrot.slane %v6016, 2
        %v6018 = vrot.slane %v5668, 7
        %v6019 = vrot.slane %v6018, 2
        %v6020 = vrot.slane %v5667, 7
        %v6021 = vrot.slane %v6020, 2
        %v6022 = vrot.slane %v5669, 7
        %v6023 = vrot.slane %v6022, 2
        %v6024 = vrot.slane %v5677, 7
        %v6025 = vrot.slane %v6024, 2
        %v6026 = vrot.slane %v5685, 7
        %v6027 = vrot.slane %v6026, 2
        %v6028 = vrot.slane %v5684, 7
        %v6029 = vrot.slane %v6028, 2
        %v6030 = vrot.slane %v5686, 7
        %v6031 = vrot.slane %v6030, 2
        %v6032 = vrot.slane %v5694, 7
        %v6033 = vrot.slane %v6032, 2
        %v6034 = vrot.slane %v5702, 7
        %v6035 = vrot.slane %v6034, 2
        %v6036 = vrot.slane %v5701, 7
        %v6037 = vrot.slane %v6036, 2
        %v6038 = vrot.slane %v5703, 7
        %v6039 = vrot.slane %v6038, 2
        %v6040 = vrot.slane %v5711, 7
        %v6041 = vrot.slane %v6040, 2
        %v6042 = vrot.slane %v5719, 7
        %v6043 = vrot.slane %v6042, 2
        %v6044 = vrot.slane %v5718, 7
        %v6045 = vrot.slane %v6044, 2
        %v6046 = vrot.slane %v5720, 7
        %v6047 = vrot.slane %v6046, 2
        %v6048 = vrot.slane %v5728, 7
        %v6049 = vrot.slane %v6048, 2
        %v6050 = vrot.slane %v5736, 7
        %v6051 = vrot.slane %v6050, 2
        %v6052 = vrot.slane %v5735, 7
        %v6053 = vrot.slane %v6052, 2
        %v6054 = vrot.slane %v5737, 7
        %v6055 = vrot.slane %v6054, 2
        %v6056 = vrot.slane %v5745, 7
        %v6057 = vrot.slane %v6056, 2
        %v6058 = vrot.slane %v5753, 7
        %v6059 = vrot.slane %v6058, 2
        %v6060 = vrot.slane %v5752, 7
        %v6061 = vrot.slane %v6060, 2
        %v6062 = vrot.slane %v5754, 7
        %v6063 = vrot.slane %v6062, 2
        %v6064 = vrot.slane %v5762, 7
        %v6065 = vrot.slane %v6064, 2
        %v6066 = vrot.slane %v5770, 7
        %v6067 = vrot.slane %v6066, 2
        %v6068 = vrot.slane %v5769, 7
        %v6069 = vrot.slane %v6068, 2
        %v6070 = vrot.slane %v5771, 7
        %v6071 = vrot.slane %v6070, 2
        %v6072 = vrot.slane %v5779, 7
        %v6073 = vrot.slane %v6072, 2
        %v6074 = vrot.slane %v5787, 7
        %v6075 = vrot.slane %v6074, 2
        %v6076 = vrot.slane %v5786, 7
        %v6077 = vrot.slane %v6076, 2
        %v6078 = vrot.slane %v5788, 7
        %v6079 = vrot.slane %v6078, 2
        %v6080 = vrot.slane %v5796, 7
        %v6081 = vrot.slane %v6080, 2
        %v6082 = vrot.slane %v5804, 7
        %v6083 = vrot.slane %v6082, 2
        %v6084 = vrot.slane %v5803, 7
        %v6085 = vrot.slane %v6084, 2
        %v6086 = vrot.slane %v5805, 7
        %v6087 = vrot.slane %v6086, 2
        %v6088 = vrot.slane %v5813, 7
        %v6089 = vrot.slane %v6088, 2
        %v6090 = vrot.slane %v5821, 7
        %v6091 = vrot.slane %v6090, 2
        %v6092 = vrot.slane %v5820, 7
        %v6093 = vrot.slane %v6092, 2
        %v6094 = vrot.slane %v5822, 7
        %v6095 = vrot.slane %v6094, 2
        %v6096 = vrot.slane %v5830, 7
        %v6097 = vrot.slane %v6096, 2
        %v6098 = vrot.slane %v5838, 7
        %v6099 = vrot.slane %v6098, 2
        %v6100 = vrot.slane %v5837, 7
        %v6101 = vrot.slane %v6100, 2
        %v6102 = vrot.slane %v5839, 7
        %v6103 = vrot.slane %v6102, 2
        %v6168 = vmax.f32 %v5575, %v5977
        %v6169 = vmax.f32 %v5583, %v5979
        %v6170 = vmax.f32 %v5582, %v5981
        %v6171 = vmax.f32 %v5584, %v5983
        %v6172 = vmax.f32 %v5592, %v5985
        %v6173 = vmax.f32 %v5600, %v5987
        %v6174 = vmax.f32 %v5599, %v5989
        %v6175 = vmax.f32 %v5601, %v5991
        %v6176 = vmax.f32 %v5609, %v5993
        %v6177 = vmax.f32 %v5617, %v5995
        %v6178 = vmax.f32 %v5616, %v5997
        %v6179 = vmax.f32 %v5618, %v5999
        %v6180 = vmax.f32 %v5626, %v6001
        %v6181 = vmax.f32 %v5634, %v6003
        %v6182 = vmax.f32 %v5633, %v6005
        %v6183 = vmax.f32 %v5635, %v6007
        %v6184 = vmax.f32 %v5643, %v6009
        %v6185 = vmax.f32 %v5651, %v6011
        %v6186 = vmax.f32 %v5650, %v6013
        %v6187 = vmax.f32 %v5652, %v6015
        %v6188 = vmax.f32 %v5660, %v6017
        %v6189 = vmax.f32 %v5668, %v6019
        %v6190 = vmax.f32 %v5667, %v6021
        %v6191 = vmax.f32 %v5669, %v6023
        %v6192 = vmax.f32 %v5677, %v6025
        %v6193 = vmax.f32 %v5685, %v6027
        %v6194 = vmax.f32 %v5684, %v6029
        %v6195 = vmax.f32 %v5686, %v6031
        %v6196 = vmax.f32 %v5694, %v6033
        %v6197 = vmax.f32 %v5702, %v6035
        %v6198 = vmax.f32 %v5701, %v6037
        %v6199 = vmax.f32 %v5703, %v6039
        %v6200 = vmax.f32 %v5711, %v6041
        %v6201 = vmax.f32 %v5719, %v6043
        %v6202 = vmax.f32 %v5718, %v6045
        %v6203 = vmax.f32 %v5720, %v6047
        %v6204 = vmax.f32 %v5728, %v6049
        %v6205 = vmax.f32 %v5736, %v6051
        %v6206 = vmax.f32 %v5735, %v6053
        %v6207 = vmax.f32 %v5737, %v6055
        %v6208 = vmax.f32 %v5745, %v6057
        %v6209 = vmax.f32 %v5753, %v6059
        %v6210 = vmax.f32 %v5752, %v6061
        %v6211 = vmax.f32 %v5754, %v6063
        %v6212 = vmax.f32 %v5762, %v6065
        %v6213 = vmax.f32 %v5770, %v6067
        %v6214 = vmax.f32 %v5769, %v6069
        %v6215 = vmax.f32 %v5771, %v6071
        %v6216 = vmax.f32 %v5779, %v6073
        %v6217 = vmax.f32 %v5787, %v6075
        %v6218 = vmax.f32 %v5786, %v6077
        %v6219 = vmax.f32 %v5788, %v6079
        %v6220 = vmax.f32 %v5796, %v6081
        %v6221 = vmax.f32 %v5804, %v6083
        %v6222 = vmax.f32 %v5803, %v6085
        %v6223 = vmax.f32 %v5805, %v6087
        %v6224 = vmax.f32 %v5813, %v6089
        %v6225 = vmax.f32 %v5821, %v6091
        %v6226 = vmax.f32 %v5820, %v6093
        %v6227 = vmax.f32 %v5822, %v6095
        %v6228 = vmax.f32 %v5830, %v6097
        %v6229 = vmax.f32 %v5838, %v6099
        %v6230 = vmax.f32 %v5837, %v6101
        %v6231 = vmax.f32 %v5839, %v6103
        %v6232 = vmax.f32 %v6168, %v5583
        %v6233 = vmax.f32 %v6169, %v5582
        %v6234 = vmax.f32 %v6170, %v5584
        %v6235 = vmax.f32 %v6171, %v5592
        %v6236 = vmax.f32 %v6172, %v5600
        %v6237 = vmax.f32 %v6173, %v5599
        %v6238 = vmax.f32 %v6174, %v5601
        %v6239 = vmax.f32 %v6175, %v5918
        %v6240 = vmax.f32 %v6176, %v5617
        %v6241 = vmax.f32 %v6177, %v5616
        %v6242 = vmax.f32 %v6178, %v5618
        %v6243 = vmax.f32 %v6179, %v5626
        %v6244 = vmax.f32 %v6180, %v5634
        %v6245 = vmax.f32 %v6181, %v5633
        %v6246 = vmax.f32 %v6182, %v5635
        %v6247 = vmax.f32 %v6183, %v5925
        %v6248 = vmax.f32 %v6184, %v5651
        %v6249 = vmax.f32 %v6185, %v5650
        %v6250 = vmax.f32 %v6186, %v5652
        %v6251 = vmax.f32 %v6187, %v5660
        %v6252 = vmax.f32 %v6188, %v5668
        %v6253 = vmax.f32 %v6189, %v5667
        %v6254 = vmax.f32 %v6190, %v5669
        %v6255 = vmax.f32 %v6191, %v5932
        %v6256 = vmax.f32 %v6192, %v5685
        %v6257 = vmax.f32 %v6193, %v5684
        %v6258 = vmax.f32 %v6194, %v5686
        %v6259 = vmax.f32 %v6195, %v5694
        %v6260 = vmax.f32 %v6196, %v5702
        %v6261 = vmax.f32 %v6197, %v5701
        %v6262 = vmax.f32 %v6198, %v5703
        %v6263 = vmax.f32 %v6199, %v5939
        %v6264 = vmax.f32 %v6200, %v5719
        %v6265 = vmax.f32 %v6201, %v5718
        %v6266 = vmax.f32 %v6202, %v5720
        %v6267 = vmax.f32 %v6203, %v5728
        %v6268 = vmax.f32 %v6204, %v5736
        %v6269 = vmax.f32 %v6205, %v5735
        %v6270 = vmax.f32 %v6206, %v5737
        %v6271 = vmax.f32 %v6207, %v5946
        %v6272 = vmax.f32 %v6208, %v5753
        %v6273 = vmax.f32 %v6209, %v5752
        %v6274 = vmax.f32 %v6210, %v5754
        %v6275 = vmax.f32 %v6211, %v5762
        %v6276 = vmax.f32 %v6212, %v5770
        %v6277 = vmax.f32 %v6213, %v5769
        %v6278 = vmax.f32 %v6214, %v5771
        %v6279 = vmax.f32 %v6215, %v5953
        %v6280 = vmax.f32 %v6216, %v5787
        %v6281 = vmax.f32 %v6217, %v5786
        %v6282 = vmax.f32 %v6218, %v5788
        %v6283 = vmax.f32 %v6219, %v5796
        %v6284 = vmax.f32 %v6220, %v5804
        %v6285 = vmax.f32 %v6221, %v5803
        %v6286 = vmax.f32 %v6222, %v5805
        %v6287 = vmax.f32 %v6223, %v5960
        %v6288 = vmax.f32 %v6224, %v5821
        %v6289 = vmax.f32 %v6225, %v5820
        %v6290 = vmax.f32 %v6226, %v5822
        %v6291 = vmax.f32 %v6227, %v5830
        %v6292 = vmax.f32 %v6228, %v5838
        %v6293 = vmax.f32 %v6229, %v5837
        %v6294 = vmax.f32 %v6230, %v5839
        %v6295 = vmax.f32 %v6231, %v5967
        %vm6360 = vcmask 1044484
        %v6361 = vsel %vm6360, %v6232, %v6232
        %vm6362 = vcmask 1046534
        %v6363 = vsel %vm6362, %v6232, %v6361
        %v6364 = vrot.slane %v6233, 7
        %vm6365 = vcmask 1041409
        %v6366 = vsel %vm6365, %v6364, %v6363
        %vm6367 = vcmask 1043459
        %v6368 = vsel %vm6367, %v6364, %v6366
        %vm6369 = vcmask 1045509
        %v6370 = vsel %vm6369, %v6364, %v6368
        %vm6371 = vcmask 1047559
        %v6372 = vsel %vm6371, %v6364, %v6370
        %v6373 = vsel %vm6360, %v6234, %v6234
        %v6374 = vsel %vm6362, %v6234, %v6373
        %v6375 = vrot.slane %v6235, 7
        %v6376 = vsel %vm6365, %v6375, %v6374
        %v6377 = vsel %vm6367, %v6375, %v6376
        %v6378 = vsel %vm6369, %v6375, %v6377
        %v6379 = vsel %vm6371, %v6375, %v6378
        %v6380 = vsel %vm6360, %v6236, %v6236
        %v6381 = vsel %vm6362, %v6236, %v6380
        %v6382 = vrot.slane %v6237, 7
        %v6383 = vsel %vm6365, %v6382, %v6381
        %v6384 = vsel %vm6367, %v6382, %v6383
        %v6385 = vsel %vm6369, %v6382, %v6384
        %v6386 = vsel %vm6371, %v6382, %v6385
        %v6387 = vsel %vm6360, %v6238, %v6238
        %v6388 = vsel %vm6362, %v6238, %v6387
        %v6389 = vrot.slane %v6239, 7
        %v6390 = vsel %vm6365, %v6389, %v6388
        %v6391 = vsel %vm6367, %v6389, %v6390
        %v6392 = vsel %vm6369, %v6389, %v6391
        %v6393 = vsel %vm6371, %v6389, %v6392
        %v6394 = vsel %vm6360, %v6240, %v6240
        %v6395 = vsel %vm6362, %v6240, %v6394
        %v6396 = vrot.slane %v6241, 7
        %v6397 = vsel %vm6365, %v6396, %v6395
        %v6398 = vsel %vm6367, %v6396, %v6397
        %v6399 = vsel %vm6369, %v6396, %v6398
        %v6400 = vsel %vm6371, %v6396, %v6399
        %v6401 = vsel %vm6360, %v6242, %v6242
        %v6402 = vsel %vm6362, %v6242, %v6401
        %v6403 = vrot.slane %v6243, 7
        %v6404 = vsel %vm6365, %v6403, %v6402
        %v6405 = vsel %vm6367, %v6403, %v6404
        %v6406 = vsel %vm6369, %v6403, %v6405
        %v6407 = vsel %vm6371, %v6403, %v6406
        %v6408 = vsel %vm6360, %v6244, %v6244
        %v6409 = vsel %vm6362, %v6244, %v6408
        %v6410 = vrot.slane %v6245, 7
        %v6411 = vsel %vm6365, %v6410, %v6409
        %v6412 = vsel %vm6367, %v6410, %v6411
        %v6413 = vsel %vm6369, %v6410, %v6412
        %v6414 = vsel %vm6371, %v6410, %v6413
        %v6415 = vsel %vm6360, %v6246, %v6246
        %v6416 = vsel %vm6362, %v6246, %v6415
        %v6417 = vrot.slane %v6247, 7
        %v6418 = vsel %vm6365, %v6417, %v6416
        %v6419 = vsel %vm6367, %v6417, %v6418
        %v6420 = vsel %vm6369, %v6417, %v6419
        %v6421 = vsel %vm6371, %v6417, %v6420
        %v6422 = vsel %vm6360, %v6248, %v6248
        %v6423 = vsel %vm6362, %v6248, %v6422
        %v6424 = vrot.slane %v6249, 7
        %v6425 = vsel %vm6365, %v6424, %v6423
        %v6426 = vsel %vm6367, %v6424, %v6425
        %v6427 = vsel %vm6369, %v6424, %v6426
        %v6428 = vsel %vm6371, %v6424, %v6427
        %v6429 = vsel %vm6360, %v6250, %v6250
        %v6430 = vsel %vm6362, %v6250, %v6429
        %v6431 = vrot.slane %v6251, 7
        %v6432 = vsel %vm6365, %v6431, %v6430
        %v6433 = vsel %vm6367, %v6431, %v6432
        %v6434 = vsel %vm6369, %v6431, %v6433
        %v6435 = vsel %vm6371, %v6431, %v6434
        %v6436 = vsel %vm6360, %v6252, %v6252
        %v6437 = vsel %vm6362, %v6252, %v6436
        %v6438 = vrot.slane %v6253, 7
        %v6439 = vsel %vm6365, %v6438, %v6437
        %v6440 = vsel %vm6367, %v6438, %v6439
        %v6441 = vsel %vm6369, %v6438, %v6440
        %v6442 = vsel %vm6371, %v6438, %v6441
        %v6443 = vsel %vm6360, %v6254, %v6254
        %v6444 = vsel %vm6362, %v6254, %v6443
        %v6445 = vrot.slane %v6255, 7
        %v6446 = vsel %vm6365, %v6445, %v6444
        %v6447 = vsel %vm6367, %v6445, %v6446
        %v6448 = vsel %vm6369, %v6445, %v6447
        %v6449 = vsel %vm6371, %v6445, %v6448
        %v6450 = vsel %vm6360, %v6256, %v6256
        %v6451 = vsel %vm6362, %v6256, %v6450
        %v6452 = vrot.slane %v6257, 7
        %v6453 = vsel %vm6365, %v6452, %v6451
        %v6454 = vsel %vm6367, %v6452, %v6453
        %v6455 = vsel %vm6369, %v6452, %v6454
        %v6456 = vsel %vm6371, %v6452, %v6455
        %v6457 = vsel %vm6360, %v6258, %v6258
        %v6458 = vsel %vm6362, %v6258, %v6457
        %v6459 = vrot.slane %v6259, 7
        %v6460 = vsel %vm6365, %v6459, %v6458
        %v6461 = vsel %vm6367, %v6459, %v6460
        %v6462 = vsel %vm6369, %v6459, %v6461
        %v6463 = vsel %vm6371, %v6459, %v6462
        %v6464 = vsel %vm6360, %v6260, %v6260
        %v6465 = vsel %vm6362, %v6260, %v6464
        %v6466 = vrot.slane %v6261, 7
        %v6467 = vsel %vm6365, %v6466, %v6465
        %v6468 = vsel %vm6367, %v6466, %v6467
        %v6469 = vsel %vm6369, %v6466, %v6468
        %v6470 = vsel %vm6371, %v6466, %v6469
        %v6471 = vsel %vm6360, %v6262, %v6262
        %v6472 = vsel %vm6362, %v6262, %v6471
        %v6473 = vrot.slane %v6263, 7
        %v6474 = vsel %vm6365, %v6473, %v6472
        %v6475 = vsel %vm6367, %v6473, %v6474
        %v6476 = vsel %vm6369, %v6473, %v6475
        %v6477 = vsel %vm6371, %v6473, %v6476
        %v6478 = vsel %vm6360, %v6264, %v6264
        %v6479 = vsel %vm6362, %v6264, %v6478
        %v6480 = vrot.slane %v6265, 7
        %v6481 = vsel %vm6365, %v6480, %v6479
        %v6482 = vsel %vm6367, %v6480, %v6481
        %v6483 = vsel %vm6369, %v6480, %v6482
        %v6484 = vsel %vm6371, %v6480, %v6483
        %v6485 = vsel %vm6360, %v6266, %v6266
        %v6486 = vsel %vm6362, %v6266, %v6485
        %v6487 = vrot.slane %v6267, 7
        %v6488 = vsel %vm6365, %v6487, %v6486
        %v6489 = vsel %vm6367, %v6487, %v6488
        %v6490 = vsel %vm6369, %v6487, %v6489
        %v6491 = vsel %vm6371, %v6487, %v6490
        %v6492 = vsel %vm6360, %v6268, %v6268
        %v6493 = vsel %vm6362, %v6268, %v6492
        %v6494 = vrot.slane %v6269, 7
        %v6495 = vsel %vm6365, %v6494, %v6493
        %v6496 = vsel %vm6367, %v6494, %v6495
        %v6497 = vsel %vm6369, %v6494, %v6496
        %v6498 = vsel %vm6371, %v6494, %v6497
        %v6499 = vsel %vm6360, %v6270, %v6270
        %v6500 = vsel %vm6362, %v6270, %v6499
        %v6501 = vrot.slane %v6271, 7
        %v6502 = vsel %vm6365, %v6501, %v6500
        %v6503 = vsel %vm6367, %v6501, %v6502
        %v6504 = vsel %vm6369, %v6501, %v6503
        %v6505 = vsel %vm6371, %v6501, %v6504
        %v6506 = vsel %vm6360, %v6272, %v6272
        %v6507 = vsel %vm6362, %v6272, %v6506
        %v6508 = vrot.slane %v6273, 7
        %v6509 = vsel %vm6365, %v6508, %v6507
        %v6510 = vsel %vm6367, %v6508, %v6509
        %v6511 = vsel %vm6369, %v6508, %v6510
        %v6512 = vsel %vm6371, %v6508, %v6511
        %v6513 = vsel %vm6360, %v6274, %v6274
        %v6514 = vsel %vm6362, %v6274, %v6513
        %v6515 = vrot.slane %v6275, 7
        %v6516 = vsel %vm6365, %v6515, %v6514
        %v6517 = vsel %vm6367, %v6515, %v6516
        %v6518 = vsel %vm6369, %v6515, %v6517
        %v6519 = vsel %vm6371, %v6515, %v6518
        %v6520 = vsel %vm6360, %v6276, %v6276
        %v6521 = vsel %vm6362, %v6276, %v6520
        %v6522 = vrot.slane %v6277, 7
        %v6523 = vsel %vm6365, %v6522, %v6521
        %v6524 = vsel %vm6367, %v6522, %v6523
        %v6525 = vsel %vm6369, %v6522, %v6524
        %v6526 = vsel %vm6371, %v6522, %v6525
        %v6527 = vsel %vm6360, %v6278, %v6278
        %v6528 = vsel %vm6362, %v6278, %v6527
        %v6529 = vrot.slane %v6279, 7
        %v6530 = vsel %vm6365, %v6529, %v6528
        %v6531 = vsel %vm6367, %v6529, %v6530
        %v6532 = vsel %vm6369, %v6529, %v6531
        %v6533 = vsel %vm6371, %v6529, %v6532
        %v6534 = vsel %vm6360, %v6280, %v6280
        %v6535 = vsel %vm6362, %v6280, %v6534
        %v6536 = vrot.slane %v6281, 7
        %v6537 = vsel %vm6365, %v6536, %v6535
        %v6538 = vsel %vm6367, %v6536, %v6537
        %v6539 = vsel %vm6369, %v6536, %v6538
        %v6540 = vsel %vm6371, %v6536, %v6539
        %v6541 = vsel %vm6360, %v6282, %v6282
        %v6542 = vsel %vm6362, %v6282, %v6541
        %v6543 = vrot.slane %v6283, 7
        %v6544 = vsel %vm6365, %v6543, %v6542
        %v6545 = vsel %vm6367, %v6543, %v6544
        %v6546 = vsel %vm6369, %v6543, %v6545
        %v6547 = vsel %vm6371, %v6543, %v6546
        %v6548 = vsel %vm6360, %v6284, %v6284
        %v6549 = vsel %vm6362, %v6284, %v6548
        %v6550 = vrot.slane %v6285, 7
        %v6551 = vsel %vm6365, %v6550, %v6549
        %v6552 = vsel %vm6367, %v6550, %v6551
        %v6553 = vsel %vm6369, %v6550, %v6552
        %v6554 = vsel %vm6371, %v6550, %v6553
        %v6555 = vsel %vm6360, %v6286, %v6286
        %v6556 = vsel %vm6362, %v6286, %v6555
        %v6557 = vrot.slane %v6287, 7
        %v6558 = vsel %vm6365, %v6557, %v6556
        %v6559 = vsel %vm6367, %v6557, %v6558
        %v6560 = vsel %vm6369, %v6557, %v6559
        %v6561 = vsel %vm6371, %v6557, %v6560
        %v6562 = vsel %vm6360, %v6288, %v6288
        %v6563 = vsel %vm6362, %v6288, %v6562
        %v6564 = vrot.slane %v6289, 7
        %v6565 = vsel %vm6365, %v6564, %v6563
        %v6566 = vsel %vm6367, %v6564, %v6565
        %v6567 = vsel %vm6369, %v6564, %v6566
        %v6568 = vsel %vm6371, %v6564, %v6567
        %v6569 = vsel %vm6360, %v6290, %v6290
        %v6570 = vsel %vm6362, %v6290, %v6569
        %v6571 = vrot.slane %v6291, 7
        %v6572 = vsel %vm6365, %v6571, %v6570
        %v6573 = vsel %vm6367, %v6571, %v6572
        %v6574 = vsel %vm6369, %v6571, %v6573
        %v6575 = vsel %vm6371, %v6571, %v6574
        %v6576 = vsel %vm6360, %v6292, %v6292
        %v6577 = vsel %vm6362, %v6292, %v6576
        %v6578 = vrot.slane %v6293, 7
        %v6579 = vsel %vm6365, %v6578, %v6577
        %v6580 = vsel %vm6367, %v6578, %v6579
        %v6581 = vsel %vm6369, %v6578, %v6580
        %v6582 = vsel %vm6371, %v6578, %v6581
        %v6583 = vsel %vm6360, %v6294, %v6294
        %v6584 = vsel %vm6362, %v6294, %v6583
        %v6585 = vrot.slane %v6295, 7
        %v6586 = vsel %vm6365, %v6585, %v6584
        %v6587 = vsel %vm6367, %v6585, %v6586
        %v6588 = vsel %vm6369, %v6585, %v6587
        %v6589 = vsel %vm6371, %v6585, %v6588
        %v6622 = vcombine.low %v6372, %v6400
        %v6624 = vunpack.c.l.s4 1934713408
        %v6625 = vunpack.c.0.s8 %v6624
        %v6626 = vlaneseq
        %v6627 = vshrl.u32 %v6626, 7
        %v6628 = vsub.s32 %v6625, %v6627
        %v6629 = vrot.slane %v6622, %v6628
        %v6630 = vcombine.high %v6629, 0.0
        %v6631 = vcombine.low %v6428, %v6456
        %v6633 = vunpack.c.l.s4 1934713408
        %v6634 = vunpack.c.0.s8 %v6633
        %v6635 = vlaneseq
        %v6636 = vshrl.u32 %v6635, 7
        %v6637 = vsub.s32 %v6634, %v6636
        %v6638 = vrot.slane %v6631, %v6637
        %v6639 = vcombine.high %v6638, 0.0
        %v6640 = vcombine.low %v6484, %v6512
        %v6642 = vunpack.c.l.s4 1934713408
        %v6643 = vunpack.c.0.s8 %v6642
        %v6644 = vlaneseq
        %v6645 = vshrl.u32 %v6644, 7
        %v6646 = vsub.s32 %v6643, %v6645
        %v6647 = vrot.slane %v6640, %v6646
        %v6648 = vcombine.high %v6647, 0.0
        %v6649 = vcombine.low %v6540, %v6568
        %v6651 = vunpack.c.l.s4 1934713408
        %v6652 = vunpack.c.0.s8 %v6651
        %v6653 = vlaneseq
        %v6654 = vshrl.u32 %v6653, 7
        %v6655 = vsub.s32 %v6652, %v6654
        %v6656 = vrot.slane %v6649, %v6655
        %v6657 = vcombine.high %v6656, 0.0
        %v6658 = vcombine.low %v6379, %v6407
        %v6660 = vunpack.c.l.s4 1934713408
        %v6661 = vunpack.c.0.s8 %v6660
        %v6662 = vlaneseq
        %v6663 = vshrl.u32 %v6662, 7
        %v6664 = vsub.s32 %v6661, %v6663
        %v6665 = vrot.slane %v6658, %v6664
        %v6666 = vcombine.high %v6665, 0.0
        %v6667 = vcombine.low %v6435, %v6463
        %v6669 = vunpack.c.l.s4 1934713408
        %v6670 = vunpack.c.0.s8 %v6669
        %v6671 = vlaneseq
        %v6672 = vshrl.u32 %v6671, 7
        %v6673 = vsub.s32 %v6670, %v6672
        %v6674 = vrot.slane %v6667, %v6673
        %v6675 = vcombine.high %v6674, 0.0
        %v6676 = vcombine.low %v6491, %v6519
        %v6678 = vunpack.c.l.s4 1934713408
        %v6679 = vunpack.c.0.s8 %v6678
        %v6680 = vlaneseq
        %v6681 = vshrl.u32 %v6680, 7
        %v6682 = vsub.s32 %v6679, %v6681
        %v6683 = vrot.slane %v6676, %v6682
        %v6684 = vcombine.high %v6683, 0.0
        %v6685 = vcombine.low %v6547, %v6575
        %v6687 = vunpack.c.l.s4 1934713408
        %v6688 = vunpack.c.0.s8 %v6687
        %v6689 = vlaneseq
        %v6690 = vshrl.u32 %v6689, 7
        %v6691 = vsub.s32 %v6688, %v6690
        %v6692 = vrot.slane %v6685, %v6691
        %v6693 = vcombine.high %v6692, 0.0
        %v6694 = vcombine.low %v6386, %v6414
        %v6696 = vunpack.c.l.s4 1934713408
        %v6697 = vunpack.c.0.s8 %v6696
        %v6698 = vlaneseq
        %v6699 = vshrl.u32 %v6698, 7
        %v6700 = vsub.s32 %v6697, %v6699
        %v6701 = vrot.slane %v6694, %v6700
        %v6702 = vcombine.high %v6701, 0.0
        %v6703 = vcombine.low %v6442, %v6470
        %v6705 = vunpack.c.l.s4 1934713408
        %v6706 = vunpack.c.0.s8 %v6705
        %v6707 = vlaneseq
        %v6708 = vshrl.u32 %v6707, 7
        %v6709 = vsub.s32 %v6706, %v6708
        %v6710 = vrot.slane %v6703, %v6709
        %v6711 = vcombine.high %v6710, 0.0
        %v6712 = vcombine.low %v6498, %v6526
        %v6714 = vunpack.c.l.s4 1934713408
        %v6715 = vunpack.c.0.s8 %v6714
        %v6716 = vlaneseq
        %v6717 = vshrl.u32 %v6716, 7
        %v6718 = vsub.s32 %v6715, %v6717
        %v6719 = vrot.slane %v6712, %v6718
        %v6720 = vcombine.high %v6719, 0.0
        %v6721 = vcombine.low %v6554, %v6582
        %v6723 = vunpack.c.l.s4 1934713408
        %v6724 = vunpack.c.0.s8 %v6723
        %v6725 = vlaneseq
        %v6726 = vshrl.u32 %v6725, 7
        %v6727 = vsub.s32 %v6724, %v6726
        %v6728 = vrot.slane %v6721, %v6727
        %v6729 = vcombine.high %v6728, 0.0
        %v6730 = vcombine.low %v6393, %v6421
        %v6732 = vunpack.c.l.s4 1934713408
        %v6733 = vunpack.c.0.s8 %v6732
        %v6734 = vlaneseq
        %v6735 = vshrl.u32 %v6734, 7
        %v6736 = vsub.s32 %v6733, %v6735
        %v6737 = vrot.slane %v6730, %v6736
        %v6738 = vcombine.high %v6737, 0.0
        %v6739 = vcombine.low %v6449, %v6477
        %v6741 = vunpack.c.l.s4 1934713408
        %v6742 = vunpack.c.0.s8 %v6741
        %v6743 = vlaneseq
        %v6744 = vshrl.u32 %v6743, 7
        %v6745 = vsub.s32 %v6742, %v6744
        %v6746 = vrot.slane %v6739, %v6745
        %v6747 = vcombine.high %v6746, 0.0
        %v6748 = vcombine.low %v6505, %v6533
        %v6750 = vunpack.c.l.s4 1934713408
        %v6751 = vunpack.c.0.s8 %v6750
        %v6752 = vlaneseq
        %v6753 = vshrl.u32 %v6752, 7
        %v6754 = vsub.s32 %v6751, %v6753
        %v6755 = vrot.slane %v6748, %v6754
        %v6756 = vcombine.high %v6755, 0.0
        %v6757 = vcombine.low %v6561, %v6589
        %v6759 = vunpack.c.l.s4 1934713408
        %v6760 = vunpack.c.0.s8 %v6759
        %v6761 = vlaneseq
        %v6762 = vshrl.u32 %v6761, 7
        %v6763 = vsub.s32 %v6760, %v6762
        %v6764 = vrot.slane %v6757, %v6763
        %v6765 = vcombine.high %v6764, 0.0
        %v6770 = vcombine.low %v6629, %v6638
        %v6771 = vcombine.low %v6647, %v6656
        %v6773 = vunpack.c.l.s4 1983009808
        %v6774 = vunpack.c.0.s8 %v6773
        %v6775 = vlaneseq
        %v6776 = vshrl.u32 %v6775, 7
        %v6777 = vsub.s32 %v6774, %v6776
        %v6778 = vrot.slane %v6770, %v6777
        %v6780 = vunpack.c.l.s4 1983009808
        %v6781 = vunpack.c.0.s8 %v6780
        %v6782 = vlaneseq
        %v6783 = vshrl.u32 %v6782, 7
        %v6784 = vsub.s32 %v6781, %v6783
        %v6785 = vrot.slane %v6771, %v6784
        %v6786 = vcombine.low %v6778, %v6785
        %v6792 = vcombine.low %v6630, %v6639
        %v6793 = vcombine.low %v6648, %v6657
        %v6795 = vunpack.c.l.s4 1983009808
        %v6796 = vunpack.c.0.s8 %v6795
        %v6797 = vlaneseq
        %v6798 = vshrl.u32 %v6797, 7
        %v6799 = vsub.s32 %v6796, %v6798
        %v6800 = vrot.slane %v6792, %v6799
        %v6802 = vunpack.c.l.s4 1983009808
        %v6803 = vunpack.c.0.s8 %v6802
        %v6804 = vlaneseq
        %v6805 = vshrl.u32 %v6804, 7
        %v6806 = vsub.s32 %v6803, %v6805
        %v6807 = vrot.slane %v6793, %v6806
        %v6808 = vcombine.low %v6800, %v6807
        %6809 = vrot.lane.b32.xlu0 %v6808, 8
        %v6810 = vpop.permute.xlu0 %6809
        %v6816 = vcombine.low %v6665, %v6674
        %v6817 = vcombine.low %v6683, %v6692
        %v6819 = vunpack.c.l.s4 1983009808
        %v6820 = vunpack.c.0.s8 %v6819
        %v6821 = vlaneseq
        %v6822 = vshrl.u32 %v6821, 7
        %v6823 = vsub.s32 %v6820, %v6822
        %v6824 = vrot.slane %v6816, %v6823
        %v6826 = vunpack.c.l.s4 1983009808
        %v6827 = vunpack.c.0.s8 %v6826
        %v6828 = vlaneseq
        %v6829 = vshrl.u32 %v6828, 7
        %v6830 = vsub.s32 %v6827, %v6829
        %v6831 = vrot.slane %v6817, %v6830
        %v6832 = vcombine.low %v6824, %v6831
        %6833 = vrot.lane.b32.xlu0 %v6832, 16
        %v6834 = vpop.permute.xlu0 %6833
        %v6840 = vcombine.low %v6666, %v6675
        %v6841 = vcombine.low %v6684, %v6693
        %v6843 = vunpack.c.l.s4 1983009808
        %v6844 = vunpack.c.0.s8 %v6843
        %v6845 = vlaneseq
        %v6846 = vshrl.u32 %v6845, 7
        %v6847 = vsub.s32 %v6844, %v6846
        %v6848 = vrot.slane %v6840, %v6847
        %v6850 = vunpack.c.l.s4 1983009808
        %v6851 = vunpack.c.0.s8 %v6850
        %v6852 = vlaneseq
        %v6853 = vshrl.u32 %v6852, 7
        %v6854 = vsub.s32 %v6851, %v6853
        %v6855 = vrot.slane %v6841, %v6854
        %v6856 = vcombine.low %v6848, %v6855
        %6857 = vrot.lane.b32.xlu0 %v6856, 24
        %v6858 = vpop.permute.xlu0 %6857
        %v6864 = vcombine.low %v6701, %v6710
        %v6865 = vcombine.low %v6719, %v6728
        %v6867 = vunpack.c.l.s4 1983009808
        %v6868 = vunpack.c.0.s8 %v6867
        %v6869 = vlaneseq
        %v6870 = vshrl.u32 %v6869, 7
        %v6871 = vsub.s32 %v6868, %v6870
        %v6872 = vrot.slane %v6864, %v6871
        %v6874 = vunpack.c.l.s4 1983009808
        %v6875 = vunpack.c.0.s8 %v6874
        %v6876 = vlaneseq
        %v6877 = vshrl.u32 %v6876, 7
        %v6878 = vsub.s32 %v6875, %v6877
        %v6879 = vrot.slane %v6865, %v6878
        %v6880 = vcombine.low %v6872, %v6879
        %6881 = vrot.lane.b32.xlu0 %v6880, 32
        %v6882 = vpop.permute.xlu0 %6881
        %v6888 = vcombine.low %v6702, %v6711
        %v6889 = vcombine.low %v6720, %v6729
        %v6891 = vunpack.c.l.s4 1983009808
        %v6892 = vunpack.c.0.s8 %v6891
        %v6893 = vlaneseq
        %v6894 = vshrl.u32 %v6893, 7
        %v6895 = vsub.s32 %v6892, %v6894
        %v6896 = vrot.slane %v6888, %v6895
        %v6898 = vunpack.c.l.s4 1983009808
        %v6899 = vunpack.c.0.s8 %v6898
        %v6900 = vlaneseq
        %v6901 = vshrl.u32 %v6900, 7
        %v6902 = vsub.s32 %v6899, %v6901
        %v6903 = vrot.slane %v6889, %v6902
        %v6904 = vcombine.low %v6896, %v6903
        %6905 = vrot.lane.b32.xlu0 %v6904, 40
        %v6906 = vpop.permute.xlu0 %6905
        %v6912 = vcombine.low %v6737, %v6746
        %v6913 = vcombine.low %v6755, %v6764
        %v6915 = vunpack.c.l.s4 1983009808
        %v6916 = vunpack.c.0.s8 %v6915
        %v6917 = vlaneseq
        %v6918 = vshrl.u32 %v6917, 7
        %v6919 = vsub.s32 %v6916, %v6918
        %v6920 = vrot.slane %v6912, %v6919
        %v6922 = vunpack.c.l.s4 1983009808
        %v6923 = vunpack.c.0.s8 %v6922
        %v6924 = vlaneseq
        %v6925 = vshrl.u32 %v6924, 7
        %v6926 = vsub.s32 %v6923, %v6925
        %v6927 = vrot.slane %v6913, %v6926
        %v6928 = vcombine.low %v6920, %v6927
        %6929 = vrot.lane.b32.xlu0 %v6928, 48
        %v6930 = vpop.permute.xlu0 %6929
        %v6936 = vcombine.low %v6738, %v6747
        %v6937 = vcombine.low %v6756, %v6765
        %v6939 = vunpack.c.l.s4 1983009808
        %v6940 = vunpack.c.0.s8 %v6939
        %v6941 = vlaneseq
        %v6942 = vshrl.u32 %v6941, 7
        %v6943 = vsub.s32 %v6940, %v6942
        %v6944 = vrot.slane %v6936, %v6943
        %v6946 = vunpack.c.l.s4 1983009808
        %v6947 = vunpack.c.0.s8 %v6946
        %v6948 = vlaneseq
        %v6949 = vshrl.u32 %v6948, 7
        %v6950 = vsub.s32 %v6947, %v6949
        %v6951 = vrot.slane %v6937, %v6950
        %v6952 = vcombine.low %v6944, %v6951
        %6953 = vrot.lane.b32.xlu0 %v6952, 56
        %v6954 = vpop.permute.xlu0 %6953
        %v6956 = vsel %vm4939, %v6786, %v6810
        %vm6957 = vcmask 130048
        %v6958 = vsel %vm6957, %v6956, %v6834
        %vm6959 = vcmask 195584
        %v6960 = vsel %vm6959, %v6958, %v6858
        %vm6961 = vcmask 261120
        %v6962 = vsel %vm6961, %v6960, %v6882
        %vm6963 = vcmask 326656
        %v6964 = vsel %vm6963, %v6962, %v6906
        %vm6965 = vcmask 392192
        %v6966 = vsel %vm6965, %v6964, %v6930
        %vm6967 = vcmask 457728
        %v6968 = vsel %vm6967, %v6966, %v6954
        %vm6969 = vcmask 523264
        %6970 = vst.msk [vmem:[%s271] sm:$0xff] %vm6969, %v6968
        %s6971 = sand.u32 %s181, 1
        %s6972 = scalar_lea.sflag [#allocation6], %s6971
        %s6973 = sand.u32 %s181, 1
        %s6974 = smul.addr %s6973, 8
        %s6975 = scalar_lea.vmem [#allocation5], %s6974
        // Predicated region
        $region49: #{tpu_custom_call.1} parent=47 // pred_check
          %p6976 = pneg %p191
        $region50: #{tpu_custom_call.1} parent=47 // pred_check_branch
          %6978 = sbr.rel (%p6976) target = $region52
        $region51: #{tpu_custom_call.1} parent=47 // pred_region
          %s6980 = ssub.s32 128, 128
          %6981 = vsyncadd %s6972, %s6980
          %s6982 = smul.addr %s21, 128
          %s6983 = scalar_lea.hbm %s7, %s6982
          %s6985 = sshll.u32 %s6975, 4
          %s6986 = int_to_ptr.vmem [resolvable:$true] %s6985
          %6988 = dma.vmem_to_hbm [thread:$0]  %s6986, 128, %s6983, %s6972
        $region52: #{tpu_custom_call.1} parent=47 // pred_fallthru
          _
      $region48: #{tpu_custom_call.1} parent=5 // pred_fallthru
        _
      %p6989 = scmp.le.s32.totalorder 2, %s16
      // Predicated region
      $region53: #{tpu_custom_call.1} parent=5 // pred_check
        %p6990 = pneg %p6989
      $region54: #{tpu_custom_call.1} parent=5 // pred_check_branch
        %6992 = sbr.rel (%p6990) target = $region56
      $region55: #{tpu_custom_call.1} parent=5 // pred_region
        %s6993 = ssub.s32 %s16, 2
        // Predicated region
        $region57: #{tpu_custom_call.1} parent=55 // pred_check
          %p6994 = pneg %p197
        $region58: #{tpu_custom_call.1} parent=55 // pred_check_branch
          %6996 = sbr.rel (%p6994) target = $region60
        $region59: #{tpu_custom_call.1} parent=55 // pred_region
          %s6997 = sand.u32 %s182, 1
          %s6998 = scalar_lea.sflag [#allocation6], %s6997
          %s6999 = sand.u32 %s182, 1
          %s7000 = smul.addr %s6999, 8
          %s7001 = scalar_lea.vmem [#allocation5], %s7000
          %7002 = dma.done %s6998, 128
        $region60: #{tpu_custom_call.1} parent=55 // pred_fallthru
          _
      $region56: #{tpu_custom_call.1} parent=5 // pred_fallthru
        _
    $region6: #{tpu_custom_call.1} parent=1 // loop_footer
      %s20 = sadd.s32 1, %s16
    $region7: #{tpu_custom_call.1} parent=1 // loop_footer_branch
      %15 = sbr.rel target = $region3
    $region8: #{tpu_custom_call.1} parent=1 // loop_exit
      _
    %7003 = vsyncpa [#allocation6], 1
    %s7004 = scalar_lea.sflag [#allocation6], 1
    %7005 = vsyncpa %s7004, 1

</llo_original>
